<compile_context>
chip_gen: v7x
topology: tpu7x:2x2x1
jax: 0.10.0
libtpu: 0.0.40
codegen_flags: <defaults>
</compile_context>

<pallas_src>
import jax
import jax.numpy as jnp
from jax.experimental import pallas as pl
from jax.experimental.pallas import tpu as pltpu

_MiB = 1024 * 1024


def _round_up(x, m):
    return (x + m - 1) // m * m


def _make_kernel(n_features):
    """Kernel closure over the *real* (unpadded) feature count used for stats."""
    inv_n = 1.0 / n_features
    inv_nm1 = 1.0 / (n_features - 1)  # torch.std(dim=1) is unbiased

    def kernel(x_ref,
               w1_ref, b1_ref, cs1_ref,
               w2_ref, b2_ref,
               w3_ref, b3_ref,
               w4_ref, b4_ref,
               o_ref):
        # Stats always in f32 (x may be streamed as bf16). Zero-padded feature
        # columns / batch rows contribute nothing to the sums, and we divide by
        # the real n, so padding does not perturb mean/std.
        x = x_ref[...].astype(jnp.float32)
        rs = jnp.sum(x, axis=1, keepdims=True)            # [tb, 1]
        rss = jnp.sum(x * x, axis=1, keepdims=True)       # [tb, 1]
        mean = rs * inv_n
        var = jnp.maximum((rss - n_features * mean * mean) * inv_nm1, 0.0)
        # reciprocal once per row on the [tb,1] column; broadcast multiply later
        inv = pl.reciprocal(jnp.sqrt(var) + 1e-8, approx=False)

        def linear(h, w_ref, b_ref):
            # bf16 MXU operands (weights are bf16-resident), f32 accumulation.
            return jnp.dot(h.astype(jnp.bfloat16), w_ref[...],
                           preferred_element_type=jnp.float32) + b_ref[...]

        def layernorm(h):
            # nn.LayerNorm default: eps=1e-5, biased variance, weight=1, bias=0
            m = jnp.mean(h, axis=-1, keepdims=True)
            c = h - m
            v = jnp.mean(c * c, axis=-1, keepdims=True)
            return c * jax.lax.rsqrt(v + 1e-5)

        # --- layer 1: standardization folded into the matmul ---
        #   ((x - mean) * inv) @ W1 + b1 = inv * (x @ W1 - mean * colsum(W1)) + b1
        s = jnp.dot(x_ref[...].astype(jnp.bfloat16), w1_ref[...],
                    preferred_element_type=jnp.float32)
        h = inv * (s - mean * cs1_ref[...]) + b1_ref[...]
        h = jnp.maximum(layernorm(h), 0.0)
        # --- remaining reduce_dim / main_network layers ---
        h = jnp.maximum(layernorm(linear(h, w2_ref, b2_ref)), 0.0)
        h = jnp.maximum(layernorm(linear(h, w3_ref, b3_ref)), 0.0)
        h = linear(h, w4_ref, b4_ref)
        o_ref[...] = jax.nn.sigmoid(h).astype(o_ref.dtype)

    return kernel


def simple_mlp_forward(x, params, *, tile_b_cap=1024, stream_x_bf16=False):
    """x: [B, C, H, W] float32; params: dict of transposed f32 weights / [1,N] biases."""
    B = x.shape[0]
    x2d = x.reshape(B, -1)                      # nn.Flatten (row-major, matches torch)
    input_size = x2d.shape[1]
    assert input_size > 1, "unbiased std needs at least 2 features per sample"
    hidden_size = params["w3"].shape[1]
    output_size = params["w4"].shape[1]

    # --- feature padding: K to a multiple of 256 (MXU), output to 128 (lane-dense) ---
    k_pad = _round_up(input_size, 256)
    out_pad = _round_up(output_size, 128)
    if k_pad != input_size:
        x2d = jnp.pad(x2d, ((0, 0), (0, k_pad - input_size)))

    # --- bf16 weights (MXU fast path, halves DMA / VMEM residency); biases stay f32 ---
    w1 = jnp.pad(params["w1"], ((0, k_pad - input_size), (0, 0))).astype(jnp.bfloat16)
    w2 = params["w2"].astype(jnp.bfloat16)
    w3 = params["w3"].astype(jnp.bfloat16)
    w4 = jnp.pad(params["w4"], ((0, 0), (0, out_pad - output_size))).astype(jnp.bfloat16)
    b1, b2, b3 = params["b1"], params["b2"], params["b3"]
    b4 = jnp.pad(params["b4"], ((0, 0), (0, out_pad - output_size)))
    # column sums of W1 for the folded standardization (matches the matmul's bf16 weights)
    cs1 = jnp.sum(w1.astype(jnp.float32), axis=0, keepdims=True)  # [1, 512]

    # optional bf16 x streaming (halves the dominant HBM stream on v6e/v7x;
    # small input-quantization deviation from the f32 torch reference)
    if stream_x_bf16:
        x2d = x2d.astype(jnp.bfloat16)
    x_bytes = 2 if stream_x_bf16 else 4

    # --- generation-aware VMEM budget ---
    try:
        vmem_cap = int(getattr(pltpu.get_tpu_info(), "vmem_capacity_bytes", 64 * _MiB))
    except Exception:
        vmem_cap = 64 * _MiB  # conservative (v7x-sized) fallback
    # ~40 MiB on v7x (64 MiB/TC), ~96 MiB on v5e/v6e (128 MiB)
    budget = min(vmem_cap - 24 * _MiB, (3 * vmem_cap) // 4)

    # resident weights/biases (budget for double-buffering = worst case / fallback path)
    weights_bytes = 2 * 2 * (w1.size + w2.size + w3.size + w4.size) \
        + 2 * 4 * (b1.size + b2.size + b3.size + b4.size + cs1.size)
    # per-batch-row VMEM: double-buffered x + out tiles, f32 working copy of x,
    # bf16 matmul operand, and the f32 activations (with 2x headroom on the latter)
    per_row_bytes = (2 * k_pad * x_bytes
                     + 2 * out_pad * 4
                     + k_pad * 4 + k_pad * 2
                     + 2 * (512 + 256 + hidden_size + out_pad) * 4)

    # --- batch tiling: multiple of 16 (bf16 sublane packing); aim for >=4 grid steps ---
    min_steps = 4                      # even and >= 2 per core on v7x's two TCs
    tile_b_steps = _round_up((B + min_steps - 1) // min_steps, 16)
    tile_b_vmem = max(16, ((budget - weights_bytes) // per_row_bytes) // 16 * 16)
    tile_b = max(16, min(tile_b_cap, tile_b_steps, tile_b_vmem))

    b_pad = _round_up(B, tile_b)
    if b_pad != B:
        x2d = jnp.pad(x2d, ((0, b_pad - B), (0, 0)))
    grid = (b_pad // tile_b,)
    # TODO(synk): for genuinely tiny batches (B=2) the MXU is still mostly idle and the
    # grid has a single step; callers should stack requests before invoking the kernel.

    est = weights_bytes + tile_b * per_row_bytes
    vmem_limit = int(min(vmem_cap, max(budget, 2 * est)))

    kernel = _make_kernel(input_size)
    args = (x2d, w1, b1, cs1, w2, b2, w3, b3, w4, b4)

    def build(single_buffer_weights):
        def const_spec(shape):
            # weights/biases resident across all grid iterations (constant index_map)
            if single_buffer_weights:
                return pl.BlockSpec(shape, lambda i: (0, 0),
                                    pipeline_mode=pl.Buffered(1))
            return pl.BlockSpec(shape, lambda i: (0, 0))

        in_specs = [pl.BlockSpec((tile_b, k_pad), lambda i: (i, 0))]
        in_specs += [const_spec(a.shape) for a in (w1, b1, cs1, w2, b2, w3, b3, w4, b4)]
        return pl.pallas_call(
            kernel,
            out_shape=jax.ShapeDtypeStruct((b_pad, out_pad), jnp.float32),
            grid=grid,
            in_specs=in_specs,
            out_specs=pl.BlockSpec((tile_b, out_pad), lambda i: (i, 0)),
            compiler_params=pltpu.CompilerParams(
                dimension_semantics=("parallel",),
                vmem_limit_bytes=vmem_limit),
        )

    try:
        out = build(single_buffer_weights=True)(*args)
    except Exception:
        # pipeline_mode=pl.Buffered(1) not supported on this jax build; fall back
        # to default double-buffered resident weights (correctness identical).
        out = build(single_buffer_weights=False)(*args)

    return out[:B, :output_size]


def init_params(key, input_size, hidden_size, output_size):
    """Kaiming-normal (fan_in, relu gain=sqrt(2)) weights, zero biases, like _init_weights.
    Weights are stored transposed: [in_features, out_features]."""
    dims = [(input_size, 512), (512, 256), (256, hidden_size), (hidden_size, output_size)]
    params = {}
    for i, (fan_in, fan_out) in enumerate(dims, start=1):
        key, sub = jax.random.split(key)
        std = (2.0 / fan_in) ** 0.5  # kaiming_normal_, mode='fan_in', nonlinearity='relu'
        params[f"w{i}"] = std * jax.random.normal(sub, (fan_in, fan_out), jnp.float32)
        params[f"b{i}"] = jnp.zeros((1, fan_out), jnp.float32)
    return params


if __name__ == "__main__":
    key = jax.random.PRNGKey(0)

    # Small example shapes: batch=2, channels=4, spatial=16x16 -> input_size = 1024
    B, C, H, W = 2, 4, 16, 16
    input_size = C * H * W
    hidden_size = 128
    output_size = 64

    key, xkey = jax.random.split(key)
    x = jax.random.normal(xkey, (B, C, H, W), jnp.float32)

    params = init_params(key, input_size, hidden_size, output_size)

    out = simple_mlp_forward(x, params)
    jax.block_until_ready(out)

    assert out.shape == (B, output_size)
    assert bool(jnp.all(jnp.isfinite(out)))
    assert bool(jnp.all((out >= 0.0) & (out <= 1.0)))  # sigmoid range
    print("KERNEL_OK")
</pallas_src>

<mosaic_0001>
module attributes {stable_mosaic.version = 11 : i64} {
  func.func @kernel(%arg0: i32, %arg1: memref<16x1024xf32, #tpu.memory_space<vmem>>, %arg2: memref<1024x512xbf16, #tpu.memory_space<vmem>>, %arg3: memref<1x512xf32, #tpu.memory_space<vmem>>, %arg4: memref<1x512xf32, #tpu.memory_space<vmem>>, %arg5: memref<512x256xbf16, #tpu.memory_space<vmem>>, %arg6: memref<1x256xf32, #tpu.memory_space<vmem>>, %arg7: memref<256x128xbf16, #tpu.memory_space<vmem>>, %arg8: memref<1x128xf32, #tpu.memory_space<vmem>>, %arg9: memref<128x128xbf16, #tpu.memory_space<vmem>>, %arg10: memref<1x128xf32, #tpu.memory_space<vmem>>, %arg11: memref<16x128xf32, #tpu.memory_space<vmem>>) attributes {dimension_semantics = [#tpu.dimension_semantics<parallel>], iteration_bounds = array<i64: 1>, scalar_prefetch = 0 : i64, scratch_operands = 0 : i64, tpu.core_type = #tpu.core_type<tc>, window_params = [{transform_indices = @transform_0, window_bounds = array<i64: 16, 1024>}, {pipeline_mode = #tpu.pipeline_mode<synchronous>, transform_indices = @transform_1, window_bounds = array<i64: 1024, 512>}, {pipeline_mode = #tpu.pipeline_mode<synchronous>, transform_indices = @transform_2, window_bounds = array<i64: 1, 512>}, {pipeline_mode = #tpu.pipeline_mode<synchronous>, transform_indices = @transform_3, window_bounds = array<i64: 1, 512>}, {pipeline_mode = #tpu.pipeline_mode<synchronous>, transform_indices = @transform_4, window_bounds = array<i64: 512, 256>}, {pipeline_mode = #tpu.pipeline_mode<synchronous>, transform_indices = @transform_5, window_bounds = array<i64: 1, 256>}, {pipeline_mode = #tpu.pipeline_mode<synchronous>, transform_indices = @transform_6, window_bounds = array<i64: 256, 128>}, {pipeline_mode = #tpu.pipeline_mode<synchronous>, transform_indices = @transform_7, window_bounds = array<i64: 1, 128>}, {pipeline_mode = #tpu.pipeline_mode<synchronous>, transform_indices = @transform_8, window_bounds = array<i64: 128, 128>}, {pipeline_mode = #tpu.pipeline_mode<synchronous>, transform_indices = @transform_9, window_bounds = array<i64: 1, 128>}, {transform_indices = @transform_10, window_bounds = array<i64: 16, 128>}]} {
    %c0 = arith.constant 0 : index
    %c0_0 = arith.constant 0 : index
    %0 = vector.load %arg1[%c0, %c0_0] : memref<16x1024xf32, #tpu.memory_space<vmem>>, vector<16x1024xf32>
    %cst = arith.constant dense<0.000000e+00> : vector<16xf32>
    %1 = vector.multi_reduction <add>, %0, %cst [1] : vector<16x1024xf32> to vector<16xf32>
    %2 = vector.shape_cast %1 : vector<16xf32> to vector<16x1xf32>
    %3 = arith.mulf %0, %0 : vector<16x1024xf32>
    %cst_1 = arith.constant dense<0.000000e+00> : vector<16xf32>
    %4 = vector.multi_reduction <add>, %3, %cst_1 [1] : vector<16x1024xf32> to vector<16xf32>
    %5 = vector.shape_cast %4 : vector<16xf32> to vector<16x1xf32>
    %cst_2 = arith.constant 9.765625E-4 : f32
    %6 = vector.broadcast %cst_2 : f32 to vector<16x1xf32>
    %7 = arith.mulf %2, %6 : vector<16x1xf32>
    %cst_3 = arith.constant 1.024000e+03 : f32
    %8 = vector.broadcast %cst_3 : f32 to vector<16x1xf32>
    %9 = arith.mulf %8, %7 : vector<16x1xf32>
    %10 = arith.mulf %9, %7 : vector<16x1xf32>
    %11 = arith.subf %5, %10 : vector<16x1xf32>
    %cst_4 = arith.constant 9.77517105E-4 : f32
    %12 = vector.broadcast %cst_4 : f32 to vector<16x1xf32>
    %13 = arith.mulf %11, %12 : vector<16x1xf32>
    %cst_5 = arith.constant 0.000000e+00 : f32
    %14 = vector.broadcast %cst_5 : f32 to vector<16x1xf32>
    %15 = arith.maximumf %13, %14 : vector<16x1xf32>
    %16 = math.sqrt %15 : vector<16x1xf32>
    %cst_6 = arith.constant 9.99999993E-9 : f32
    %17 = vector.broadcast %cst_6 : f32 to vector<16x1xf32>
    %18 = arith.addf %16, %17 : vector<16x1xf32>
    %19 = tpu.reciprocal %18 : vector<16x1xf32> -> vector<16x1xf32>
    %c0_7 = arith.constant 0 : index
    %c0_8 = arith.constant 0 : index
    %20 = vector.load %arg1[%c0_7, %c0_8] : memref<16x1024xf32, #tpu.memory_space<vmem>>, vector<16x1024xf32>
    %21 = arith.truncf %20 : vector<16x1024xf32> to vector<16x1024xbf16>
    %c0_9 = arith.constant 0 : index
    %c0_10 = arith.constant 0 : index
    %22 = vector.load %arg2[%c0_9, %c0_10] : memref<1024x512xbf16, #tpu.memory_space<vmem>>, vector<1024x512xbf16>
    %cst_11 = arith.constant dense<0.000000e+00> : vector<16x512xf32>
    %23 = tpu.matmul %21, %22, %cst_11 {dimension_numbers = #tpu.dot_dimension_numbers<[1], [0], [0], [1], [0, 0, 1, 1], [], []>} : vector<16x1024xbf16>, vector<1024x512xbf16>, vector<16x512xf32> -> vector<16x512xf32>
    %c0_12 = arith.constant 0 : index
    %c0_13 = arith.constant 0 : index
    %24 = vector.load %arg4[%c0_12, %c0_13] : memref<1x512xf32, #tpu.memory_space<vmem>>, vector<1x512xf32>
    %25 = vector.broadcast %7 : vector<16x1xf32> to vector<16x512xf32>
    %26 = vector.broadcast %24 : vector<1x512xf32> to vector<16x512xf32>
    %27 = arith.mulf %25, %26 : vector<16x512xf32>
    %28 = arith.subf %23, %27 : vector<16x512xf32>
    %29 = vector.broadcast %19 : vector<16x1xf32> to vector<16x512xf32>
    %30 = arith.mulf %29, %28 : vector<16x512xf32>
    %c0_14 = arith.constant 0 : index
    %c0_15 = arith.constant 0 : index
    %31 = vector.load %arg3[%c0_14, %c0_15] : memref<1x512xf32, #tpu.memory_space<vmem>>, vector<1x512xf32>
    %32 = vector.broadcast %31 : vector<1x512xf32> to vector<16x512xf32>
    %33 = arith.addf %30, %32 : vector<16x512xf32>
    %cst_16 = arith.constant dense<0.000000e+00> : vector<16xf32>
    %34 = vector.multi_reduction <add>, %33, %cst_16 [1] : vector<16x512xf32> to vector<16xf32>
    %35 = vector.shape_cast %34 : vector<16xf32> to vector<16x1xf32>
    %cst_17 = arith.constant 5.120000e+02 : f32
    %36 = vector.broadcast %cst_17 : f32 to vector<16x1xf32>
    %37 = arith.divf %35, %36 : vector<16x1xf32>
    %38 = vector.broadcast %37 : vector<16x1xf32> to vector<16x512xf32>
    %39 = arith.subf %33, %38 : vector<16x512xf32>
    %40 = arith.mulf %39, %39 : vector<16x512xf32>
    %cst_18 = arith.constant dense<0.000000e+00> : vector<16xf32>
    %41 = vector.multi_reduction <add>, %40, %cst_18 [1] : vector<16x512xf32> to vector<16xf32>
    %42 = vector.shape_cast %41 : vector<16xf32> to vector<16x1xf32>
    %cst_19 = arith.constant 5.120000e+02 : f32
    %43 = vector.broadcast %cst_19 : f32 to vector<16x1xf32>
    %44 = arith.divf %42, %43 : vector<16x1xf32>
    %cst_20 = arith.constant 9.99999974E-6 : f32
    %45 = vector.broadcast %cst_20 : f32 to vector<16x1xf32>
    %46 = arith.addf %44, %45 : vector<16x1xf32>
    %47 = math.rsqrt %46 : vector<16x1xf32>
    %48 = vector.broadcast %47 : vector<16x1xf32> to vector<16x512xf32>
    %49 = arith.mulf %39, %48 : vector<16x512xf32>
    %cst_21 = arith.constant 0.000000e+00 : f32
    %50 = vector.broadcast %cst_21 : f32 to vector<16x512xf32>
    %51 = arith.maximumf %49, %50 : vector<16x512xf32>
    %52 = arith.truncf %51 : vector<16x512xf32> to vector<16x512xbf16>
    %c0_22 = arith.constant 0 : index
    %c0_23 = arith.constant 0 : index
    %53 = vector.load %arg5[%c0_22, %c0_23] : memref<512x256xbf16, #tpu.memory_space<vmem>>, vector<512x256xbf16>
    %cst_24 = arith.constant dense<0.000000e+00> : vector<16x256xf32>
    %54 = tpu.matmul %52, %53, %cst_24 {dimension_numbers = #tpu.dot_dimension_numbers<[1], [0], [0], [1], [0, 0, 1, 1], [], []>} : vector<16x512xbf16>, vector<512x256xbf16>, vector<16x256xf32> -> vector<16x256xf32>
    %c0_25 = arith.constant 0 : index
    %c0_26 = arith.constant 0 : index
    %55 = vector.load %arg6[%c0_25, %c0_26] : memref<1x256xf32, #tpu.memory_space<vmem>>, vector<1x256xf32>
    %56 = vector.broadcast %55 : vector<1x256xf32> to vector<16x256xf32>
    %57 = arith.addf %54, %56 : vector<16x256xf32>
    %cst_27 = arith.constant dense<0.000000e+00> : vector<16xf32>
    %58 = vector.multi_reduction <add>, %57, %cst_27 [1] : vector<16x256xf32> to vector<16xf32>
    %59 = vector.shape_cast %58 : vector<16xf32> to vector<16x1xf32>
    %cst_28 = arith.constant 2.560000e+02 : f32
    %60 = vector.broadcast %cst_28 : f32 to vector<16x1xf32>
    %61 = arith.divf %59, %60 : vector<16x1xf32>
    %62 = vector.broadcast %61 : vector<16x1xf32> to vector<16x256xf32>
    %63 = arith.subf %57, %62 : vector<16x256xf32>
    %64 = arith.mulf %63, %63 : vector<16x256xf32>
    %cst_29 = arith.constant dense<0.000000e+00> : vector<16xf32>
    %65 = vector.multi_reduction <add>, %64, %cst_29 [1] : vector<16x256xf32> to vector<16xf32>
    %66 = vector.shape_cast %65 : vector<16xf32> to vector<16x1xf32>
    %cst_30 = arith.constant 2.560000e+02 : f32
    %67 = vector.broadcast %cst_30 : f32 to vector<16x1xf32>
    %68 = arith.divf %66, %67 : vector<16x1xf32>
    %cst_31 = arith.constant 9.99999974E-6 : f32
    %69 = vector.broadcast %cst_31 : f32 to vector<16x1xf32>
    %70 = arith.addf %68, %69 : vector<16x1xf32>
    %71 = math.rsqrt %70 : vector<16x1xf32>
    %72 = vector.broadcast %71 : vector<16x1xf32> to vector<16x256xf32>
    %73 = arith.mulf %63, %72 : vector<16x256xf32>
    %cst_32 = arith.constant 0.000000e+00 : f32
    %74 = vector.broadcast %cst_32 : f32 to vector<16x256xf32>
    %75 = arith.maximumf %73, %74 : vector<16x256xf32>
    %76 = arith.truncf %75 : vector<16x256xf32> to vector<16x256xbf16>
    %c0_33 = arith.constant 0 : index
    %c0_34 = arith.constant 0 : index
    %77 = vector.load %arg7[%c0_33, %c0_34] : memref<256x128xbf16, #tpu.memory_space<vmem>>, vector<256x128xbf16>
    %cst_35 = arith.constant dense<0.000000e+00> : vector<16x128xf32>
    %78 = tpu.matmul %76, %77, %cst_35 {dimension_numbers = #tpu.dot_dimension_numbers<[1], [0], [0], [1], [0, 0, 1, 1], [], []>} : vector<16x256xbf16>, vector<256x128xbf16>, vector<16x128xf32> -> vector<16x128xf32>
    %c0_36 = arith.constant 0 : index
    %c0_37 = arith.constant 0 : index
    %79 = vector.load %arg8[%c0_36, %c0_37] : memref<1x128xf32, #tpu.memory_space<vmem>>, vector<1x128xf32>
    %80 = vector.broadcast %79 : vector<1x128xf32> to vector<16x128xf32>
    %81 = arith.addf %78, %80 : vector<16x128xf32>
    %cst_38 = arith.constant dense<0.000000e+00> : vector<16xf32>
    %82 = vector.multi_reduction <add>, %81, %cst_38 [1] : vector<16x128xf32> to vector<16xf32>
    %83 = vector.shape_cast %82 : vector<16xf32> to vector<16x1xf32>
    %cst_39 = arith.constant 1.280000e+02 : f32
    %84 = vector.broadcast %cst_39 : f32 to vector<16x1xf32>
    %85 = arith.divf %83, %84 : vector<16x1xf32>
    %86 = vector.broadcast %85 : vector<16x1xf32> to vector<16x128xf32>
    %87 = arith.subf %81, %86 : vector<16x128xf32>
    %88 = arith.mulf %87, %87 : vector<16x128xf32>
    %cst_40 = arith.constant dense<0.000000e+00> : vector<16xf32>
    %89 = vector.multi_reduction <add>, %88, %cst_40 [1] : vector<16x128xf32> to vector<16xf32>
    %90 = vector.shape_cast %89 : vector<16xf32> to vector<16x1xf32>
    %cst_41 = arith.constant 1.280000e+02 : f32
    %91 = vector.broadcast %cst_41 : f32 to vector<16x1xf32>
    %92 = arith.divf %90, %91 : vector<16x1xf32>
    %cst_42 = arith.constant 9.99999974E-6 : f32
    %93 = vector.broadcast %cst_42 : f32 to vector<16x1xf32>
    %94 = arith.addf %92, %93 : vector<16x1xf32>
    %95 = math.rsqrt %94 : vector<16x1xf32>
    %96 = vector.broadcast %95 : vector<16x1xf32> to vector<16x128xf32>
    %97 = arith.mulf %87, %96 : vector<16x128xf32>
    %cst_43 = arith.constant 0.000000e+00 : f32
    %98 = vector.broadcast %cst_43 : f32 to vector<16x128xf32>
    %99 = arith.maximumf %97, %98 : vector<16x128xf32>
    %100 = arith.truncf %99 : vector<16x128xf32> to vector<16x128xbf16>
    %c0_44 = arith.constant 0 : index
    %c0_45 = arith.constant 0 : index
    %101 = vector.load %arg9[%c0_44, %c0_45] : memref<128x128xbf16, #tpu.memory_space<vmem>>, vector<128x128xbf16>
    %cst_46 = arith.constant dense<0.000000e+00> : vector<16x128xf32>
    %102 = tpu.matmul %100, %101, %cst_46 {dimension_numbers = #tpu.dot_dimension_numbers<[1], [0], [0], [1], [0, 0, 1, 1], [], []>} : vector<16x128xbf16>, vector<128x128xbf16>, vector<16x128xf32> -> vector<16x128xf32>
    %c0_47 = arith.constant 0 : index
    %c0_48 = arith.constant 0 : index
    %103 = vector.load %arg10[%c0_47, %c0_48] : memref<1x128xf32, #tpu.memory_space<vmem>>, vector<1x128xf32>
    %104 = vector.broadcast %103 : vector<1x128xf32> to vector<16x128xf32>
    %105 = arith.addf %102, %104 : vector<16x128xf32>
    %106 = arith.negf %105 : vector<16x128xf32>
    %107 = math.exp %106 : vector<16x128xf32>
    %cst_49 = arith.constant 1.000000e+00 : f32
    %108 = vector.broadcast %cst_49 : f32 to vector<16x128xf32>
    %109 = arith.addf %108, %107 : vector<16x128xf32>
    %110 = arith.divf %108, %109 : vector<16x128xf32>
    %c0_50 = arith.constant 0 : index
    %c0_51 = arith.constant 0 : index
    %111 = vector.load %arg11[%c0_50, %c0_51] : memref<16x128xf32, #tpu.memory_space<vmem>>, vector<16x128xf32>
    tpu.vector_store %arg11[%c0_50, %c0_51], %110 {strides = array<i32>} : memref<16x128xf32, #tpu.memory_space<vmem>>, vector<16x128xf32>,
    return
  }
  func.func @transform_0(%arg0: i32) -> (i32, i32) {
    %c0_i32 = arith.constant 0 : i32
    %c0_i32_0 = arith.constant 0 : i32
    return %arg0, %c0_i32 : i32, i32
  }
  func.func @transform_1(%arg0: i32) -> (i32, i32) {
    %c0_i32 = arith.constant 0 : i32
    %c0_i32_0 = arith.constant 0 : i32
    %c0_i32_1 = arith.constant 0 : i32
    return %c0_i32, %c0_i32_0 : i32, i32
  }
  func.func @transform_2(%arg0: i32) -> (i32, i32) {
    %c0_i32 = arith.constant 0 : i32
    %c0_i32_0 = arith.constant 0 : i32
    %c0_i32_1 = arith.constant 0 : i32
    return %c0_i32, %c0_i32_0 : i32, i32
  }
  func.func @transform_3(%arg0: i32) -> (i32, i32) {
    %c0_i32 = arith.constant 0 : i32
    %c0_i32_0 = arith.constant 0 : i32
    %c0_i32_1 = arith.constant 0 : i32
    return %c0_i32, %c0_i32_0 : i32, i32
  }
  func.func @transform_4(%arg0: i32) -> (i32, i32) {
    %c0_i32 = arith.constant 0 : i32
    %c0_i32_0 = arith.constant 0 : i32
    %c0_i32_1 = arith.constant 0 : i32
    return %c0_i32, %c0_i32_0 : i32, i32
  }
  func.func @transform_5(%arg0: i32) -> (i32, i32) {
    %c0_i32 = arith.constant 0 : i32
    %c0_i32_0 = arith.constant 0 : i32
    %c0_i32_1 = arith.constant 0 : i32
    return %c0_i32, %c0_i32_0 : i32, i32
  }
  func.func @transform_6(%arg0: i32) -> (i32, i32) {
    %c0_i32 = arith.constant 0 : i32
    %c0_i32_0 = arith.constant 0 : i32
    %c0_i32_1 = arith.constant 0 : i32
    return %c0_i32, %c0_i32_0 : i32, i32
  }
  func.func @transform_7(%arg0: i32) -> (i32, i32) {
    %c0_i32 = arith.constant 0 : i32
    %c0_i32_0 = arith.constant 0 : i32
    %c0_i32_1 = arith.constant 0 : i32
    return %c0_i32, %c0_i32_0 : i32, i32
  }
  func.func @transform_8(%arg0: i32) -> (i32, i32) {
    %c0_i32 = arith.constant 0 : i32
    %c0_i32_0 = arith.constant 0 : i32
    %c0_i32_1 = arith.constant 0 : i32
    return %c0_i32, %c0_i32_0 : i32, i32
  }
  func.func @transform_9(%arg0: i32) -> (i32, i32) {
    %c0_i32 = arith.constant 0 : i32
    %c0_i32_0 = arith.constant 0 : i32
    %c0_i32_1 = arith.constant 0 : i32
    return %c0_i32, %c0_i32_0 : i32, i32
  }
  func.func @transform_10(%arg0: i32) -> (i32, i32) {
    %c0_i32 = arith.constant 0 : i32
    %c0_i32_0 = arith.constant 0 : i32
    return %arg0, %c0_i32 : i32, i32
  }
}

module attributes {stable_mosaic.version = 11 : i64} {
  func.func @kernel(%arg0: i32, %arg1: memref<16x1024xf32, #tpu.memory_space<vmem>>, %arg2: memref<1024x512xbf16, #tpu.memory_space<vmem>>, %arg3: memref<1x512xf32, #tpu.memory_space<vmem>>, %arg4: memref<1x512xf32, #tpu.memory_space<vmem>>, %arg5: memref<512x256xbf16, #tpu.memory_space<vmem>>, %arg6: memref<1x256xf32, #tpu.memory_space<vmem>>, %arg7: memref<256x128xbf16, #tpu.memory_space<vmem>>, %arg8: memref<1x128xf32, #tpu.memory_space<vmem>>, %arg9: memref<128x128xbf16, #tpu.memory_space<vmem>>, %arg10: memref<1x128xf32, #tpu.memory_space<vmem>>, %arg11: memref<16x128xf32, #tpu.memory_space<vmem>>) attributes {dimension_semantics = [#tpu.dimension_semantics<parallel>], iteration_bounds = array<i64: 1>, scalar_prefetch = 0 : i64, scratch_operands = 0 : i64, tpu.core_type = #tpu.core_type<tc>, window_params = [{transform_indices = @transform_0, window_bounds = array<i64: 16, 1024>}, {pipeline_mode = #tpu.pipeline_mode<synchronous>, transform_indices = @transform_1, window_bounds = array<i64: 1024, 512>}, {pipeline_mode = #tpu.pipeline_mode<synchronous>, transform_indices = @transform_2, window_bounds = array<i64: 1, 512>}, {pipeline_mode = #tpu.pipeline_mode<synchronous>, transform_indices = @transform_3, window_bounds = array<i64: 1, 512>}, {pipeline_mode = #tpu.pipeline_mode<synchronous>, transform_indices = @transform_4, window_bounds = array<i64: 512, 256>}, {pipeline_mode = #tpu.pipeline_mode<synchronous>, transform_indices = @transform_5, window_bounds = array<i64: 1, 256>}, {pipeline_mode = #tpu.pipeline_mode<synchronous>, transform_indices = @transform_6, window_bounds = array<i64: 256, 128>}, {pipeline_mode = #tpu.pipeline_mode<synchronous>, transform_indices = @transform_7, window_bounds = array<i64: 1, 128>}, {pipeline_mode = #tpu.pipeline_mode<synchronous>, transform_indices = @transform_8, window_bounds = array<i64: 128, 128>}, {pipeline_mode = #tpu.pipeline_mode<synchronous>, transform_indices = @transform_9, window_bounds = array<i64: 1, 128>}, {transform_indices = @transform_10, window_bounds = array<i64: 16, 128>}]} {
    %c0 = arith.constant 0 : index
    %c0_0 = arith.constant 0 : index
    %0 = vector.load %arg1[%c0, %c0_0] : memref<16x1024xf32, #tpu.memory_space<vmem>>, vector<16x1024xf32>
    %cst = arith.constant dense<0.000000e+00> : vector<16xf32>
    %1 = vector.multi_reduction <add>, %0, %cst [1] : vector<16x1024xf32> to vector<16xf32>
    %2 = vector.shape_cast %1 : vector<16xf32> to vector<16x1xf32>
    %3 = arith.mulf %0, %0 : vector<16x1024xf32>
    %cst_1 = arith.constant dense<0.000000e+00> : vector<16xf32>
    %4 = vector.multi_reduction <add>, %3, %cst_1 [1] : vector<16x1024xf32> to vector<16xf32>
    %5 = vector.shape_cast %4 : vector<16xf32> to vector<16x1xf32>
    %cst_2 = arith.constant 9.765625E-4 : f32
    %6 = vector.broadcast %cst_2 : f32 to vector<16x1xf32>
    %7 = arith.mulf %2, %6 : vector<16x1xf32>
    %cst_3 = arith.constant 1.024000e+03 : f32
    %8 = vector.broadcast %cst_3 : f32 to vector<16x1xf32>
    %9 = arith.mulf %8, %7 : vector<16x1xf32>
    %10 = arith.mulf %9, %7 : vector<16x1xf32>
    %11 = arith.subf %5, %10 : vector<16x1xf32>
    %cst_4 = arith.constant 9.77517105E-4 : f32
    %12 = vector.broadcast %cst_4 : f32 to vector<16x1xf32>
    %13 = arith.mulf %11, %12 : vector<16x1xf32>
    %cst_5 = arith.constant 0.000000e+00 : f32
    %14 = vector.broadcast %cst_5 : f32 to vector<16x1xf32>
    %15 = arith.maximumf %13, %14 : vector<16x1xf32>
    %16 = math.sqrt %15 : vector<16x1xf32>
    %cst_6 = arith.constant 9.99999993E-9 : f32
    %17 = vector.broadcast %cst_6 : f32 to vector<16x1xf32>
    %18 = arith.addf %16, %17 : vector<16x1xf32>
    %19 = tpu.reciprocal %18 : vector<16x1xf32> -> vector<16x1xf32>
    %c0_7 = arith.constant 0 : index
    %c0_8 = arith.constant 0 : index
    %20 = vector.load %arg1[%c0_7, %c0_8] : memref<16x1024xf32, #tpu.memory_space<vmem>>, vector<16x1024xf32>
    %21 = arith.truncf %20 : vector<16x1024xf32> to vector<16x1024xbf16>
    %c0_9 = arith.constant 0 : index
    %c0_10 = arith.constant 0 : index
    %22 = vector.load %arg2[%c0_9, %c0_10] : memref<1024x512xbf16, #tpu.memory_space<vmem>>, vector<1024x512xbf16>
    %cst_11 = arith.constant dense<0.000000e+00> : vector<16x512xf32>
    %23 = tpu.matmul %21, %22, %cst_11 {dimension_numbers = #tpu.dot_dimension_numbers<[1], [0], [0], [1], [0, 0, 1, 1], [], []>} : vector<16x1024xbf16>, vector<1024x512xbf16>, vector<16x512xf32> -> vector<16x512xf32>
    %c0_12 = arith.constant 0 : index
    %c0_13 = arith.constant 0 : index
    %24 = vector.load %arg4[%c0_12, %c0_13] : memref<1x512xf32, #tpu.memory_space<vmem>>, vector<1x512xf32>
    %25 = vector.broadcast %7 : vector<16x1xf32> to vector<16x512xf32>
    %26 = vector.broadcast %24 : vector<1x512xf32> to vector<16x512xf32>
    %27 = arith.mulf %25, %26 : vector<16x512xf32>
    %28 = arith.subf %23, %27 : vector<16x512xf32>
    %29 = vector.broadcast %19 : vector<16x1xf32> to vector<16x512xf32>
    %30 = arith.mulf %29, %28 : vector<16x512xf32>
    %c0_14 = arith.constant 0 : index
    %c0_15 = arith.constant 0 : index
    %31 = vector.load %arg3[%c0_14, %c0_15] : memref<1x512xf32, #tpu.memory_space<vmem>>, vector<1x512xf32>
    %32 = vector.broadcast %31 : vector<1x512xf32> to vector<16x512xf32>
    %33 = arith.addf %30, %32 : vector<16x512xf32>
    %cst_16 = arith.constant dense<0.000000e+00> : vector<16xf32>
    %34 = vector.multi_reduction <add>, %33, %cst_16 [1] : vector<16x512xf32> to vector<16xf32>
    %35 = vector.shape_cast %34 : vector<16xf32> to vector<16x1xf32>
    %cst_17 = arith.constant 5.120000e+02 : f32
    %36 = vector.broadcast %cst_17 : f32 to vector<16x1xf32>
    %37 = arith.divf %35, %36 : vector<16x1xf32>
    %38 = vector.broadcast %37 : vector<16x1xf32> to vector<16x512xf32>
    %39 = arith.subf %33, %38 : vector<16x512xf32>
    %40 = arith.mulf %39, %39 : vector<16x512xf32>
    %cst_18 = arith.constant dense<0.000000e+00> : vector<16xf32>
    %41 = vector.multi_reduction <add>, %40, %cst_18 [1] : vector<16x512xf32> to vector<16xf32>
    %42 = vector.shape_cast %41 : vector<16xf32> to vector<16x1xf32>
    %cst_19 = arith.constant 5.120000e+02 : f32
    %43 = vector.broadcast %cst_19 : f32 to vector<16x1xf32>
    %44 = arith.divf %42, %43 : vector<16x1xf32>
    %cst_20 = arith.constant 9.99999974E-6 : f32
    %45 = vector.broadcast %cst_20 : f32 to vector<16x1xf32>
    %46 = arith.addf %44, %45 : vector<16x1xf32>
    %47 = math.rsqrt %46 : vector<16x1xf32>
    %48 = vector.broadcast %47 : vector<16x1xf32> to vector<16x512xf32>
    %49 = arith.mulf %39, %48 : vector<16x512xf32>
    %cst_21 = arith.constant 0.000000e+00 : f32
    %50 = vector.broadcast %cst_21 : f32 to vector<16x512xf32>
    %51 = arith.maximumf %49, %50 : vector<16x512xf32>
    %52 = arith.truncf %51 : vector<16x512xf32> to vector<16x512xbf16>
    %c0_22 = arith.constant 0 : index
    %c0_23 = arith.constant 0 : index
    %53 = vector.load %arg5[%c0_22, %c0_23] : memref<512x256xbf16, #tpu.memory_space<vmem>>, vector<512x256xbf16>
    %cst_24 = arith.constant dense<0.000000e+00> : vector<16x256xf32>
    %54 = tpu.matmul %52, %53, %cst_24 {dimension_numbers = #tpu.dot_dimension_numbers<[1], [0], [0], [1], [0, 0, 1, 1], [], []>} : vector<16x512xbf16>, vector<512x256xbf16>, vector<16x256xf32> -> vector<16x256xf32>
    %c0_25 = arith.constant 0 : index
    %c0_26 = arith.constant 0 : index
    %55 = vector.load %arg6[%c0_25, %c0_26] : memref<1x256xf32, #tpu.memory_space<vmem>>, vector<1x256xf32>
    %56 = vector.broadcast %55 : vector<1x256xf32> to vector<16x256xf32>
    %57 = arith.addf %54, %56 : vector<16x256xf32>
    %cst_27 = arith.constant dense<0.000000e+00> : vector<16xf32>
    %58 = vector.multi_reduction <add>, %57, %cst_27 [1] : vector<16x256xf32> to vector<16xf32>
    %59 = vector.shape_cast %58 : vector<16xf32> to vector<16x1xf32>
    %cst_28 = arith.constant 2.560000e+02 : f32
    %60 = vector.broadcast %cst_28 : f32 to vector<16x1xf32>
    %61 = arith.divf %59, %60 : vector<16x1xf32>
    %62 = vector.broadcast %61 : vector<16x1xf32> to vector<16x256xf32>
    %63 = arith.subf %57, %62 : vector<16x256xf32>
    %64 = arith.mulf %63, %63 : vector<16x256xf32>
    %cst_29 = arith.constant dense<0.000000e+00> : vector<16xf32>
    %65 = vector.multi_reduction <add>, %64, %cst_29 [1] : vector<16x256xf32> to vector<16xf32>
    %66 = vector.shape_cast %65 : vector<16xf32> to vector<16x1xf32>
    %cst_30 = arith.constant 2.560000e+02 : f32
    %67 = vector.broadcast %cst_30 : f32 to vector<16x1xf32>
    %68 = arith.divf %66, %67 : vector<16x1xf32>
    %cst_31 = arith.constant 9.99999974E-6 : f32
    %69 = vector.broadcast %cst_31 : f32 to vector<16x1xf32>
    %70 = arith.addf %68, %69 : vector<16x1xf32>
    %71 = math.rsqrt %70 : vector<16x1xf32>
    %72 = vector.broadcast %71 : vector<16x1xf32> to vector<16x256xf32>
    %73 = arith.mulf %63, %72 : vector<16x256xf32>
    %cst_32 = arith.constant 0.000000e+00 : f32
    %74 = vector.broadcast %cst_32 : f32 to vector<16x256xf32>
    %75 = arith.maximumf %73, %74 : vector<16x256xf32>
    %76 = arith.truncf %75 : vector<16x256xf32> to vector<16x256xbf16>
    %c0_33 = arith.constant 0 : index
    %c0_34 = arith.constant 0 : index
    %77 = vector.load %arg7[%c0_33, %c0_34] : memref<256x128xbf16, #tpu.memory_space<vmem>>, vector<256x128xbf16>
    %cst_35 = arith.constant dense<0.000000e+00> : vector<16x128xf32>
    %78 = tpu.matmul %76, %77, %cst_35 {dimension_numbers = #tpu.dot_dimension_numbers<[1], [0], [0], [1], [0, 0, 1, 1], [], []>} : vector<16x256xbf16>, vector<256x128xbf16>, vector<16x128xf32> -> vector<16x128xf32>
    %c0_36 = arith.constant 0 : index
    %c0_37 = arith.constant 0 : index
    %79 = vector.load %arg8[%c0_36, %c0_37] : memref<1x128xf32, #tpu.memory_space<vmem>>, vector<1x128xf32>
    %80 = vector.broadcast %79 : vector<1x128xf32> to vector<16x128xf32>
    %81 = arith.addf %78, %80 : vector<16x128xf32>
    %cst_38 = arith.constant dense<0.000000e+00> : vector<16xf32>
    %82 = vector.multi_reduction <add>, %81, %cst_38 [1] : vector<16x128xf32> to vector<16xf32>
    %83 = vector.shape_cast %82 : vector<16xf32> to vector<16x1xf32>
    %cst_39 = arith.constant 1.280000e+02 : f32
    %84 = vector.broadcast %cst_39 : f32 to vector<16x1xf32>
    %85 = arith.divf %83, %84 : vector<16x1xf32>
    %86 = vector.broadcast %85 : vector<16x1xf32> to vector<16x128xf32>
    %87 = arith.subf %81, %86 : vector<16x128xf32>
    %88 = arith.mulf %87, %87 : vector<16x128xf32>
    %cst_40 = arith.constant dense<0.000000e+00> : vector<16xf32>
    %89 = vector.multi_reduction <add>, %88, %cst_40 [1] : vector<16x128xf32> to vector<16xf32>
    %90 = vector.shape_cast %89 : vector<16xf32> to vector<16x1xf32>
    %cst_41 = arith.constant 1.280000e+02 : f32
    %91 = vector.broadcast %cst_41 : f32 to vector<16x1xf32>
    %92 = arith.divf %90, %91 : vector<16x1xf32>
    %cst_42 = arith.constant 9.99999974E-6 : f32
    %93 = vector.broadcast %cst_42 : f32 to vector<16x1xf32>
    %94 = arith.addf %92, %93 : vector<16x1xf32>
    %95 = math.rsqrt %94 : vector<16x1xf32>
    %96 = vector.broadcast %95 : vector<16x1xf32> to vector<16x128xf32>
    %97 = arith.mulf %87, %96 : vector<16x128xf32>
    %cst_43 = arith.constant 0.000000e+00 : f32
    %98 = vector.broadcast %cst_43 : f32 to vector<16x128xf32>
    %99 = arith.maximumf %97, %98 : vector<16x128xf32>
    %100 = arith.truncf %99 : vector<16x128xf32> to vector<16x128xbf16>
    %c0_44 = arith.constant 0 : index
    %c0_45 = arith.constant 0 : index
    %101 = vector.load %arg9[%c0_44, %c0_45] : memref<128x128xbf16, #tpu.memory_space<vmem>>, vector<128x128xbf16>
    %cst_46 = arith.constant dense<0.000000e+00> : vector<16x128xf32>
    %102 = tpu.matmul %100, %101, %cst_46 {dimension_numbers = #tpu.dot_dimension_numbers<[1], [0], [0], [1], [0, 0, 1, 1], [], []>} : vector<16x128xbf16>, vector<128x128xbf16>, vector<16x128xf32> -> vector<16x128xf32>
    %c0_47 = arith.constant 0 : index
    %c0_48 = arith.constant 0 : index
    %103 = vector.load %arg10[%c0_47, %c0_48] : memref<1x128xf32, #tpu.memory_space<vmem>>, vector<1x128xf32>
    %104 = vector.broadcast %103 : vector<1x128xf32> to vector<16x128xf32>
    %105 = arith.addf %102, %104 : vector<16x128xf32>
    %106 = arith.negf %105 : vector<16x128xf32>
    %107 = math.exp %106 : vector<16x128xf32>
    %cst_49 = arith.constant 1.000000e+00 : f32
    %108 = vector.broadcast %cst_49 : f32 to vector<16x128xf32>
    %109 = arith.addf %108, %107 : vector<16x128xf32>
    %110 = arith.divf %108, %109 : vector<16x128xf32>
    %c0_50 = arith.constant 0 : index
    %c0_51 = arith.constant 0 : index
    %111 = vector.load %arg11[%c0_50, %c0_51] : memref<16x128xf32, #tpu.memory_space<vmem>>, vector<16x128xf32>
    tpu.vector_store %arg11[%c0_50, %c0_51], %110 {strides = array<i32>} : memref<16x128xf32, #tpu.memory_space<vmem>>, vector<16x128xf32>,
    return
  }
  func.func @transform_0(%arg0: i32) -> (i32, i32) {
    %c0_i32 = arith.constant 0 : i32
    %c0_i32_0 = arith.constant 0 : i32
    return %arg0, %c0_i32 : i32, i32
  }
  func.func @transform_1(%arg0: i32) -> (i32, i32) {
    %c0_i32 = arith.constant 0 : i32
    %c0_i32_0 = arith.constant 0 : i32
    %c0_i32_1 = arith.constant 0 : i32
    return %c0_i32, %c0_i32_0 : i32, i32
  }
  func.func @transform_2(%arg0: i32) -> (i32, i32) {
    %c0_i32 = arith.constant 0 : i32
    %c0_i32_0 = arith.constant 0 : i32
    %c0_i32_1 = arith.constant 0 : i32
    return %c0_i32, %c0_i32_0 : i32, i32
  }
  func.func @transform_3(%arg0: i32) -> (i32, i32) {
    %c0_i32 = arith.constant 0 : i32
    %c0_i32_0 = arith.constant 0 : i32
    %c0_i32_1 = arith.constant 0 : i32
    return %c0_i32, %c0_i32_0 : i32, i32
  }
  func.func @transform_4(%arg0: i32) -> (i32, i32) {
    %c0_i32 = arith.constant 0 : i32
    %c0_i32_0 = arith.constant 0 : i32
    %c0_i32_1 = arith.constant 0 : i32
    return %c0_i32, %c0_i32_0 : i32, i32
  }
  func.func @transform_5(%arg0: i32) -> (i32, i32) {
    %c0_i32 = arith.constant 0 : i32
    %c0_i32_0 = arith.constant 0 : i32
    %c0_i32_1 = arith.constant 0 : i32
    return %c0_i32, %c0_i32_0 : i32, i32
  }
  func.func @transform_6(%arg0: i32) -> (i32, i32) {
    %c0_i32 = arith.constant 0 : i32
    %c0_i32_0 = arith.constant 0 : i32
    %c0_i32_1 = arith.constant 0 : i32
    return %c0_i32, %c0_i32_0 : i32, i32
  }
  func.func @transform_7(%arg0: i32) -> (i32, i32) {
    %c0_i32 = arith.constant 0 : i32
    %c0_i32_0 = arith.constant 0 : i32
    %c0_i32_1 = arith.constant 0 : i32
    return %c0_i32, %c0_i32_0 : i32, i32
  }
  func.func @transform_8(%arg0: i32) -> (i32, i32) {
    %c0_i32 = arith.constant 0 : i32
    %c0_i32_0 = arith.constant 0 : i32
    %c0_i32_1 = arith.constant 0 : i32
    return %c0_i32, %c0_i32_0 : i32, i32
  }
  func.func @transform_9(%arg0: i32) -> (i32, i32) {
    %c0_i32 = arith.constant 0 : i32
    %c0_i32_0 = arith.constant 0 : i32
    %c0_i32_1 = arith.constant 0 : i32
    return %c0_i32, %c0_i32_0 : i32, i32
  }
  func.func @transform_10(%arg0: i32) -> (i32, i32) {
    %c0_i32 = arith.constant 0 : i32
    %c0_i32_0 = arith.constant 0 : i32
    return %arg0, %c0_i32 : i32, i32
  }
}

</mosaic_0001>

<llo_original>
// kernel: tpu_custom_call.1
$region0: #{tpu_custom_call.1}
  #allocation0 [shape = 'u32[]', space=smem, size = 0x4, offset = 0x4, fixed_abs, tag = 'smem constant byte address 0x4 - core index']
  #allocation1 [shape = 'u32[144,128]{1,0:T(1,128)}', space=vmem, size = 0x12000, scoped, tag = 'internal scratch']
  %s0 = inlined_call_operand.hbm [shape: f32[16,1024], index: 0, kind: input, shape index: {}]
  %s1 = inlined_call_operand.hbm [shape: bf16[1024,512], index: 1, kind: input, shape index: {}]
  %s2 = inlined_call_operand.vmem [shape: f32[1,512], index: 2, kind: input, shape index: {}]
  %s3 = inlined_call_operand.vmem [shape: f32[1,512], index: 3, kind: input, shape index: {}]
  %s4 = inlined_call_operand.hbm [shape: bf16[512,256], index: 4, kind: input, shape index: {}]
  %s5 = inlined_call_operand.vmem [shape: f32[1,256], index: 5, kind: input, shape index: {}]
  %s6 = inlined_call_operand.hbm [shape: bf16[256,128], index: 6, kind: input, shape index: {}]
  %s7 = inlined_call_operand.vmem [shape: f32[1,128], index: 7, kind: input, shape index: {}]
  %s8 = inlined_call_operand.hbm [shape: bf16[128,128], index: 8, kind: input, shape index: {}]
  %s9 = inlined_call_operand.vmem [shape: f32[1,128], index: 9, kind: input, shape index: {}]
  %s10 = inlined_call_operand.hbm [shape: f32[16,128], index: 10, kind: output, shape index: {}]
  %s11 = sld [smem:[#allocation0]]
  $region70: #{tpu_custom_call.1} parent=0
    _
  %s13 = ssub.s32 1, %s11
  %s14 = scalar_select 0, %s13, %s11
  $region1: #{tpu_custom_call.1} parent=0
    #allocation2 [shape = 'u8[65536]{0}', space=vmem, size = 0x10000, scoped, tag = 'input window, operand 0, single buffered']
    #allocation3 [shape = 's32[1]{0}', space=sflag, size = 0x4, scoped, tag = 'scoped memory for tpu_custom_call.1']
    #allocation4 [shape = 's32[1]{0}', space=sflag, size = 0x4, scoped, tag = 'scoped memory for tpu_custom_call.1']
    #allocation5 [shape = 'u8[1048576]{0}', space=vmem, size = 0x100000, scoped, tag = 'input window, operand 1, single buffered']
    #allocation6 [shape = 's32[1]{0}', space=sflag, size = 0x4, scoped, tag = 'scoped memory for tpu_custom_call.1']
    #allocation7 [shape = 'u8[262144]{0}', space=vmem, size = 0x40000, scoped, tag = 'input window, operand 4, single buffered']
    #allocation8 [shape = 'u8[65536]{0}', space=vmem, size = 0x10000, scoped, tag = 'input window, operand 6, single buffered']
    #allocation9 [shape = 's32[1]{0}', space=sflag, size = 0x4, scoped, tag = 'scoped memory for tpu_custom_call.1']
    #allocation10 [shape = 'u8[32768]{0}', space=vmem, size = 0x8000, scoped, tag = 'input window, operand 8, single buffered']
    #allocation11 [shape = 'u8[8192]{0}', space=vmem, size = 0x2000, scoped, tag = 'output window, operand 0, single buffered']
    %15 = vsyncpa [#allocation3], 0
    %16 = vsyncpa [#allocation6], 0
    %17 = vsyncpa [#allocation9], 0
    %18 = vsyncpa [#allocation4], 0
    // Predicated region
    $region2: #{tpu_custom_call.1} parent=1 // pred_check
      _
    $region3: #{tpu_custom_call.1} parent=1 // pred_check_branch
      %20 = sbr.rel (0) target = $region5
    $region4: #{tpu_custom_call.1} parent=1 // pred_region
      %s22 = ssub.s32 2048, 2048
      %23 = vsyncadd [#allocation3], %s22
      %s24 = sshll.u32 [#allocation2], 4
      %s25 = int_to_ptr.vmem [resolvable:$true] %s24
      %30 = dma.hbm_to_vmem [thread:$0]  %s0, 2048, %s25, [#allocation3], 1024, 1024, 64
    $region5: #{tpu_custom_call.1} parent=1 // pred_fallthru
      _
    // Predicated region
    $region6: #{tpu_custom_call.1} parent=1 // pred_check
      _
    $region7: #{tpu_custom_call.1} parent=1 // pred_check_branch
      %32 = sbr.rel (0) target = $region9
    $region8: #{tpu_custom_call.1} parent=1 // pred_region
      %s34 = ssub.s32 32768, 32768
      %35 = vsyncadd [#allocation6], %s34
      %s36 = sshll.u32 [#allocation5], 4
      %s37 = int_to_ptr.vmem [resolvable:$true] %s36
      %42 = dma.hbm_to_vmem [thread:$0]  %s1, 32768, %s37, [#allocation6], 256, 256, 16
    $region9: #{tpu_custom_call.1} parent=1 // pred_fallthru
      _
    // Predicated region
    $region10: #{tpu_custom_call.1} parent=1 // pred_check
      _
    $region11: #{tpu_custom_call.1} parent=1 // pred_check_branch
      %44 = sbr.rel (0) target = $region13
    $region12: #{tpu_custom_call.1} parent=1 // pred_region
      _
    $region13: #{tpu_custom_call.1} parent=1 // pred_fallthru
      _
    // Predicated region
    $region14: #{tpu_custom_call.1} parent=1 // pred_check
      _
    $region15: #{tpu_custom_call.1} parent=1 // pred_check_branch
      %46 = sbr.rel (0) target = $region17
    $region16: #{tpu_custom_call.1} parent=1 // pred_region
      _
    $region17: #{tpu_custom_call.1} parent=1 // pred_fallthru
      _
    // Predicated region
    $region18: #{tpu_custom_call.1} parent=1 // pred_check
      _
    $region19: #{tpu_custom_call.1} parent=1 // pred_check_branch
      %48 = sbr.rel (0) target = $region21
    $region20: #{tpu_custom_call.1} parent=1 // pred_region
      %s50 = ssub.s32 8192, 8192
      %51 = vsyncadd [#allocation6], %s50
      %s52 = sshll.u32 [#allocation7], 4
      %s53 = int_to_ptr.vmem [resolvable:$true] %s52
      %58 = dma.hbm_to_vmem [thread:$0]  %s4, 8192, %s53, [#allocation6], 128, 128, 8
    $region21: #{tpu_custom_call.1} parent=1 // pred_fallthru
      _
    // Predicated region
    $region22: #{tpu_custom_call.1} parent=1 // pred_check
      _
    $region23: #{tpu_custom_call.1} parent=1 // pred_check_branch
      %60 = sbr.rel (0) target = $region25
    $region24: #{tpu_custom_call.1} parent=1 // pred_region
      _
    $region25: #{tpu_custom_call.1} parent=1 // pred_fallthru
      _
    // Predicated region
    $region26: #{tpu_custom_call.1} parent=1 // pred_check
      _
    $region27: #{tpu_custom_call.1} parent=1 // pred_check_branch
      %62 = sbr.rel (0) target = $region29
    $region28: #{tpu_custom_call.1} parent=1 // pred_region
      %s64 = ssub.s32 2048, 2048
      %65 = vsyncadd [#allocation9], %s64
      %s66 = sshll.u32 [#allocation8], 4
      %s67 = int_to_ptr.vmem [resolvable:$true] %s66
      %72 = dma.hbm_to_vmem [thread:$0]  %s6, 2048, %s67, [#allocation9], 64, 64, 4
    $region29: #{tpu_custom_call.1} parent=1 // pred_fallthru
      _
    // Predicated region
    $region30: #{tpu_custom_call.1} parent=1 // pred_check
      _
    $region31: #{tpu_custom_call.1} parent=1 // pred_check_branch
      %74 = sbr.rel (0) target = $region33
    $region32: #{tpu_custom_call.1} parent=1 // pred_region
      _
    $region33: #{tpu_custom_call.1} parent=1 // pred_fallthru
      _
    // Predicated region
    $region34: #{tpu_custom_call.1} parent=1 // pred_check
      _
    $region35: #{tpu_custom_call.1} parent=1 // pred_check_branch
      %76 = sbr.rel (0) target = $region37
    $region36: #{tpu_custom_call.1} parent=1 // pred_region
      %s78 = ssub.s32 1024, 1024
      %79 = vsyncadd [#allocation9], %s78
      %s80 = sshll.u32 [#allocation10], 4
      %s81 = int_to_ptr.vmem [resolvable:$true] %s80
      %86 = dma.hbm_to_vmem [thread:$0]  %s8, 1024, %s81, [#allocation9], 64, 64, 4
    $region37: #{tpu_custom_call.1} parent=1 // pred_fallthru
      _
    // Predicated region
    $region38: #{tpu_custom_call.1} parent=1 // pred_check
      _
    $region39: #{tpu_custom_call.1} parent=1 // pred_check_branch
      %88 = sbr.rel (0) target = $region41
    $region40: #{tpu_custom_call.1} parent=1 // pred_region
      _
    $region41: #{tpu_custom_call.1} parent=1 // pred_fallthru
      _
    // Predicated region
    $region42: #{tpu_custom_call.1} parent=1 // pred_check
      _
    $region43: #{tpu_custom_call.1} parent=1 // pred_check_branch
      %90 = sbr.rel (0) target = $region45
    $region44: #{tpu_custom_call.1} parent=1 // pred_region
      %91 = dma.done [#allocation3], 2048
    $region45: #{tpu_custom_call.1} parent=1 // pred_fallthru
      _
    // Predicated region
    $region46: #{tpu_custom_call.1} parent=1 // pred_check
      _
    $region47: #{tpu_custom_call.1} parent=1 // pred_check_branch
      %93 = sbr.rel (0) target = $region49
    $region48: #{tpu_custom_call.1} parent=1 // pred_region
      %94 = dma.done [#allocation6], 32768
    $region49: #{tpu_custom_call.1} parent=1 // pred_fallthru
      _
    // Predicated region
    $region50: #{tpu_custom_call.1} parent=1 // pred_check
      _
    $region51: #{tpu_custom_call.1} parent=1 // pred_check_branch
      %96 = sbr.rel (0) target = $region53
    $region52: #{tpu_custom_call.1} parent=1 // pred_region
      %97 = dma.done [#allocation6], 8192
    $region53: #{tpu_custom_call.1} parent=1 // pred_fallthru
      _
    // Predicated region
    $region54: #{tpu_custom_call.1} parent=1 // pred_check
      _
    $region55: #{tpu_custom_call.1} parent=1 // pred_check_branch
      %99 = sbr.rel (0) target = $region57
    $region56: #{tpu_custom_call.1} parent=1 // pred_region
      %100 = dma.done [#allocation9], 2048
    $region57: #{tpu_custom_call.1} parent=1 // pred_fallthru
      _
    // Predicated region
    $region58: #{tpu_custom_call.1} parent=1 // pred_check
      _
    $region59: #{tpu_custom_call.1} parent=1 // pred_check_branch
      %102 = sbr.rel (0) target = $region61
    $region60: #{tpu_custom_call.1} parent=1 // pred_region
      %103 = dma.done [#allocation9], 1024
    $region61: #{tpu_custom_call.1} parent=1 // pred_fallthru
      _
    %v105 = vld [vmem:[#allocation2] sm:$0xff]
    %v106 = vld [vmem:[#allocation2 + $0x8] sm:$0xff]
    %v107 = vld [vmem:[#allocation2 + $0x10] sm:$0xff]
    %v108 = vld [vmem:[#allocation2 + $0x18] sm:$0xff]
    %v109 = vld [vmem:[#allocation2 + $0x20] sm:$0xff]
    %v110 = vld [vmem:[#allocation2 + $0x28] sm:$0xff]
    %v111 = vld [vmem:[#allocation2 + $0x30] sm:$0xff]
    %v112 = vld [vmem:[#allocation2 + $0x38] sm:$0xff]
    %v113 = vld [vmem:[#allocation2 + $0x40] sm:$0xff]
    %v114 = vld [vmem:[#allocation2 + $0x48] sm:$0xff]
    %v115 = vld [vmem:[#allocation2 + $0x50] sm:$0xff]
    %v116 = vld [vmem:[#allocation2 + $0x58] sm:$0xff]
    %v117 = vld [vmem:[#allocation2 + $0x60] sm:$0xff]
    %v118 = vld [vmem:[#allocation2 + $0x68] sm:$0xff]
    %v119 = vld [vmem:[#allocation2 + $0x70] sm:$0xff]
    %v120 = vld [vmem:[#allocation2 + $0x78] sm:$0xff]
    %v121 = vadd.f32 %v105, %v106
    %v122 = vadd.f32 %v121, %v107
    %v123 = vadd.f32 %v122, %v108
    %v124 = vadd.f32 %v123, %v109
    %v125 = vadd.f32 %v124, %v110
    %v126 = vadd.f32 %v125, %v111
    %v127 = vadd.f32 %v126, %v112
    %128 = vadd.xlane.f32.xlu0 %v127
    %v129 = vpop.xlane.xlu0 %128
    %v130 = vadd.f32 %v113, %v114
    %v131 = vadd.f32 %v130, %v115
    %v132 = vadd.f32 %v131, %v116
    %v133 = vadd.f32 %v132, %v117
    %v134 = vadd.f32 %v133, %v118
    %v135 = vadd.f32 %v134, %v119
    %v136 = vadd.f32 %v135, %v120
    %137 = vadd.xlane.f32.xlu0 %v136
    %v138 = vpop.xlane.xlu0 %137
    %v139 = vmul.f32 %v105, %v105
    %v140 = vmul.f32 %v106, %v106
    %v141 = vmul.f32 %v107, %v107
    %v142 = vmul.f32 %v108, %v108
    %v143 = vmul.f32 %v109, %v109
    %v144 = vmul.f32 %v110, %v110
    %v145 = vmul.f32 %v111, %v111
    %v146 = vmul.f32 %v112, %v112
    %v147 = vmul.f32 %v113, %v113
    %v148 = vmul.f32 %v114, %v114
    %v149 = vmul.f32 %v115, %v115
    %v150 = vmul.f32 %v116, %v116
    %v151 = vmul.f32 %v117, %v117
    %v152 = vmul.f32 %v118, %v118
    %v153 = vmul.f32 %v119, %v119
    %v154 = vmul.f32 %v120, %v120
    %v155 = vadd.f32 %v139, %v140
    %v156 = vadd.f32 %v155, %v141
    %v157 = vadd.f32 %v156, %v142
    %v158 = vadd.f32 %v157, %v143
    %v159 = vadd.f32 %v158, %v144
    %v160 = vadd.f32 %v159, %v145
    %v161 = vadd.f32 %v160, %v146
    %162 = vadd.xlane.f32.xlu0 %v161
    %v163 = vpop.xlane.xlu0 %162
    %v164 = vadd.f32 %v147, %v148
    %v165 = vadd.f32 %v164, %v149
    %v166 = vadd.f32 %v165, %v150
    %v167 = vadd.f32 %v166, %v151
    %v168 = vadd.f32 %v167, %v152
    %v169 = vadd.f32 %v168, %v153
    %v170 = vadd.f32 %v169, %v154
    %171 = vadd.xlane.f32.xlu0 %v170
    %v172 = vpop.xlane.xlu0 %171
    %v173 = vmul.f32 %v129, 0.0009765625
    %v174 = vmul.f32 %v138, 0.0009765625
    %v175 = vmul.f32 %v173, 1024.0
    %v176 = vmul.f32 %v174, 1024.0
    %v177 = vmul.f32 %v175, %v173
    %v178 = vmul.f32 %v176, %v174
    %v179 = vsub.f32 %v163, %v177
    %v180 = vsub.f32 %v172, %v178
    %v181 = vmul.f32 %v179, 0.0009775171
    %v182 = vmul.f32 %v180, 0.0009775171
    %v183 = vmax.f32 %v181, 0.0
    %v184 = vmax.f32 %v182, 0.0
    %v185 = vrsqrt.pop %v183
    %v186 = vmul.f32 %v183, %v185
    %vm187 = vcmp.eq.f32.partialorder %v183, inf
    %v188 = vsel %vm187, %v183, %v186
    %vm189 = vcmp.eq.f32.partialorder %v183, 0.0
    %v190 = vand.u32 %v183, 2147483648
    %v191 = vsel %vm189, %v190, %v188
    %v192 = vrsqrt.pop %v184
    %v193 = vmul.f32 %v184, %v192
    %vm194 = vcmp.eq.f32.partialorder %v184, inf
    %v195 = vsel %vm194, %v184, %v193
    %vm196 = vcmp.eq.f32.partialorder %v184, 0.0
    %v197 = vand.u32 %v184, 2147483648
    %v198 = vsel %vm196, %v197, %v195
    %v199 = vadd.f32 %v191, 1e-08
    %v200 = vadd.f32 %v198, 1e-08
    %v201 = vrcp.pop %v199
    %v202 = vrcp.pop %v200
    %v203 = vpack.c.bf16 %v113, %v105
    %v204 = vpack.c.bf16 %v114, %v106
    %v205 = vpack.c.bf16 %v115, %v107
    %v206 = vpack.c.bf16 %v116, %v108
    %v207 = vpack.c.bf16 %v117, %v109
    %v208 = vpack.c.bf16 %v118, %v110
    %v209 = vpack.c.bf16 %v119, %v111
    %v210 = vpack.c.bf16 %v120, %v112
    %v211 = vld [vmem:[#allocation5] sm:$0xff]
    %v212 = vld [vmem:[#allocation5 + $0x8] sm:$0xff]
    %v213 = vld [vmem:[#allocation5 + $0x10] sm:$0xff]
    %v214 = vld [vmem:[#allocation5 + $0x18] sm:$0xff]
    %v215 = vld [vmem:[#allocation5 + $0x20] sm:$0xff]
    %v216 = vld [vmem:[#allocation5 + $0x28] sm:$0xff]
    %v217 = vld [vmem:[#allocation5 + $0x30] sm:$0xff]
    %v218 = vld [vmem:[#allocation5 + $0x38] sm:$0xff]
    %v219 = vld [vmem:[#allocation5 + $0x40] sm:$0xff]
    %v220 = vld [vmem:[#allocation5 + $0x48] sm:$0xff]
    %v221 = vld [vmem:[#allocation5 + $0x50] sm:$0xff]
    %v222 = vld [vmem:[#allocation5 + $0x58] sm:$0xff]
    %v223 = vld [vmem:[#allocation5 + $0x60] sm:$0xff]
    %v224 = vld [vmem:[#allocation5 + $0x68] sm:$0xff]
    %v225 = vld [vmem:[#allocation5 + $0x70] sm:$0xff]
    %v226 = vld [vmem:[#allocation5 + $0x78] sm:$0xff]
    %v227 = vld [vmem:[#allocation5 + $0x80] sm:$0xff]
    %v228 = vld [vmem:[#allocation5 + $0x88] sm:$0xff]
    %v229 = vld [vmem:[#allocation5 + $0x90] sm:$0xff]
    %v230 = vld [vmem:[#allocation5 + $0x98] sm:$0xff]
    %v231 = vld [vmem:[#allocation5 + $0xa0] sm:$0xff]
    %v232 = vld [vmem:[#allocation5 + $0xa8] sm:$0xff]
    %v233 = vld [vmem:[#allocation5 + $0xb0] sm:$0xff]
    %v234 = vld [vmem:[#allocation5 + $0xb8] sm:$0xff]
    %v235 = vld [vmem:[#allocation5 + $0xc0] sm:$0xff]
    %v236 = vld [vmem:[#allocation5 + $0xc8] sm:$0xff]
    %v237 = vld [vmem:[#allocation5 + $0xd0] sm:$0xff]
    %v238 = vld [vmem:[#allocation5 + $0xd8] sm:$0xff]
    %v239 = vld [vmem:[#allocation5 + $0xe0] sm:$0xff]
    %v240 = vld [vmem:[#allocation5 + $0xe8] sm:$0xff]
    %v241 = vld [vmem:[#allocation5 + $0xf0] sm:$0xff]
    %v242 = vld [vmem:[#allocation5 + $0xf8] sm:$0xff]
    %v243 = vld [vmem:[#allocation5 + $0x100] sm:$0xff]
    %v244 = vld [vmem:[#allocation5 + $0x108] sm:$0xff]
    %v245 = vld [vmem:[#allocation5 + $0x110] sm:$0xff]
    %v246 = vld [vmem:[#allocation5 + $0x118] sm:$0xff]
    %v247 = vld [vmem:[#allocation5 + $0x120] sm:$0xff]
    %v248 = vld [vmem:[#allocation5 + $0x128] sm:$0xff]
    %v249 = vld [vmem:[#allocation5 + $0x130] sm:$0xff]
    %v250 = vld [vmem:[#allocation5 + $0x138] sm:$0xff]
    %v251 = vld [vmem:[#allocation5 + $0x140] sm:$0xff]
    %v252 = vld [vmem:[#allocation5 + $0x148] sm:$0xff]
    %v253 = vld [vmem:[#allocation5 + $0x150] sm:$0xff]
    %v254 = vld [vmem:[#allocation5 + $0x158] sm:$0xff]
    %v255 = vld [vmem:[#allocation5 + $0x160] sm:$0xff]
    %v256 = vld [vmem:[#allocation5 + $0x168] sm:$0xff]
    %v257 = vld [vmem:[#allocation5 + $0x170] sm:$0xff]
    %v258 = vld [vmem:[#allocation5 + $0x178] sm:$0xff]
    %v259 = vld [vmem:[#allocation5 + $0x180] sm:$0xff]
    %v260 = vld [vmem:[#allocation5 + $0x188] sm:$0xff]
    %v261 = vld [vmem:[#allocation5 + $0x190] sm:$0xff]
    %v262 = vld [vmem:[#allocation5 + $0x198] sm:$0xff]
    %v263 = vld [vmem:[#allocation5 + $0x1a0] sm:$0xff]
    %v264 = vld [vmem:[#allocation5 + $0x1a8] sm:$0xff]
    %v265 = vld [vmem:[#allocation5 + $0x1b0] sm:$0xff]
    %v266 = vld [vmem:[#allocation5 + $0x1b8] sm:$0xff]
    %v267 = vld [vmem:[#allocation5 + $0x1c0] sm:$0xff]
    %v268 = vld [vmem:[#allocation5 + $0x1c8] sm:$0xff]
    %v269 = vld [vmem:[#allocation5 + $0x1d0] sm:$0xff]
    %v270 = vld [vmem:[#allocation5 + $0x1d8] sm:$0xff]
    %v271 = vld [vmem:[#allocation5 + $0x1e0] sm:$0xff]
    %v272 = vld [vmem:[#allocation5 + $0x1e8] sm:$0xff]
    %v273 = vld [vmem:[#allocation5 + $0x1f0] sm:$0xff]
    %v274 = vld [vmem:[#allocation5 + $0x1f8] sm:$0xff]
    %v275 = vld [vmem:[#allocation5 + $0x200] sm:$0xff]
    %v276 = vld [vmem:[#allocation5 + $0x208] sm:$0xff]
    %v277 = vld [vmem:[#allocation5 + $0x210] sm:$0xff]
    %v278 = vld [vmem:[#allocation5 + $0x218] sm:$0xff]
    %v279 = vld [vmem:[#allocation5 + $0x220] sm:$0xff]
    %v280 = vld [vmem:[#allocation5 + $0x228] sm:$0xff]
    %v281 = vld [vmem:[#allocation5 + $0x230] sm:$0xff]
    %v282 = vld [vmem:[#allocation5 + $0x238] sm:$0xff]
    %v283 = vld [vmem:[#allocation5 + $0x240] sm:$0xff]
    %v284 = vld [vmem:[#allocation5 + $0x248] sm:$0xff]
    %v285 = vld [vmem:[#allocation5 + $0x250] sm:$0xff]
    %v286 = vld [vmem:[#allocation5 + $0x258] sm:$0xff]
    %v287 = vld [vmem:[#allocation5 + $0x260] sm:$0xff]
    %v288 = vld [vmem:[#allocation5 + $0x268] sm:$0xff]
    %v289 = vld [vmem:[#allocation5 + $0x270] sm:$0xff]
    %v290 = vld [vmem:[#allocation5 + $0x278] sm:$0xff]
    %v291 = vld [vmem:[#allocation5 + $0x280] sm:$0xff]
    %v292 = vld [vmem:[#allocation5 + $0x288] sm:$0xff]
    %v293 = vld [vmem:[#allocation5 + $0x290] sm:$0xff]
    %v294 = vld [vmem:[#allocation5 + $0x298] sm:$0xff]
    %v295 = vld [vmem:[#allocation5 + $0x2a0] sm:$0xff]
    %v296 = vld [vmem:[#allocation5 + $0x2a8] sm:$0xff]
    %v297 = vld [vmem:[#allocation5 + $0x2b0] sm:$0xff]
    %v298 = vld [vmem:[#allocation5 + $0x2b8] sm:$0xff]
    %v299 = vld [vmem:[#allocation5 + $0x2c0] sm:$0xff]
    %v300 = vld [vmem:[#allocation5 + $0x2c8] sm:$0xff]
    %v301 = vld [vmem:[#allocation5 + $0x2d0] sm:$0xff]
    %v302 = vld [vmem:[#allocation5 + $0x2d8] sm:$0xff]
    %v303 = vld [vmem:[#allocation5 + $0x2e0] sm:$0xff]
    %v304 = vld [vmem:[#allocation5 + $0x2e8] sm:$0xff]
    %v305 = vld [vmem:[#allocation5 + $0x2f0] sm:$0xff]
    %v306 = vld [vmem:[#allocation5 + $0x2f8] sm:$0xff]
    %v307 = vld [vmem:[#allocation5 + $0x300] sm:$0xff]
    %v308 = vld [vmem:[#allocation5 + $0x308] sm:$0xff]
    %v309 = vld [vmem:[#allocation5 + $0x310] sm:$0xff]
    %v310 = vld [vmem:[#allocation5 + $0x318] sm:$0xff]
    %v311 = vld [vmem:[#allocation5 + $0x320] sm:$0xff]
    %v312 = vld [vmem:[#allocation5 + $0x328] sm:$0xff]
    %v313 = vld [vmem:[#allocation5 + $0x330] sm:$0xff]
    %v314 = vld [vmem:[#allocation5 + $0x338] sm:$0xff]
    %v315 = vld [vmem:[#allocation5 + $0x340] sm:$0xff]
    %v316 = vld [vmem:[#allocation5 + $0x348] sm:$0xff]
    %v317 = vld [vmem:[#allocation5 + $0x350] sm:$0xff]
    %v318 = vld [vmem:[#allocation5 + $0x358] sm:$0xff]
    %v319 = vld [vmem:[#allocation5 + $0x360] sm:$0xff]
    %v320 = vld [vmem:[#allocation5 + $0x368] sm:$0xff]
    %v321 = vld [vmem:[#allocation5 + $0x370] sm:$0xff]
    %v322 = vld [vmem:[#allocation5 + $0x378] sm:$0xff]
    %v323 = vld [vmem:[#allocation5 + $0x380] sm:$0xff]
    %v324 = vld [vmem:[#allocation5 + $0x388] sm:$0xff]
    %v325 = vld [vmem:[#allocation5 + $0x390] sm:$0xff]
    %v326 = vld [vmem:[#allocation5 + $0x398] sm:$0xff]
    %v327 = vld [vmem:[#allocation5 + $0x3a0] sm:$0xff]
    %v328 = vld [vmem:[#allocation5 + $0x3a8] sm:$0xff]
    %v329 = vld [vmem:[#allocation5 + $0x3b0] sm:$0xff]
    %v330 = vld [vmem:[#allocation5 + $0x3b8] sm:$0xff]
    %v331 = vld [vmem:[#allocation5 + $0x3c0] sm:$0xff]
    %v332 = vld [vmem:[#allocation5 + $0x3c8] sm:$0xff]
    %v333 = vld [vmem:[#allocation5 + $0x3d0] sm:$0xff]
    %v334 = vld [vmem:[#allocation5 + $0x3d8] sm:$0xff]
    %v335 = vld [vmem:[#allocation5 + $0x3e0] sm:$0xff]
    %v336 = vld [vmem:[#allocation5 + $0x3e8] sm:$0xff]
    %v337 = vld [vmem:[#allocation5 + $0x3f0] sm:$0xff]
    %v338 = vld [vmem:[#allocation5 + $0x3f8] sm:$0xff]
    %v339 = vld [vmem:[#allocation5 + $0x400] sm:$0xff]
    %v340 = vld [vmem:[#allocation5 + $0x408] sm:$0xff]
    %v341 = vld [vmem:[#allocation5 + $0x410] sm:$0xff]
    %v342 = vld [vmem:[#allocation5 + $0x418] sm:$0xff]
    %v343 = vld [vmem:[#allocation5 + $0x420] sm:$0xff]
    %v344 = vld [vmem:[#allocation5 + $0x428] sm:$0xff]
    %v345 = vld [vmem:[#allocation5 + $0x430] sm:$0xff]
    %v346 = vld [vmem:[#allocation5 + $0x438] sm:$0xff]
    %v347 = vld [vmem:[#allocation5 + $0x440] sm:$0xff]
    %v348 = vld [vmem:[#allocation5 + $0x448] sm:$0xff]
    %v349 = vld [vmem:[#allocation5 + $0x450] sm:$0xff]
    %v350 = vld [vmem:[#allocation5 + $0x458] sm:$0xff]
    %v351 = vld [vmem:[#allocation5 + $0x460] sm:$0xff]
    %v352 = vld [vmem:[#allocation5 + $0x468] sm:$0xff]
    %v353 = vld [vmem:[#allocation5 + $0x470] sm:$0xff]
    %v354 = vld [vmem:[#allocation5 + $0x478] sm:$0xff]
    %v355 = vld [vmem:[#allocation5 + $0x480] sm:$0xff]
    %v356 = vld [vmem:[#allocation5 + $0x488] sm:$0xff]
    %v357 = vld [vmem:[#allocation5 + $0x490] sm:$0xff]
    %v358 = vld [vmem:[#allocation5 + $0x498] sm:$0xff]
    %v359 = vld [vmem:[#allocation5 + $0x4a0] sm:$0xff]
    %v360 = vld [vmem:[#allocation5 + $0x4a8] sm:$0xff]
    %v361 = vld [vmem:[#allocation5 + $0x4b0] sm:$0xff]
    %v362 = vld [vmem:[#allocation5 + $0x4b8] sm:$0xff]
    %v363 = vld [vmem:[#allocation5 + $0x4c0] sm:$0xff]
    %v364 = vld [vmem:[#allocation5 + $0x4c8] sm:$0xff]
    %v365 = vld [vmem:[#allocation5 + $0x4d0] sm:$0xff]
    %v366 = vld [vmem:[#allocation5 + $0x4d8] sm:$0xff]
    %v367 = vld [vmem:[#allocation5 + $0x4e0] sm:$0xff]
    %v368 = vld [vmem:[#allocation5 + $0x4e8] sm:$0xff]
    %v369 = vld [vmem:[#allocation5 + $0x4f0] sm:$0xff]
    %v370 = vld [vmem:[#allocation5 + $0x4f8] sm:$0xff]
    %v371 = vld [vmem:[#allocation5 + $0x500] sm:$0xff]
    %v372 = vld [vmem:[#allocation5 + $0x508] sm:$0xff]
    %v373 = vld [vmem:[#allocation5 + $0x510] sm:$0xff]
    %v374 = vld [vmem:[#allocation5 + $0x518] sm:$0xff]
    %v375 = vld [vmem:[#allocation5 + $0x520] sm:$0xff]
    %v376 = vld [vmem:[#allocation5 + $0x528] sm:$0xff]
    %v377 = vld [vmem:[#allocation5 + $0x530] sm:$0xff]
    %v378 = vld [vmem:[#allocation5 + $0x538] sm:$0xff]
    %v379 = vld [vmem:[#allocation5 + $0x540] sm:$0xff]
    %v380 = vld [vmem:[#allocation5 + $0x548] sm:$0xff]
    %v381 = vld [vmem:[#allocation5 + $0x550] sm:$0xff]
    %v382 = vld [vmem:[#allocation5 + $0x558] sm:$0xff]
    %v383 = vld [vmem:[#allocation5 + $0x560] sm:$0xff]
    %v384 = vld [vmem:[#allocation5 + $0x568] sm:$0xff]
    %v385 = vld [vmem:[#allocation5 + $0x570] sm:$0xff]
    %v386 = vld [vmem:[#allocation5 + $0x578] sm:$0xff]
    %v387 = vld [vmem:[#allocation5 + $0x580] sm:$0xff]
    %v388 = vld [vmem:[#allocation5 + $0x588] sm:$0xff]
    %v389 = vld [vmem:[#allocation5 + $0x590] sm:$0xff]
    %v390 = vld [vmem:[#allocation5 + $0x598] sm:$0xff]
    %v391 = vld [vmem:[#allocation5 + $0x5a0] sm:$0xff]
    %v392 = vld [vmem:[#allocation5 + $0x5a8] sm:$0xff]
    %v393 = vld [vmem:[#allocation5 + $0x5b0] sm:$0xff]
    %v394 = vld [vmem:[#allocation5 + $0x5b8] sm:$0xff]
    %v395 = vld [vmem:[#allocation5 + $0x5c0] sm:$0xff]
    %v396 = vld [vmem:[#allocation5 + $0x5c8] sm:$0xff]
    %v397 = vld [vmem:[#allocation5 + $0x5d0] sm:$0xff]
    %v398 = vld [vmem:[#allocation5 + $0x5d8] sm:$0xff]
    %v399 = vld [vmem:[#allocation5 + $0x5e0] sm:$0xff]
    %v400 = vld [vmem:[#allocation5 + $0x5e8] sm:$0xff]
    %v401 = vld [vmem:[#allocation5 + $0x5f0] sm:$0xff]
    %v402 = vld [vmem:[#allocation5 + $0x5f8] sm:$0xff]
    %v403 = vld [vmem:[#allocation5 + $0x600] sm:$0xff]
    %v404 = vld [vmem:[#allocation5 + $0x608] sm:$0xff]
    %v405 = vld [vmem:[#allocation5 + $0x610] sm:$0xff]
    %v406 = vld [vmem:[#allocation5 + $0x618] sm:$0xff]
    %v407 = vld [vmem:[#allocation5 + $0x620] sm:$0xff]
    %v408 = vld [vmem:[#allocation5 + $0x628] sm:$0xff]
    %v409 = vld [vmem:[#allocation5 + $0x630] sm:$0xff]
    %v410 = vld [vmem:[#allocation5 + $0x638] sm:$0xff]
    %v411 = vld [vmem:[#allocation5 + $0x640] sm:$0xff]
    %v412 = vld [vmem:[#allocation5 + $0x648] sm:$0xff]
    %v413 = vld [vmem:[#allocation5 + $0x650] sm:$0xff]
    %v414 = vld [vmem:[#allocation5 + $0x658] sm:$0xff]
    %v415 = vld [vmem:[#allocation5 + $0x660] sm:$0xff]
    %v416 = vld [vmem:[#allocation5 + $0x668] sm:$0xff]
    %v417 = vld [vmem:[#allocation5 + $0x670] sm:$0xff]
    %v418 = vld [vmem:[#allocation5 + $0x678] sm:$0xff]
    %v419 = vld [vmem:[#allocation5 + $0x680] sm:$0xff]
    %v420 = vld [vmem:[#allocation5 + $0x688] sm:$0xff]
    %v421 = vld [vmem:[#allocation5 + $0x690] sm:$0xff]
    %v422 = vld [vmem:[#allocation5 + $0x698] sm:$0xff]
    %v423 = vld [vmem:[#allocation5 + $0x6a0] sm:$0xff]
    %v424 = vld [vmem:[#allocation5 + $0x6a8] sm:$0xff]
    %v425 = vld [vmem:[#allocation5 + $0x6b0] sm:$0xff]
    %v426 = vld [vmem:[#allocation5 + $0x6b8] sm:$0xff]
    %v427 = vld [vmem:[#allocation5 + $0x6c0] sm:$0xff]
    %v428 = vld [vmem:[#allocation5 + $0x6c8] sm:$0xff]
    %v429 = vld [vmem:[#allocation5 + $0x6d0] sm:$0xff]
    %v430 = vld [vmem:[#allocation5 + $0x6d8] sm:$0xff]
    %v431 = vld [vmem:[#allocation5 + $0x6e0] sm:$0xff]
    %v432 = vld [vmem:[#allocation5 + $0x6e8] sm:$0xff]
    %v433 = vld [vmem:[#allocation5 + $0x6f0] sm:$0xff]
    %v434 = vld [vmem:[#allocation5 + $0x6f8] sm:$0xff]
    %v435 = vld [vmem:[#allocation5 + $0x700] sm:$0xff]
    %v436 = vld [vmem:[#allocation5 + $0x708] sm:$0xff]
    %v437 = vld [vmem:[#allocation5 + $0x710] sm:$0xff]
    %v438 = vld [vmem:[#allocation5 + $0x718] sm:$0xff]
    %v439 = vld [vmem:[#allocation5 + $0x720] sm:$0xff]
    %v440 = vld [vmem:[#allocation5 + $0x728] sm:$0xff]
    %v441 = vld [vmem:[#allocation5 + $0x730] sm:$0xff]
    %v442 = vld [vmem:[#allocation5 + $0x738] sm:$0xff]
    %v443 = vld [vmem:[#allocation5 + $0x740] sm:$0xff]
    %v444 = vld [vmem:[#allocation5 + $0x748] sm:$0xff]
    %v445 = vld [vmem:[#allocation5 + $0x750] sm:$0xff]
    %v446 = vld [vmem:[#allocation5 + $0x758] sm:$0xff]
    %v447 = vld [vmem:[#allocation5 + $0x760] sm:$0xff]
    %v448 = vld [vmem:[#allocation5 + $0x768] sm:$0xff]
    %v449 = vld [vmem:[#allocation5 + $0x770] sm:$0xff]
    %v450 = vld [vmem:[#allocation5 + $0x778] sm:$0xff]
    %v451 = vld [vmem:[#allocation5 + $0x780] sm:$0xff]
    %v452 = vld [vmem:[#allocation5 + $0x788] sm:$0xff]
    %v453 = vld [vmem:[#allocation5 + $0x790] sm:$0xff]
    %v454 = vld [vmem:[#allocation5 + $0x798] sm:$0xff]
    %v455 = vld [vmem:[#allocation5 + $0x7a0] sm:$0xff]
    %v456 = vld [vmem:[#allocation5 + $0x7a8] sm:$0xff]
    %v457 = vld [vmem:[#allocation5 + $0x7b0] sm:$0xff]
    %v458 = vld [vmem:[#allocation5 + $0x7b8] sm:$0xff]
    %v459 = vld [vmem:[#allocation5 + $0x7c0] sm:$0xff]
    %v460 = vld [vmem:[#allocation5 + $0x7c8] sm:$0xff]
    %v461 = vld [vmem:[#allocation5 + $0x7d0] sm:$0xff]
    %v462 = vld [vmem:[#allocation5 + $0x7d8] sm:$0xff]
    %v463 = vld [vmem:[#allocation5 + $0x7e0] sm:$0xff]
    %v464 = vld [vmem:[#allocation5 + $0x7e8] sm:$0xff]
    %v465 = vld [vmem:[#allocation5 + $0x7f0] sm:$0xff]
    %v466 = vld [vmem:[#allocation5 + $0x7f8] sm:$0xff]
    %v723 = vunpack.c.l.b16 %v211
    %v724 = vunpack.c.h.b16 %v211
    %v725 = vunpack.c.l.b16 %v212
    %v726 = vunpack.c.h.b16 %v212
    %v727 = vunpack.c.l.b16 %v213
    %v728 = vunpack.c.h.b16 %v213
    %v729 = vunpack.c.l.b16 %v214
    %v730 = vunpack.c.h.b16 %v214
    %v731 = vunpack.c.l.b16 %v215
    %v732 = vunpack.c.h.b16 %v215
    %v733 = vunpack.c.l.b16 %v216
    %v734 = vunpack.c.h.b16 %v216
    %v735 = vunpack.c.l.b16 %v217
    %v736 = vunpack.c.h.b16 %v217
    %v737 = vunpack.c.l.b16 %v218
    %v738 = vunpack.c.h.b16 %v218
    %v739 = vunpack.c.l.b16 %v219
    %v740 = vunpack.c.h.b16 %v219
    %v741 = vunpack.c.l.b16 %v220
    %v742 = vunpack.c.h.b16 %v220
    %v743 = vunpack.c.l.b16 %v221
    %v744 = vunpack.c.h.b16 %v221
    %v745 = vunpack.c.l.b16 %v222
    %v746 = vunpack.c.h.b16 %v222
    %v747 = vunpack.c.l.b16 %v223
    %v748 = vunpack.c.h.b16 %v223
    %v749 = vunpack.c.l.b16 %v224
    %v750 = vunpack.c.h.b16 %v224
    %v751 = vunpack.c.l.b16 %v225
    %v752 = vunpack.c.h.b16 %v225
    %v753 = vunpack.c.l.b16 %v226
    %v754 = vunpack.c.h.b16 %v226
    %v755 = vunpack.c.l.b16 %v227
    %v756 = vunpack.c.h.b16 %v227
    %v757 = vunpack.c.l.b16 %v228
    %v758 = vunpack.c.h.b16 %v228
    %v759 = vunpack.c.l.b16 %v229
    %v760 = vunpack.c.h.b16 %v229
    %v761 = vunpack.c.l.b16 %v230
    %v762 = vunpack.c.h.b16 %v230
    %v763 = vunpack.c.l.b16 %v231
    %v764 = vunpack.c.h.b16 %v231
    %v765 = vunpack.c.l.b16 %v232
    %v766 = vunpack.c.h.b16 %v232
    %v767 = vunpack.c.l.b16 %v233
    %v768 = vunpack.c.h.b16 %v233
    %v769 = vunpack.c.l.b16 %v234
    %v770 = vunpack.c.h.b16 %v234
    %v771 = vunpack.c.l.b16 %v235
    %v772 = vunpack.c.h.b16 %v235
    %v773 = vunpack.c.l.b16 %v236
    %v774 = vunpack.c.h.b16 %v236
    %v775 = vunpack.c.l.b16 %v237
    %v776 = vunpack.c.h.b16 %v237
    %v777 = vunpack.c.l.b16 %v238
    %v778 = vunpack.c.h.b16 %v238
    %v779 = vunpack.c.l.b16 %v239
    %v780 = vunpack.c.h.b16 %v239
    %v781 = vunpack.c.l.b16 %v240
    %v782 = vunpack.c.h.b16 %v240
    %v783 = vunpack.c.l.b16 %v241
    %v784 = vunpack.c.h.b16 %v241
    %v785 = vunpack.c.l.b16 %v242
    %v786 = vunpack.c.h.b16 %v242
    %v787 = vunpack.c.l.b16 %v243
    %v788 = vunpack.c.h.b16 %v243
    %v789 = vunpack.c.l.b16 %v244
    %v790 = vunpack.c.h.b16 %v244
    %v791 = vunpack.c.l.b16 %v245
    %v792 = vunpack.c.h.b16 %v245
    %v793 = vunpack.c.l.b16 %v246
    %v794 = vunpack.c.h.b16 %v246
    %v795 = vunpack.c.l.b16 %v247
    %v796 = vunpack.c.h.b16 %v247
    %v797 = vunpack.c.l.b16 %v248
    %v798 = vunpack.c.h.b16 %v248
    %v799 = vunpack.c.l.b16 %v249
    %v800 = vunpack.c.h.b16 %v249
    %v801 = vunpack.c.l.b16 %v250
    %v802 = vunpack.c.h.b16 %v250
    %v803 = vunpack.c.l.b16 %v251
    %v804 = vunpack.c.h.b16 %v251
    %v805 = vunpack.c.l.b16 %v252
    %v806 = vunpack.c.h.b16 %v252
    %v807 = vunpack.c.l.b16 %v253
    %v808 = vunpack.c.h.b16 %v253
    %v809 = vunpack.c.l.b16 %v254
    %v810 = vunpack.c.h.b16 %v254
    %v811 = vunpack.c.l.b16 %v255
    %v812 = vunpack.c.h.b16 %v255
    %v813 = vunpack.c.l.b16 %v256
    %v814 = vunpack.c.h.b16 %v256
    %v815 = vunpack.c.l.b16 %v257
    %v816 = vunpack.c.h.b16 %v257
    %v817 = vunpack.c.l.b16 %v258
    %v818 = vunpack.c.h.b16 %v258
    %v819 = vunpack.c.l.b16 %v259
    %v820 = vunpack.c.h.b16 %v259
    %v821 = vunpack.c.l.b16 %v260
    %v822 = vunpack.c.h.b16 %v260
    %v823 = vunpack.c.l.b16 %v261
    %v824 = vunpack.c.h.b16 %v261
    %v825 = vunpack.c.l.b16 %v262
    %v826 = vunpack.c.h.b16 %v262
    %v827 = vunpack.c.l.b16 %v263
    %v828 = vunpack.c.h.b16 %v263
    %v829 = vunpack.c.l.b16 %v264
    %v830 = vunpack.c.h.b16 %v264
    %v831 = vunpack.c.l.b16 %v265
    %v832 = vunpack.c.h.b16 %v265
    %v833 = vunpack.c.l.b16 %v266
    %v834 = vunpack.c.h.b16 %v266
    %v835 = vunpack.c.l.b16 %v267
    %v836 = vunpack.c.h.b16 %v267
    %v837 = vunpack.c.l.b16 %v268
    %v838 = vunpack.c.h.b16 %v268
    %v839 = vunpack.c.l.b16 %v269
    %v840 = vunpack.c.h.b16 %v269
    %v841 = vunpack.c.l.b16 %v270
    %v842 = vunpack.c.h.b16 %v270
    %v843 = vunpack.c.l.b16 %v271
    %v844 = vunpack.c.h.b16 %v271
    %v845 = vunpack.c.l.b16 %v272
    %v846 = vunpack.c.h.b16 %v272
    %v847 = vunpack.c.l.b16 %v273
    %v848 = vunpack.c.h.b16 %v273
    %v849 = vunpack.c.l.b16 %v274
    %v850 = vunpack.c.h.b16 %v274
    %v851 = vunpack.c.l.b16 %v275
    %v852 = vunpack.c.h.b16 %v275
    %v853 = vunpack.c.l.b16 %v276
    %v854 = vunpack.c.h.b16 %v276
    %v855 = vunpack.c.l.b16 %v277
    %v856 = vunpack.c.h.b16 %v277
    %v857 = vunpack.c.l.b16 %v278
    %v858 = vunpack.c.h.b16 %v278
    %v859 = vunpack.c.l.b16 %v279
    %v860 = vunpack.c.h.b16 %v279
    %v861 = vunpack.c.l.b16 %v280
    %v862 = vunpack.c.h.b16 %v280
    %v863 = vunpack.c.l.b16 %v281
    %v864 = vunpack.c.h.b16 %v281
    %v865 = vunpack.c.l.b16 %v282
    %v866 = vunpack.c.h.b16 %v282
    %v867 = vunpack.c.l.b16 %v283
    %v868 = vunpack.c.h.b16 %v283
    %v869 = vunpack.c.l.b16 %v284
    %v870 = vunpack.c.h.b16 %v284
    %v871 = vunpack.c.l.b16 %v285
    %v872 = vunpack.c.h.b16 %v285
    %v873 = vunpack.c.l.b16 %v286
    %v874 = vunpack.c.h.b16 %v286
    %v875 = vunpack.c.l.b16 %v287
    %v876 = vunpack.c.h.b16 %v287
    %v877 = vunpack.c.l.b16 %v288
    %v878 = vunpack.c.h.b16 %v288
    %v879 = vunpack.c.l.b16 %v289
    %v880 = vunpack.c.h.b16 %v289
    %v881 = vunpack.c.l.b16 %v290
    %v882 = vunpack.c.h.b16 %v290
    %v883 = vunpack.c.l.b16 %v291
    %v884 = vunpack.c.h.b16 %v291
    %v885 = vunpack.c.l.b16 %v292
    %v886 = vunpack.c.h.b16 %v292
    %v887 = vunpack.c.l.b16 %v293
    %v888 = vunpack.c.h.b16 %v293
    %v889 = vunpack.c.l.b16 %v294
    %v890 = vunpack.c.h.b16 %v294
    %v891 = vunpack.c.l.b16 %v295
    %v892 = vunpack.c.h.b16 %v295
    %v893 = vunpack.c.l.b16 %v296
    %v894 = vunpack.c.h.b16 %v296
    %v895 = vunpack.c.l.b16 %v297
    %v896 = vunpack.c.h.b16 %v297
    %v897 = vunpack.c.l.b16 %v298
    %v898 = vunpack.c.h.b16 %v298
    %v899 = vunpack.c.l.b16 %v299
    %v900 = vunpack.c.h.b16 %v299
    %v901 = vunpack.c.l.b16 %v300
    %v902 = vunpack.c.h.b16 %v300
    %v903 = vunpack.c.l.b16 %v301
    %v904 = vunpack.c.h.b16 %v301
    %v905 = vunpack.c.l.b16 %v302
    %v906 = vunpack.c.h.b16 %v302
    %v907 = vunpack.c.l.b16 %v303
    %v908 = vunpack.c.h.b16 %v303
    %v909 = vunpack.c.l.b16 %v304
    %v910 = vunpack.c.h.b16 %v304
    %v911 = vunpack.c.l.b16 %v305
    %v912 = vunpack.c.h.b16 %v305
    %v913 = vunpack.c.l.b16 %v306
    %v914 = vunpack.c.h.b16 %v306
    %v915 = vunpack.c.l.b16 %v307
    %v916 = vunpack.c.h.b16 %v307
    %v917 = vunpack.c.l.b16 %v308
    %v918 = vunpack.c.h.b16 %v308
    %v919 = vunpack.c.l.b16 %v309
    %v920 = vunpack.c.h.b16 %v309
    %v921 = vunpack.c.l.b16 %v310
    %v922 = vunpack.c.h.b16 %v310
    %v923 = vunpack.c.l.b16 %v311
    %v924 = vunpack.c.h.b16 %v311
    %v925 = vunpack.c.l.b16 %v312
    %v926 = vunpack.c.h.b16 %v312
    %v927 = vunpack.c.l.b16 %v313
    %v928 = vunpack.c.h.b16 %v313
    %v929 = vunpack.c.l.b16 %v314
    %v930 = vunpack.c.h.b16 %v314
    %v931 = vunpack.c.l.b16 %v315
    %v932 = vunpack.c.h.b16 %v315
    %v933 = vunpack.c.l.b16 %v316
    %v934 = vunpack.c.h.b16 %v316
    %v935 = vunpack.c.l.b16 %v317
    %v936 = vunpack.c.h.b16 %v317
    %v937 = vunpack.c.l.b16 %v318
    %v938 = vunpack.c.h.b16 %v318
    %v939 = vunpack.c.l.b16 %v319
    %v940 = vunpack.c.h.b16 %v319
    %v941 = vunpack.c.l.b16 %v320
    %v942 = vunpack.c.h.b16 %v320
    %v943 = vunpack.c.l.b16 %v321
    %v944 = vunpack.c.h.b16 %v321
    %v945 = vunpack.c.l.b16 %v322
    %v946 = vunpack.c.h.b16 %v322
    %v947 = vunpack.c.l.b16 %v323
    %v948 = vunpack.c.h.b16 %v323
    %v949 = vunpack.c.l.b16 %v324
    %v950 = vunpack.c.h.b16 %v324
    %v951 = vunpack.c.l.b16 %v325
    %v952 = vunpack.c.h.b16 %v325
    %v953 = vunpack.c.l.b16 %v326
    %v954 = vunpack.c.h.b16 %v326
    %v955 = vunpack.c.l.b16 %v327
    %v956 = vunpack.c.h.b16 %v327
    %v957 = vunpack.c.l.b16 %v328
    %v958 = vunpack.c.h.b16 %v328
    %v959 = vunpack.c.l.b16 %v329
    %v960 = vunpack.c.h.b16 %v329
    %v961 = vunpack.c.l.b16 %v330
    %v962 = vunpack.c.h.b16 %v330
    %v963 = vunpack.c.l.b16 %v331
    %v964 = vunpack.c.h.b16 %v331
    %v965 = vunpack.c.l.b16 %v332
    %v966 = vunpack.c.h.b16 %v332
    %v967 = vunpack.c.l.b16 %v333
    %v968 = vunpack.c.h.b16 %v333
    %v969 = vunpack.c.l.b16 %v334
    %v970 = vunpack.c.h.b16 %v334
    %v971 = vunpack.c.l.b16 %v335
    %v972 = vunpack.c.h.b16 %v335
    %v973 = vunpack.c.l.b16 %v336
    %v974 = vunpack.c.h.b16 %v336
    %v975 = vunpack.c.l.b16 %v337
    %v976 = vunpack.c.h.b16 %v337
    %v977 = vunpack.c.l.b16 %v338
    %v978 = vunpack.c.h.b16 %v338
    %v979 = vunpack.c.l.b16 %v339
    %v980 = vunpack.c.h.b16 %v339
    %v981 = vunpack.c.l.b16 %v340
    %v982 = vunpack.c.h.b16 %v340
    %v983 = vunpack.c.l.b16 %v341
    %v984 = vunpack.c.h.b16 %v341
    %v985 = vunpack.c.l.b16 %v342
    %v986 = vunpack.c.h.b16 %v342
    %v987 = vunpack.c.l.b16 %v343
    %v988 = vunpack.c.h.b16 %v343
    %v989 = vunpack.c.l.b16 %v344
    %v990 = vunpack.c.h.b16 %v344
    %v991 = vunpack.c.l.b16 %v345
    %v992 = vunpack.c.h.b16 %v345
    %v993 = vunpack.c.l.b16 %v346
    %v994 = vunpack.c.h.b16 %v346
    %v995 = vunpack.c.l.b16 %v347
    %v996 = vunpack.c.h.b16 %v347
    %v997 = vunpack.c.l.b16 %v348
    %v998 = vunpack.c.h.b16 %v348
    %v999 = vunpack.c.l.b16 %v349
    %v1000 = vunpack.c.h.b16 %v349
    %v1001 = vunpack.c.l.b16 %v350
    %v1002 = vunpack.c.h.b16 %v350
    %v1003 = vunpack.c.l.b16 %v351
    %v1004 = vunpack.c.h.b16 %v351
    %v1005 = vunpack.c.l.b16 %v352
    %v1006 = vunpack.c.h.b16 %v352
    %v1007 = vunpack.c.l.b16 %v353
    %v1008 = vunpack.c.h.b16 %v353
    %v1009 = vunpack.c.l.b16 %v354
    %v1010 = vunpack.c.h.b16 %v354
    %v1011 = vunpack.c.l.b16 %v355
    %v1012 = vunpack.c.h.b16 %v355
    %v1013 = vunpack.c.l.b16 %v356
    %v1014 = vunpack.c.h.b16 %v356
    %v1015 = vunpack.c.l.b16 %v357
    %v1016 = vunpack.c.h.b16 %v357
    %v1017 = vunpack.c.l.b16 %v358
    %v1018 = vunpack.c.h.b16 %v358
    %v1019 = vunpack.c.l.b16 %v359
    %v1020 = vunpack.c.h.b16 %v359
    %v1021 = vunpack.c.l.b16 %v360
    %v1022 = vunpack.c.h.b16 %v360
    %v1023 = vunpack.c.l.b16 %v361
    %v1024 = vunpack.c.h.b16 %v361
    %v1025 = vunpack.c.l.b16 %v362
    %v1026 = vunpack.c.h.b16 %v362
    %v1027 = vunpack.c.l.b16 %v363
    %v1028 = vunpack.c.h.b16 %v363
    %v1029 = vunpack.c.l.b16 %v364
    %v1030 = vunpack.c.h.b16 %v364
    %v1031 = vunpack.c.l.b16 %v365
    %v1032 = vunpack.c.h.b16 %v365
    %v1033 = vunpack.c.l.b16 %v366
    %v1034 = vunpack.c.h.b16 %v366
    %v1035 = vunpack.c.l.b16 %v367
    %v1036 = vunpack.c.h.b16 %v367
    %v1037 = vunpack.c.l.b16 %v368
    %v1038 = vunpack.c.h.b16 %v368
    %v1039 = vunpack.c.l.b16 %v369
    %v1040 = vunpack.c.h.b16 %v369
    %v1041 = vunpack.c.l.b16 %v370
    %v1042 = vunpack.c.h.b16 %v370
    %v1043 = vunpack.c.l.b16 %v371
    %v1044 = vunpack.c.h.b16 %v371
    %v1045 = vunpack.c.l.b16 %v372
    %v1046 = vunpack.c.h.b16 %v372
    %v1047 = vunpack.c.l.b16 %v373
    %v1048 = vunpack.c.h.b16 %v373
    %v1049 = vunpack.c.l.b16 %v374
    %v1050 = vunpack.c.h.b16 %v374
    %v1051 = vunpack.c.l.b16 %v375
    %v1052 = vunpack.c.h.b16 %v375
    %v1053 = vunpack.c.l.b16 %v376
    %v1054 = vunpack.c.h.b16 %v376
    %v1055 = vunpack.c.l.b16 %v377
    %v1056 = vunpack.c.h.b16 %v377
    %v1057 = vunpack.c.l.b16 %v378
    %v1058 = vunpack.c.h.b16 %v378
    %v1059 = vunpack.c.l.b16 %v379
    %v1060 = vunpack.c.h.b16 %v379
    %v1061 = vunpack.c.l.b16 %v380
    %v1062 = vunpack.c.h.b16 %v380
    %v1063 = vunpack.c.l.b16 %v381
    %v1064 = vunpack.c.h.b16 %v381
    %v1065 = vunpack.c.l.b16 %v382
    %v1066 = vunpack.c.h.b16 %v382
    %v1067 = vunpack.c.l.b16 %v383
    %v1068 = vunpack.c.h.b16 %v383
    %v1069 = vunpack.c.l.b16 %v384
    %v1070 = vunpack.c.h.b16 %v384
    %v1071 = vunpack.c.l.b16 %v385
    %v1072 = vunpack.c.h.b16 %v385
    %v1073 = vunpack.c.l.b16 %v386
    %v1074 = vunpack.c.h.b16 %v386
    %v1075 = vunpack.c.l.b16 %v387
    %v1076 = vunpack.c.h.b16 %v387
    %v1077 = vunpack.c.l.b16 %v388
    %v1078 = vunpack.c.h.b16 %v388
    %v1079 = vunpack.c.l.b16 %v389
    %v1080 = vunpack.c.h.b16 %v389
    %v1081 = vunpack.c.l.b16 %v390
    %v1082 = vunpack.c.h.b16 %v390
    %v1083 = vunpack.c.l.b16 %v391
    %v1084 = vunpack.c.h.b16 %v391
    %v1085 = vunpack.c.l.b16 %v392
    %v1086 = vunpack.c.h.b16 %v392
    %v1087 = vunpack.c.l.b16 %v393
    %v1088 = vunpack.c.h.b16 %v393
    %v1089 = vunpack.c.l.b16 %v394
    %v1090 = vunpack.c.h.b16 %v394
    %v1091 = vunpack.c.l.b16 %v395
    %v1092 = vunpack.c.h.b16 %v395
    %v1093 = vunpack.c.l.b16 %v396
    %v1094 = vunpack.c.h.b16 %v396
    %v1095 = vunpack.c.l.b16 %v397
    %v1096 = vunpack.c.h.b16 %v397
    %v1097 = vunpack.c.l.b16 %v398
    %v1098 = vunpack.c.h.b16 %v398
    %v1099 = vunpack.c.l.b16 %v399
    %v1100 = vunpack.c.h.b16 %v399
    %v1101 = vunpack.c.l.b16 %v400
    %v1102 = vunpack.c.h.b16 %v400
    %v1103 = vunpack.c.l.b16 %v401
    %v1104 = vunpack.c.h.b16 %v401
    %v1105 = vunpack.c.l.b16 %v402
    %v1106 = vunpack.c.h.b16 %v402
    %v1107 = vunpack.c.l.b16 %v403
    %v1108 = vunpack.c.h.b16 %v403
    %v1109 = vunpack.c.l.b16 %v404
    %v1110 = vunpack.c.h.b16 %v404
    %v1111 = vunpack.c.l.b16 %v405
    %v1112 = vunpack.c.h.b16 %v405
    %v1113 = vunpack.c.l.b16 %v406
    %v1114 = vunpack.c.h.b16 %v406
    %v1115 = vunpack.c.l.b16 %v407
    %v1116 = vunpack.c.h.b16 %v407
    %v1117 = vunpack.c.l.b16 %v408
    %v1118 = vunpack.c.h.b16 %v408
    %v1119 = vunpack.c.l.b16 %v409
    %v1120 = vunpack.c.h.b16 %v409
    %v1121 = vunpack.c.l.b16 %v410
    %v1122 = vunpack.c.h.b16 %v410
    %v1123 = vunpack.c.l.b16 %v411
    %v1124 = vunpack.c.h.b16 %v411
    %v1125 = vunpack.c.l.b16 %v412
    %v1126 = vunpack.c.h.b16 %v412
    %v1127 = vunpack.c.l.b16 %v413
    %v1128 = vunpack.c.h.b16 %v413
    %v1129 = vunpack.c.l.b16 %v414
    %v1130 = vunpack.c.h.b16 %v414
    %v1131 = vunpack.c.l.b16 %v415
    %v1132 = vunpack.c.h.b16 %v415
    %v1133 = vunpack.c.l.b16 %v416
    %v1134 = vunpack.c.h.b16 %v416
    %v1135 = vunpack.c.l.b16 %v417
    %v1136 = vunpack.c.h.b16 %v417
    %v1137 = vunpack.c.l.b16 %v418
    %v1138 = vunpack.c.h.b16 %v418
    %v1139 = vunpack.c.l.b16 %v419
    %v1140 = vunpack.c.h.b16 %v419
    %v1141 = vunpack.c.l.b16 %v420
    %v1142 = vunpack.c.h.b16 %v420
    %v1143 = vunpack.c.l.b16 %v421
    %v1144 = vunpack.c.h.b16 %v421
    %v1145 = vunpack.c.l.b16 %v422
    %v1146 = vunpack.c.h.b16 %v422
    %v1147 = vunpack.c.l.b16 %v423
    %v1148 = vunpack.c.h.b16 %v423
    %v1149 = vunpack.c.l.b16 %v424
    %v1150 = vunpack.c.h.b16 %v424
    %v1151 = vunpack.c.l.b16 %v425
    %v1152 = vunpack.c.h.b16 %v425
    %v1153 = vunpack.c.l.b16 %v426
    %v1154 = vunpack.c.h.b16 %v426
    %v1155 = vunpack.c.l.b16 %v427
    %v1156 = vunpack.c.h.b16 %v427
    %v1157 = vunpack.c.l.b16 %v428
    %v1158 = vunpack.c.h.b16 %v428
    %v1159 = vunpack.c.l.b16 %v429
    %v1160 = vunpack.c.h.b16 %v429
    %v1161 = vunpack.c.l.b16 %v430
    %v1162 = vunpack.c.h.b16 %v430
    %v1163 = vunpack.c.l.b16 %v431
    %v1164 = vunpack.c.h.b16 %v431
    %v1165 = vunpack.c.l.b16 %v432
    %v1166 = vunpack.c.h.b16 %v432
    %v1167 = vunpack.c.l.b16 %v433
    %v1168 = vunpack.c.h.b16 %v433
    %v1169 = vunpack.c.l.b16 %v434
    %v1170 = vunpack.c.h.b16 %v434
    %v1171 = vunpack.c.l.b16 %v435
    %v1172 = vunpack.c.h.b16 %v435
    %v1173 = vunpack.c.l.b16 %v436
    %v1174 = vunpack.c.h.b16 %v436
    %v1175 = vunpack.c.l.b16 %v437
    %v1176 = vunpack.c.h.b16 %v437
    %v1177 = vunpack.c.l.b16 %v438
    %v1178 = vunpack.c.h.b16 %v438
    %v1179 = vunpack.c.l.b16 %v439
    %v1180 = vunpack.c.h.b16 %v439
    %v1181 = vunpack.c.l.b16 %v440
    %v1182 = vunpack.c.h.b16 %v440
    %v1183 = vunpack.c.l.b16 %v441
    %v1184 = vunpack.c.h.b16 %v441
    %v1185 = vunpack.c.l.b16 %v442
    %v1186 = vunpack.c.h.b16 %v442
    %v1187 = vunpack.c.l.b16 %v443
    %v1188 = vunpack.c.h.b16 %v443
    %v1189 = vunpack.c.l.b16 %v444
    %v1190 = vunpack.c.h.b16 %v444
    %v1191 = vunpack.c.l.b16 %v445
    %v1192 = vunpack.c.h.b16 %v445
    %v1193 = vunpack.c.l.b16 %v446
    %v1194 = vunpack.c.h.b16 %v446
    %v1195 = vunpack.c.l.b16 %v447
    %v1196 = vunpack.c.h.b16 %v447
    %v1197 = vunpack.c.l.b16 %v448
    %v1198 = vunpack.c.h.b16 %v448
    %v1199 = vunpack.c.l.b16 %v449
    %v1200 = vunpack.c.h.b16 %v449
    %v1201 = vunpack.c.l.b16 %v450
    %v1202 = vunpack.c.h.b16 %v450
    %v1203 = vunpack.c.l.b16 %v451
    %v1204 = vunpack.c.h.b16 %v451
    %v1205 = vunpack.c.l.b16 %v452
    %v1206 = vunpack.c.h.b16 %v452
    %v1207 = vunpack.c.l.b16 %v453
    %v1208 = vunpack.c.h.b16 %v453
    %v1209 = vunpack.c.l.b16 %v454
    %v1210 = vunpack.c.h.b16 %v454
    %v1211 = vunpack.c.l.b16 %v455
    %v1212 = vunpack.c.h.b16 %v455
    %v1213 = vunpack.c.l.b16 %v456
    %v1214 = vunpack.c.h.b16 %v456
    %v1215 = vunpack.c.l.b16 %v457
    %v1216 = vunpack.c.h.b16 %v457
    %v1217 = vunpack.c.l.b16 %v458
    %v1218 = vunpack.c.h.b16 %v458
    %v1219 = vunpack.c.l.b16 %v459
    %v1220 = vunpack.c.h.b16 %v459
    %v1221 = vunpack.c.l.b16 %v460
    %v1222 = vunpack.c.h.b16 %v460
    %v1223 = vunpack.c.l.b16 %v461
    %v1224 = vunpack.c.h.b16 %v461
    %v1225 = vunpack.c.l.b16 %v462
    %v1226 = vunpack.c.h.b16 %v462
    %v1227 = vunpack.c.l.b16 %v463
    %v1228 = vunpack.c.h.b16 %v463
    %v1229 = vunpack.c.l.b16 %v464
    %v1230 = vunpack.c.h.b16 %v464
    %v1231 = vunpack.c.l.b16 %v465
    %v1232 = vunpack.c.h.b16 %v465
    %v1233 = vunpack.c.l.b16 %v466
    %v1234 = vunpack.c.h.b16 %v466
    %v1235 = vpack.c.b16 %v727, %v723
    %v1236 = vpack.c.b16 %v728, %v724
    %v1237 = vpack.c.b16 %v729, %v725
    %v1238 = vpack.c.b16 %v730, %v726
    %v1239 = vpack.c.b16 %v735, %v731
    %v1240 = vpack.c.b16 %v736, %v732
    %v1241 = vpack.c.b16 %v737, %v733
    %v1242 = vpack.c.b16 %v738, %v734
    %v1243 = vpack.c.b16 %v743, %v739
    %v1244 = vpack.c.b16 %v744, %v740
    %v1245 = vpack.c.b16 %v745, %v741
    %v1246 = vpack.c.b16 %v746, %v742
    %v1247 = vpack.c.b16 %v751, %v747
    %v1248 = vpack.c.b16 %v752, %v748
    %v1249 = vpack.c.b16 %v753, %v749
    %v1250 = vpack.c.b16 %v754, %v750
    %v1251 = vpack.c.b16 %v759, %v755
    %v1252 = vpack.c.b16 %v760, %v756
    %v1253 = vpack.c.b16 %v761, %v757
    %v1254 = vpack.c.b16 %v762, %v758
    %v1255 = vpack.c.b16 %v767, %v763
    %v1256 = vpack.c.b16 %v768, %v764
    %v1257 = vpack.c.b16 %v769, %v765
    %v1258 = vpack.c.b16 %v770, %v766
    %v1259 = vpack.c.b16 %v775, %v771
    %v1260 = vpack.c.b16 %v776, %v772
    %v1261 = vpack.c.b16 %v777, %v773
    %v1262 = vpack.c.b16 %v778, %v774
    %v1263 = vpack.c.b16 %v783, %v779
    %v1264 = vpack.c.b16 %v784, %v780
    %v1265 = vpack.c.b16 %v785, %v781
    %v1266 = vpack.c.b16 %v786, %v782
    %v1267 = vpack.c.b16 %v791, %v787
    %v1268 = vpack.c.b16 %v792, %v788
    %v1269 = vpack.c.b16 %v793, %v789
    %v1270 = vpack.c.b16 %v794, %v790
    %v1271 = vpack.c.b16 %v799, %v795
    %v1272 = vpack.c.b16 %v800, %v796
    %v1273 = vpack.c.b16 %v801, %v797
    %v1274 = vpack.c.b16 %v802, %v798
    %v1275 = vpack.c.b16 %v807, %v803
    %v1276 = vpack.c.b16 %v808, %v804
    %v1277 = vpack.c.b16 %v809, %v805
    %v1278 = vpack.c.b16 %v810, %v806
    %v1279 = vpack.c.b16 %v815, %v811
    %v1280 = vpack.c.b16 %v816, %v812
    %v1281 = vpack.c.b16 %v817, %v813
    %v1282 = vpack.c.b16 %v818, %v814
    %v1283 = vpack.c.b16 %v823, %v819
    %v1284 = vpack.c.b16 %v824, %v820
    %v1285 = vpack.c.b16 %v825, %v821
    %v1286 = vpack.c.b16 %v826, %v822
    %v1287 = vpack.c.b16 %v831, %v827
    %v1288 = vpack.c.b16 %v832, %v828
    %v1289 = vpack.c.b16 %v833, %v829
    %v1290 = vpack.c.b16 %v834, %v830
    %v1291 = vpack.c.b16 %v839, %v835
    %v1292 = vpack.c.b16 %v840, %v836
    %v1293 = vpack.c.b16 %v841, %v837
    %v1294 = vpack.c.b16 %v842, %v838
    %v1295 = vpack.c.b16 %v847, %v843
    %v1296 = vpack.c.b16 %v848, %v844
    %v1297 = vpack.c.b16 %v849, %v845
    %v1298 = vpack.c.b16 %v850, %v846
    %v1299 = vpack.c.b16 %v855, %v851
    %v1300 = vpack.c.b16 %v856, %v852
    %v1301 = vpack.c.b16 %v857, %v853
    %v1302 = vpack.c.b16 %v858, %v854
    %v1303 = vpack.c.b16 %v863, %v859
    %v1304 = vpack.c.b16 %v864, %v860
    %v1305 = vpack.c.b16 %v865, %v861
    %v1306 = vpack.c.b16 %v866, %v862
    %v1307 = vpack.c.b16 %v871, %v867
    %v1308 = vpack.c.b16 %v872, %v868
    %v1309 = vpack.c.b16 %v873, %v869
    %v1310 = vpack.c.b16 %v874, %v870
    %v1311 = vpack.c.b16 %v879, %v875
    %v1312 = vpack.c.b16 %v880, %v876
    %v1313 = vpack.c.b16 %v881, %v877
    %v1314 = vpack.c.b16 %v882, %v878
    %v1315 = vpack.c.b16 %v887, %v883
    %v1316 = vpack.c.b16 %v888, %v884
    %v1317 = vpack.c.b16 %v889, %v885
    %v1318 = vpack.c.b16 %v890, %v886
    %v1319 = vpack.c.b16 %v895, %v891
    %v1320 = vpack.c.b16 %v896, %v892
    %v1321 = vpack.c.b16 %v897, %v893
    %v1322 = vpack.c.b16 %v898, %v894
    %v1323 = vpack.c.b16 %v903, %v899
    %v1324 = vpack.c.b16 %v904, %v900
    %v1325 = vpack.c.b16 %v905, %v901
    %v1326 = vpack.c.b16 %v906, %v902
    %v1327 = vpack.c.b16 %v911, %v907
    %v1328 = vpack.c.b16 %v912, %v908
    %v1329 = vpack.c.b16 %v913, %v909
    %v1330 = vpack.c.b16 %v914, %v910
    %v1331 = vpack.c.b16 %v919, %v915
    %v1332 = vpack.c.b16 %v920, %v916
    %v1333 = vpack.c.b16 %v921, %v917
    %v1334 = vpack.c.b16 %v922, %v918
    %v1335 = vpack.c.b16 %v927, %v923
    %v1336 = vpack.c.b16 %v928, %v924
    %v1337 = vpack.c.b16 %v929, %v925
    %v1338 = vpack.c.b16 %v930, %v926
    %v1339 = vpack.c.b16 %v935, %v931
    %v1340 = vpack.c.b16 %v936, %v932
    %v1341 = vpack.c.b16 %v937, %v933
    %v1342 = vpack.c.b16 %v938, %v934
    %v1343 = vpack.c.b16 %v943, %v939
    %v1344 = vpack.c.b16 %v944, %v940
    %v1345 = vpack.c.b16 %v945, %v941
    %v1346 = vpack.c.b16 %v946, %v942
    %v1347 = vpack.c.b16 %v951, %v947
    %v1348 = vpack.c.b16 %v952, %v948
    %v1349 = vpack.c.b16 %v953, %v949
    %v1350 = vpack.c.b16 %v954, %v950
    %v1351 = vpack.c.b16 %v959, %v955
    %v1352 = vpack.c.b16 %v960, %v956
    %v1353 = vpack.c.b16 %v961, %v957
    %v1354 = vpack.c.b16 %v962, %v958
    %v1355 = vpack.c.b16 %v967, %v963
    %v1356 = vpack.c.b16 %v968, %v964
    %v1357 = vpack.c.b16 %v969, %v965
    %v1358 = vpack.c.b16 %v970, %v966
    %v1359 = vpack.c.b16 %v975, %v971
    %v1360 = vpack.c.b16 %v976, %v972
    %v1361 = vpack.c.b16 %v977, %v973
    %v1362 = vpack.c.b16 %v978, %v974
    %v1363 = vpack.c.b16 %v983, %v979
    %v1364 = vpack.c.b16 %v984, %v980
    %v1365 = vpack.c.b16 %v985, %v981
    %v1366 = vpack.c.b16 %v986, %v982
    %v1367 = vpack.c.b16 %v991, %v987
    %v1368 = vpack.c.b16 %v992, %v988
    %v1369 = vpack.c.b16 %v993, %v989
    %v1370 = vpack.c.b16 %v994, %v990
    %v1371 = vpack.c.b16 %v999, %v995
    %v1372 = vpack.c.b16 %v1000, %v996
    %v1373 = vpack.c.b16 %v1001, %v997
    %v1374 = vpack.c.b16 %v1002, %v998
    %v1375 = vpack.c.b16 %v1007, %v1003
    %v1376 = vpack.c.b16 %v1008, %v1004
    %v1377 = vpack.c.b16 %v1009, %v1005
    %v1378 = vpack.c.b16 %v1010, %v1006
    %v1379 = vpack.c.b16 %v1015, %v1011
    %v1380 = vpack.c.b16 %v1016, %v1012
    %v1381 = vpack.c.b16 %v1017, %v1013
    %v1382 = vpack.c.b16 %v1018, %v1014
    %v1383 = vpack.c.b16 %v1023, %v1019
    %v1384 = vpack.c.b16 %v1024, %v1020
    %v1385 = vpack.c.b16 %v1025, %v1021
    %v1386 = vpack.c.b16 %v1026, %v1022
    %v1387 = vpack.c.b16 %v1031, %v1027
    %v1388 = vpack.c.b16 %v1032, %v1028
    %v1389 = vpack.c.b16 %v1033, %v1029
    %v1390 = vpack.c.b16 %v1034, %v1030
    %v1391 = vpack.c.b16 %v1039, %v1035
    %v1392 = vpack.c.b16 %v1040, %v1036
    %v1393 = vpack.c.b16 %v1041, %v1037
    %v1394 = vpack.c.b16 %v1042, %v1038
    %v1395 = vpack.c.b16 %v1047, %v1043
    %v1396 = vpack.c.b16 %v1048, %v1044
    %v1397 = vpack.c.b16 %v1049, %v1045
    %v1398 = vpack.c.b16 %v1050, %v1046
    %v1399 = vpack.c.b16 %v1055, %v1051
    %v1400 = vpack.c.b16 %v1056, %v1052
    %v1401 = vpack.c.b16 %v1057, %v1053
    %v1402 = vpack.c.b16 %v1058, %v1054
    %v1403 = vpack.c.b16 %v1063, %v1059
    %v1404 = vpack.c.b16 %v1064, %v1060
    %v1405 = vpack.c.b16 %v1065, %v1061
    %v1406 = vpack.c.b16 %v1066, %v1062
    %v1407 = vpack.c.b16 %v1071, %v1067
    %v1408 = vpack.c.b16 %v1072, %v1068
    %v1409 = vpack.c.b16 %v1073, %v1069
    %v1410 = vpack.c.b16 %v1074, %v1070
    %v1411 = vpack.c.b16 %v1079, %v1075
    %v1412 = vpack.c.b16 %v1080, %v1076
    %v1413 = vpack.c.b16 %v1081, %v1077
    %v1414 = vpack.c.b16 %v1082, %v1078
    %v1415 = vpack.c.b16 %v1087, %v1083
    %v1416 = vpack.c.b16 %v1088, %v1084
    %v1417 = vpack.c.b16 %v1089, %v1085
    %v1418 = vpack.c.b16 %v1090, %v1086
    %v1419 = vpack.c.b16 %v1095, %v1091
    %v1420 = vpack.c.b16 %v1096, %v1092
    %v1421 = vpack.c.b16 %v1097, %v1093
    %v1422 = vpack.c.b16 %v1098, %v1094
    %v1423 = vpack.c.b16 %v1103, %v1099
    %v1424 = vpack.c.b16 %v1104, %v1100
    %v1425 = vpack.c.b16 %v1105, %v1101
    %v1426 = vpack.c.b16 %v1106, %v1102
    %v1427 = vpack.c.b16 %v1111, %v1107
    %v1428 = vpack.c.b16 %v1112, %v1108
    %v1429 = vpack.c.b16 %v1113, %v1109
    %v1430 = vpack.c.b16 %v1114, %v1110
    %v1431 = vpack.c.b16 %v1119, %v1115
    %v1432 = vpack.c.b16 %v1120, %v1116
    %v1433 = vpack.c.b16 %v1121, %v1117
    %v1434 = vpack.c.b16 %v1122, %v1118
    %v1435 = vpack.c.b16 %v1127, %v1123
    %v1436 = vpack.c.b16 %v1128, %v1124
    %v1437 = vpack.c.b16 %v1129, %v1125
    %v1438 = vpack.c.b16 %v1130, %v1126
    %v1439 = vpack.c.b16 %v1135, %v1131
    %v1440 = vpack.c.b16 %v1136, %v1132
    %v1441 = vpack.c.b16 %v1137, %v1133
    %v1442 = vpack.c.b16 %v1138, %v1134
    %v1443 = vpack.c.b16 %v1143, %v1139
    %v1444 = vpack.c.b16 %v1144, %v1140
    %v1445 = vpack.c.b16 %v1145, %v1141
    %v1446 = vpack.c.b16 %v1146, %v1142
    %v1447 = vpack.c.b16 %v1151, %v1147
    %v1448 = vpack.c.b16 %v1152, %v1148
    %v1449 = vpack.c.b16 %v1153, %v1149
    %v1450 = vpack.c.b16 %v1154, %v1150
    %v1451 = vpack.c.b16 %v1159, %v1155
    %v1452 = vpack.c.b16 %v1160, %v1156
    %v1453 = vpack.c.b16 %v1161, %v1157
    %v1454 = vpack.c.b16 %v1162, %v1158
    %v1455 = vpack.c.b16 %v1167, %v1163
    %v1456 = vpack.c.b16 %v1168, %v1164
    %v1457 = vpack.c.b16 %v1169, %v1165
    %v1458 = vpack.c.b16 %v1170, %v1166
    %v1459 = vpack.c.b16 %v1175, %v1171
    %v1460 = vpack.c.b16 %v1176, %v1172
    %v1461 = vpack.c.b16 %v1177, %v1173
    %v1462 = vpack.c.b16 %v1178, %v1174
    %v1463 = vpack.c.b16 %v1183, %v1179
    %v1464 = vpack.c.b16 %v1184, %v1180
    %v1465 = vpack.c.b16 %v1185, %v1181
    %v1466 = vpack.c.b16 %v1186, %v1182
    %v1467 = vpack.c.b16 %v1191, %v1187
    %v1468 = vpack.c.b16 %v1192, %v1188
    %v1469 = vpack.c.b16 %v1193, %v1189
    %v1470 = vpack.c.b16 %v1194, %v1190
    %v1471 = vpack.c.b16 %v1199, %v1195
    %v1472 = vpack.c.b16 %v1200, %v1196
    %v1473 = vpack.c.b16 %v1201, %v1197
    %v1474 = vpack.c.b16 %v1202, %v1198
    %v1475 = vpack.c.b16 %v1207, %v1203
    %v1476 = vpack.c.b16 %v1208, %v1204
    %v1477 = vpack.c.b16 %v1209, %v1205
    %v1478 = vpack.c.b16 %v1210, %v1206
    %v1479 = vpack.c.b16 %v1215, %v1211
    %v1480 = vpack.c.b16 %v1216, %v1212
    %v1481 = vpack.c.b16 %v1217, %v1213
    %v1482 = vpack.c.b16 %v1218, %v1214
    %v1483 = vpack.c.b16 %v1223, %v1219
    %v1484 = vpack.c.b16 %v1224, %v1220
    %v1485 = vpack.c.b16 %v1225, %v1221
    %v1486 = vpack.c.b16 %v1226, %v1222
    %v1487 = vpack.c.b16 %v1231, %v1227
    %v1488 = vpack.c.b16 %v1232, %v1228
    %v1489 = vpack.c.b16 %v1233, %v1229
    %v1490 = vpack.c.b16 %v1234, %v1230
    %1747 = vmatprep.subr.bf16.mxu0 %v1236
    %1748 = vmatpush1.bf16.msra.mxu0 %v1235
    %1749 = vmatprep.subr.bf16.mxu0 %v1240
    %1750 = vmatpush1.bf16.msra.mxu0 %v1239
    %1751 = vmatprep.subr.bf16.mxu0 %v1244
    %1752 = vmatpush1.bf16.msra.mxu0 %v1243
    %1753 = vmatprep.subr.bf16.mxu0 %v1248
    %1754 = vmatpush1.bf16.msra.mxu0 %v1247
    %1755 = vmatprep.subr.bf16.mxu0 %v1252
    %1756 = vmatpush1.bf16.msra.mxu0 %v1251
    %1757 = vmatprep.subr.bf16.mxu0 %v1256
    %1758 = vmatpush1.bf16.msra.mxu0 %v1255
    %1759 = vmatprep.subr.bf16.mxu0 %v1260
    %1760 = vmatpush1.bf16.msra.mxu0 %v1259
    %1761 = vmatprep.subr.bf16.mxu0 %v1264
    %1762 = vmatpush1.bf16.msra.mxu0 %v1263
    %1763 = vmatprep.subr.bf16.mxu0 %v1268
    %1764 = vmatpush1.bf16.msra.mxu0 %v1267
    %1765 = vmatprep.subr.bf16.mxu0 %v1272
    %1766 = vmatpush1.bf16.msra.mxu0 %v1271
    %1767 = vmatprep.subr.bf16.mxu0 %v1276
    %1768 = vmatpush1.bf16.msra.mxu0 %v1275
    %1769 = vmatprep.subr.bf16.mxu0 %v1280
    %1770 = vmatpush1.bf16.msra.mxu0 %v1279
    %1771 = vmatprep.subr.bf16.mxu0 %v1284
    %1772 = vmatpush1.bf16.msra.mxu0 %v1283
    %1773 = vmatprep.subr.bf16.mxu0 %v1288
    %1774 = vmatpush1.bf16.msra.mxu0 %v1287
    %1775 = vmatprep.subr.bf16.mxu0 %v1292
    %1776 = vmatpush1.bf16.msra.mxu0 %v1291
    %1777 = vmatprep.subr.bf16.mxu0 %v1296
    %1778 = vmatpush1.bf16.msra.mxu0 %v1295
    %1779 = vmatprep.mubr.bf16.mxu0 %v204
    %1780 = vmatmul.mubr.bf16.gmra.mrb[0].mxu0 %v203
    %v1781 = vpop.f32.mrb[0].mxu0
    %v1782 = vadd.f32 0.0, %v1781
    %v1783 = vpop.f32.mrb[0].mxu0
    %v1784 = vadd.f32 0.0, %v1783
    %v1785 = vpop.f32.mrb[0].mxu0
    %v1786 = vadd.f32 0.0, %v1785
    %v1787 = vpop.f32.mrb[0].mxu0
    %v1788 = vadd.f32 0.0, %v1787
    %1789 = vdwg.mxu0
    %1790 = vmatprep.subr.bf16.mxu0 %v1300
    %1791 = vmatpush1.bf16.msra.mxu0 %v1299
    %1792 = vmatprep.subr.bf16.mxu0 %v1304
    %1793 = vmatpush1.bf16.msra.mxu0 %v1303
    %1794 = vmatprep.subr.bf16.mxu0 %v1308
    %1795 = vmatpush1.bf16.msra.mxu0 %v1307
    %1796 = vmatprep.subr.bf16.mxu0 %v1312
    %1797 = vmatpush1.bf16.msra.mxu0 %v1311
    %1798 = vmatprep.subr.bf16.mxu0 %v1316
    %1799 = vmatpush1.bf16.msra.mxu0 %v1315
    %1800 = vmatprep.subr.bf16.mxu0 %v1320
    %1801 = vmatpush1.bf16.msra.mxu0 %v1319
    %1802 = vmatprep.subr.bf16.mxu0 %v1324
    %1803 = vmatpush1.bf16.msra.mxu0 %v1323
    %1804 = vmatprep.subr.bf16.mxu0 %v1328
    %1805 = vmatpush1.bf16.msra.mxu0 %v1327
    %1806 = vmatprep.subr.bf16.mxu0 %v1332
    %1807 = vmatpush1.bf16.msra.mxu0 %v1331
    %1808 = vmatprep.subr.bf16.mxu0 %v1336
    %1809 = vmatpush1.bf16.msra.mxu0 %v1335
    %1810 = vmatprep.subr.bf16.mxu0 %v1340
    %1811 = vmatpush1.bf16.msra.mxu0 %v1339
    %1812 = vmatprep.subr.bf16.mxu0 %v1344
    %1813 = vmatpush1.bf16.msra.mxu0 %v1343
    %1814 = vmatprep.subr.bf16.mxu0 %v1348
    %1815 = vmatpush1.bf16.msra.mxu0 %v1347
    %1816 = vmatprep.subr.bf16.mxu0 %v1352
    %1817 = vmatpush1.bf16.msra.mxu0 %v1351
    %1818 = vmatprep.subr.bf16.mxu0 %v1356
    %1819 = vmatpush1.bf16.msra.mxu0 %v1355
    %1820 = vmatprep.subr.bf16.mxu0 %v1360
    %1821 = vmatpush1.bf16.msra.mxu0 %v1359
    %1822 = vmatprep.mubr.bf16.mxu0 %v206
    %1823 = vmatmul.mubr.bf16.gmra.mrb[0].mxu0 %v205
    %v1824 = vpop.f32.mrb[0].mxu0
    %v1825 = vadd.f32 %v1782, %v1824
    %v1826 = vpop.f32.mrb[0].mxu0
    %v1827 = vadd.f32 %v1784, %v1826
    %v1828 = vpop.f32.mrb[0].mxu0
    %v1829 = vadd.f32 %v1786, %v1828
    %v1830 = vpop.f32.mrb[0].mxu0
    %v1831 = vadd.f32 %v1788, %v1830
    %1832 = vdwg.mxu0
    %1833 = vmatprep.subr.bf16.mxu0 %v1364
    %1834 = vmatpush1.bf16.msra.mxu0 %v1363
    %1835 = vmatprep.subr.bf16.mxu0 %v1368
    %1836 = vmatpush1.bf16.msra.mxu0 %v1367
    %1837 = vmatprep.subr.bf16.mxu0 %v1372
    %1838 = vmatpush1.bf16.msra.mxu0 %v1371
    %1839 = vmatprep.subr.bf16.mxu0 %v1376
    %1840 = vmatpush1.bf16.msra.mxu0 %v1375
    %1841 = vmatprep.subr.bf16.mxu0 %v1380
    %1842 = vmatpush1.bf16.msra.mxu0 %v1379
    %1843 = vmatprep.subr.bf16.mxu0 %v1384
    %1844 = vmatpush1.bf16.msra.mxu0 %v1383
    %1845 = vmatprep.subr.bf16.mxu0 %v1388
    %1846 = vmatpush1.bf16.msra.mxu0 %v1387
    %1847 = vmatprep.subr.bf16.mxu0 %v1392
    %1848 = vmatpush1.bf16.msra.mxu0 %v1391
    %1849 = vmatprep.subr.bf16.mxu0 %v1396
    %1850 = vmatpush1.bf16.msra.mxu0 %v1395
    %1851 = vmatprep.subr.bf16.mxu0 %v1400
    %1852 = vmatpush1.bf16.msra.mxu0 %v1399
    %1853 = vmatprep.subr.bf16.mxu0 %v1404
    %1854 = vmatpush1.bf16.msra.mxu0 %v1403
    %1855 = vmatprep.subr.bf16.mxu0 %v1408
    %1856 = vmatpush1.bf16.msra.mxu0 %v1407
    %1857 = vmatprep.subr.bf16.mxu0 %v1412
    %1858 = vmatpush1.bf16.msra.mxu0 %v1411
    %1859 = vmatprep.subr.bf16.mxu0 %v1416
    %1860 = vmatpush1.bf16.msra.mxu0 %v1415
    %1861 = vmatprep.subr.bf16.mxu0 %v1420
    %1862 = vmatpush1.bf16.msra.mxu0 %v1419
    %1863 = vmatprep.subr.bf16.mxu0 %v1424
    %1864 = vmatpush1.bf16.msra.mxu0 %v1423
    %1865 = vmatprep.mubr.bf16.mxu0 %v208
    %1866 = vmatmul.mubr.bf16.gmra.mrb[0].mxu0 %v207
    %v1867 = vpop.f32.mrb[0].mxu0
    %v1868 = vadd.f32 %v1825, %v1867
    %v1869 = vpop.f32.mrb[0].mxu0
    %v1870 = vadd.f32 %v1827, %v1869
    %v1871 = vpop.f32.mrb[0].mxu0
    %v1872 = vadd.f32 %v1829, %v1871
    %v1873 = vpop.f32.mrb[0].mxu0
    %v1874 = vadd.f32 %v1831, %v1873
    %1875 = vdwg.mxu0
    %1876 = vmatprep.subr.bf16.mxu0 %v1428
    %1877 = vmatpush1.bf16.msra.mxu0 %v1427
    %1878 = vmatprep.subr.bf16.mxu0 %v1432
    %1879 = vmatpush1.bf16.msra.mxu0 %v1431
    %1880 = vmatprep.subr.bf16.mxu0 %v1436
    %1881 = vmatpush1.bf16.msra.mxu0 %v1435
    %1882 = vmatprep.subr.bf16.mxu0 %v1440
    %1883 = vmatpush1.bf16.msra.mxu0 %v1439
    %1884 = vmatprep.subr.bf16.mxu0 %v1444
    %1885 = vmatpush1.bf16.msra.mxu0 %v1443
    %1886 = vmatprep.subr.bf16.mxu0 %v1448
    %1887 = vmatpush1.bf16.msra.mxu0 %v1447
    %1888 = vmatprep.subr.bf16.mxu0 %v1452
    %1889 = vmatpush1.bf16.msra.mxu0 %v1451
    %1890 = vmatprep.subr.bf16.mxu0 %v1456
    %1891 = vmatpush1.bf16.msra.mxu0 %v1455
    %1892 = vmatprep.subr.bf16.mxu0 %v1460
    %1893 = vmatpush1.bf16.msra.mxu0 %v1459
    %1894 = vmatprep.subr.bf16.mxu0 %v1464
    %1895 = vmatpush1.bf16.msra.mxu0 %v1463
    %1896 = vmatprep.subr.bf16.mxu0 %v1468
    %1897 = vmatpush1.bf16.msra.mxu0 %v1467
    %1898 = vmatprep.subr.bf16.mxu0 %v1472
    %1899 = vmatpush1.bf16.msra.mxu0 %v1471
    %1900 = vmatprep.subr.bf16.mxu0 %v1476
    %1901 = vmatpush1.bf16.msra.mxu0 %v1475
    %1902 = vmatprep.subr.bf16.mxu0 %v1480
    %1903 = vmatpush1.bf16.msra.mxu0 %v1479
    %1904 = vmatprep.subr.bf16.mxu0 %v1484
    %1905 = vmatpush1.bf16.msra.mxu0 %v1483
    %1906 = vmatprep.subr.bf16.mxu0 %v1488
    %1907 = vmatpush1.bf16.msra.mxu0 %v1487
    %1908 = vmatprep.mubr.bf16.mxu0 %v210
    %1909 = vmatmul.mubr.bf16.gmra.mrb[0].mxu0 %v209
    %v1910 = vpop.f32.mrb[0].mxu0
    %v1911 = vadd.f32 %v1868, %v1910
    %v1912 = vpop.f32.mrb[0].mxu0
    %v1913 = vadd.f32 %v1870, %v1912
    %v1914 = vpop.f32.mrb[0].mxu0
    %v1915 = vadd.f32 %v1872, %v1914
    %v1916 = vpop.f32.mrb[0].mxu0
    %v1917 = vadd.f32 %v1874, %v1916
    %1918 = vdwg.mxu0
    %1919 = vmatprep.subr.bf16.mxu0 %v1238
    %1920 = vmatpush1.bf16.msra.mxu0 %v1237
    %1921 = vmatprep.subr.bf16.mxu0 %v1242
    %1922 = vmatpush1.bf16.msra.mxu0 %v1241
    %1923 = vmatprep.subr.bf16.mxu0 %v1246
    %1924 = vmatpush1.bf16.msra.mxu0 %v1245
    %1925 = vmatprep.subr.bf16.mxu0 %v1250
    %1926 = vmatpush1.bf16.msra.mxu0 %v1249
    %1927 = vmatprep.subr.bf16.mxu0 %v1254
    %1928 = vmatpush1.bf16.msra.mxu0 %v1253
    %1929 = vmatprep.subr.bf16.mxu0 %v1258
    %1930 = vmatpush1.bf16.msra.mxu0 %v1257
    %1931 = vmatprep.subr.bf16.mxu0 %v1262
    %1932 = vmatpush1.bf16.msra.mxu0 %v1261
    %1933 = vmatprep.subr.bf16.mxu0 %v1266
    %1934 = vmatpush1.bf16.msra.mxu0 %v1265
    %1935 = vmatprep.subr.bf16.mxu0 %v1270
    %1936 = vmatpush1.bf16.msra.mxu0 %v1269
    %1937 = vmatprep.subr.bf16.mxu0 %v1274
    %1938 = vmatpush1.bf16.msra.mxu0 %v1273
    %1939 = vmatprep.subr.bf16.mxu0 %v1278
    %1940 = vmatpush1.bf16.msra.mxu0 %v1277
    %1941 = vmatprep.subr.bf16.mxu0 %v1282
    %1942 = vmatpush1.bf16.msra.mxu0 %v1281
    %1943 = vmatprep.subr.bf16.mxu0 %v1286
    %1944 = vmatpush1.bf16.msra.mxu0 %v1285
    %1945 = vmatprep.subr.bf16.mxu0 %v1290
    %1946 = vmatpush1.bf16.msra.mxu0 %v1289
    %1947 = vmatprep.subr.bf16.mxu0 %v1294
    %1948 = vmatpush1.bf16.msra.mxu0 %v1293
    %1949 = vmatprep.subr.bf16.mxu0 %v1298
    %1950 = vmatpush1.bf16.msra.mxu0 %v1297
    %1951 = vmatprep.mubr.bf16.mxu0 %v204
    %1952 = vmatmul.mubr.bf16.gmra.mrb[0].mxu0 %v203
    %v1953 = vpop.f32.mrb[0].mxu0
    %v1954 = vadd.f32 0.0, %v1953
    %v1955 = vpop.f32.mrb[0].mxu0
    %v1956 = vadd.f32 0.0, %v1955
    %v1957 = vpop.f32.mrb[0].mxu0
    %v1958 = vadd.f32 0.0, %v1957
    %v1959 = vpop.f32.mrb[0].mxu0
    %v1960 = vadd.f32 0.0, %v1959
    %1961 = vdwg.mxu0
    %1962 = vmatprep.subr.bf16.mxu0 %v1302
    %1963 = vmatpush1.bf16.msra.mxu0 %v1301
    %1964 = vmatprep.subr.bf16.mxu0 %v1306
    %1965 = vmatpush1.bf16.msra.mxu0 %v1305
    %1966 = vmatprep.subr.bf16.mxu0 %v1310
    %1967 = vmatpush1.bf16.msra.mxu0 %v1309
    %1968 = vmatprep.subr.bf16.mxu0 %v1314
    %1969 = vmatpush1.bf16.msra.mxu0 %v1313
    %1970 = vmatprep.subr.bf16.mxu0 %v1318
    %1971 = vmatpush1.bf16.msra.mxu0 %v1317
    %1972 = vmatprep.subr.bf16.mxu0 %v1322
    %1973 = vmatpush1.bf16.msra.mxu0 %v1321
    %1974 = vmatprep.subr.bf16.mxu0 %v1326
    %1975 = vmatpush1.bf16.msra.mxu0 %v1325
    %1976 = vmatprep.subr.bf16.mxu0 %v1330
    %1977 = vmatpush1.bf16.msra.mxu0 %v1329
    %1978 = vmatprep.subr.bf16.mxu0 %v1334
    %1979 = vmatpush1.bf16.msra.mxu0 %v1333
    %1980 = vmatprep.subr.bf16.mxu0 %v1338
    %1981 = vmatpush1.bf16.msra.mxu0 %v1337
    %1982 = vmatprep.subr.bf16.mxu0 %v1342
    %1983 = vmatpush1.bf16.msra.mxu0 %v1341
    %1984 = vmatprep.subr.bf16.mxu0 %v1346
    %1985 = vmatpush1.bf16.msra.mxu0 %v1345
    %1986 = vmatprep.subr.bf16.mxu0 %v1350
    %1987 = vmatpush1.bf16.msra.mxu0 %v1349
    %1988 = vmatprep.subr.bf16.mxu0 %v1354
    %1989 = vmatpush1.bf16.msra.mxu0 %v1353
    %1990 = vmatprep.subr.bf16.mxu0 %v1358
    %1991 = vmatpush1.bf16.msra.mxu0 %v1357
    %1992 = vmatprep.subr.bf16.mxu0 %v1362
    %1993 = vmatpush1.bf16.msra.mxu0 %v1361
    %1994 = vmatprep.mubr.bf16.mxu0 %v206
    %1995 = vmatmul.mubr.bf16.gmra.mrb[0].mxu0 %v205
    %v1996 = vpop.f32.mrb[0].mxu0
    %v1997 = vadd.f32 %v1954, %v1996
    %v1998 = vpop.f32.mrb[0].mxu0
    %v1999 = vadd.f32 %v1956, %v1998
    %v2000 = vpop.f32.mrb[0].mxu0
    %v2001 = vadd.f32 %v1958, %v2000
    %v2002 = vpop.f32.mrb[0].mxu0
    %v2003 = vadd.f32 %v1960, %v2002
    %2004 = vdwg.mxu0
    %2005 = vmatprep.subr.bf16.mxu0 %v1366
    %2006 = vmatpush1.bf16.msra.mxu0 %v1365
    %2007 = vmatprep.subr.bf16.mxu0 %v1370
    %2008 = vmatpush1.bf16.msra.mxu0 %v1369
    %2009 = vmatprep.subr.bf16.mxu0 %v1374
    %2010 = vmatpush1.bf16.msra.mxu0 %v1373
    %2011 = vmatprep.subr.bf16.mxu0 %v1378
    %2012 = vmatpush1.bf16.msra.mxu0 %v1377
    %2013 = vmatprep.subr.bf16.mxu0 %v1382
    %2014 = vmatpush1.bf16.msra.mxu0 %v1381
    %2015 = vmatprep.subr.bf16.mxu0 %v1386
    %2016 = vmatpush1.bf16.msra.mxu0 %v1385
    %2017 = vmatprep.subr.bf16.mxu0 %v1390
    %2018 = vmatpush1.bf16.msra.mxu0 %v1389
    %2019 = vmatprep.subr.bf16.mxu0 %v1394
    %2020 = vmatpush1.bf16.msra.mxu0 %v1393
    %2021 = vmatprep.subr.bf16.mxu0 %v1398
    %2022 = vmatpush1.bf16.msra.mxu0 %v1397
    %2023 = vmatprep.subr.bf16.mxu0 %v1402
    %2024 = vmatpush1.bf16.msra.mxu0 %v1401
    %2025 = vmatprep.subr.bf16.mxu0 %v1406
    %2026 = vmatpush1.bf16.msra.mxu0 %v1405
    %2027 = vmatprep.subr.bf16.mxu0 %v1410
    %2028 = vmatpush1.bf16.msra.mxu0 %v1409
    %2029 = vmatprep.subr.bf16.mxu0 %v1414
    %2030 = vmatpush1.bf16.msra.mxu0 %v1413
    %2031 = vmatprep.subr.bf16.mxu0 %v1418
    %2032 = vmatpush1.bf16.msra.mxu0 %v1417
    %2033 = vmatprep.subr.bf16.mxu0 %v1422
    %2034 = vmatpush1.bf16.msra.mxu0 %v1421
    %2035 = vmatprep.subr.bf16.mxu0 %v1426
    %2036 = vmatpush1.bf16.msra.mxu0 %v1425
    %2037 = vmatprep.mubr.bf16.mxu0 %v208
    %2038 = vmatmul.mubr.bf16.gmra.mrb[0].mxu0 %v207
    %v2039 = vpop.f32.mrb[0].mxu0
    %v2040 = vadd.f32 %v1997, %v2039
    %v2041 = vpop.f32.mrb[0].mxu0
    %v2042 = vadd.f32 %v1999, %v2041
    %v2043 = vpop.f32.mrb[0].mxu0
    %v2044 = vadd.f32 %v2001, %v2043
    %v2045 = vpop.f32.mrb[0].mxu0
    %v2046 = vadd.f32 %v2003, %v2045
    %2047 = vdwg.mxu0
    %2048 = vmatprep.subr.bf16.mxu0 %v1430
    %2049 = vmatpush1.bf16.msra.mxu0 %v1429
    %2050 = vmatprep.subr.bf16.mxu0 %v1434
    %2051 = vmatpush1.bf16.msra.mxu0 %v1433
    %2052 = vmatprep.subr.bf16.mxu0 %v1438
    %2053 = vmatpush1.bf16.msra.mxu0 %v1437
    %2054 = vmatprep.subr.bf16.mxu0 %v1442
    %2055 = vmatpush1.bf16.msra.mxu0 %v1441
    %2056 = vmatprep.subr.bf16.mxu0 %v1446
    %2057 = vmatpush1.bf16.msra.mxu0 %v1445
    %2058 = vmatprep.subr.bf16.mxu0 %v1450
    %2059 = vmatpush1.bf16.msra.mxu0 %v1449
    %2060 = vmatprep.subr.bf16.mxu0 %v1454
    %2061 = vmatpush1.bf16.msra.mxu0 %v1453
    %2062 = vmatprep.subr.bf16.mxu0 %v1458
    %2063 = vmatpush1.bf16.msra.mxu0 %v1457
    %2064 = vmatprep.subr.bf16.mxu0 %v1462
    %2065 = vmatpush1.bf16.msra.mxu0 %v1461
    %2066 = vmatprep.subr.bf16.mxu0 %v1466
    %2067 = vmatpush1.bf16.msra.mxu0 %v1465
    %2068 = vmatprep.subr.bf16.mxu0 %v1470
    %2069 = vmatpush1.bf16.msra.mxu0 %v1469
    %2070 = vmatprep.subr.bf16.mxu0 %v1474
    %2071 = vmatpush1.bf16.msra.mxu0 %v1473
    %2072 = vmatprep.subr.bf16.mxu0 %v1478
    %2073 = vmatpush1.bf16.msra.mxu0 %v1477
    %2074 = vmatprep.subr.bf16.mxu0 %v1482
    %2075 = vmatpush1.bf16.msra.mxu0 %v1481
    %2076 = vmatprep.subr.bf16.mxu0 %v1486
    %2077 = vmatpush1.bf16.msra.mxu0 %v1485
    %2078 = vmatprep.subr.bf16.mxu0 %v1490
    %2079 = vmatpush1.bf16.msra.mxu0 %v1489
    %2080 = vmatprep.mubr.bf16.mxu0 %v210
    %2081 = vmatmul.mubr.bf16.gmra.mrb[0].mxu0 %v209
    %v2082 = vpop.f32.mrb[0].mxu0
    %v2083 = vadd.f32 %v2040, %v2082
    %v2084 = vpop.f32.mrb[0].mxu0
    %v2085 = vadd.f32 %v2042, %v2084
    %v2086 = vpop.f32.mrb[0].mxu0
    %v2087 = vadd.f32 %v2044, %v2086
    %v2088 = vpop.f32.mrb[0].mxu0
    %v2089 = vadd.f32 %v2046, %v2088
    %2090 = vdwg.mxu0
    %v2091 = vld [vmem:[%s3] sm:$0xf]
    %v2093 = vlaneseq
    %v2094 = vshrl.u32 %v2093, 7
    %v2095 = vsub.s32 0, %v2094
    %v2096 = vrot.slane %v2091, %v2095
    %v2097 = vlaneseq
    %v2098 = vshrl.u32 %v2097, 7
    %v2099 = vsub.s32 1, %v2098
    %v2100 = vrot.slane %v2091, %v2099
    %v2101 = vlaneseq
    %v2102 = vshrl.u32 %v2101, 7
    %v2103 = vsub.s32 2, %v2102
    %v2104 = vrot.slane %v2091, %v2103
    %v2105 = vlaneseq
    %v2106 = vshrl.u32 %v2105, 7
    %v2107 = vsub.s32 3, %v2106
    %v2108 = vrot.slane %v2091, %v2107
    %v2113 = vmul.f32 %v173, %v2096
    %v2114 = vmul.f32 %v173, %v2100
    %v2115 = vmul.f32 %v173, %v2104
    %v2116 = vmul.f32 %v173, %v2108
    %v2117 = vmul.f32 %v174, %v2096
    %v2118 = vmul.f32 %v174, %v2100
    %v2119 = vmul.f32 %v174, %v2104
    %v2120 = vmul.f32 %v174, %v2108
    %v2121 = vsub.f32 %v1911, %v2113
    %v2122 = vsub.f32 %v1913, %v2114
    %v2123 = vsub.f32 %v2083, %v2115
    %v2124 = vsub.f32 %v2085, %v2116
    %v2125 = vsub.f32 %v1915, %v2117
    %v2126 = vsub.f32 %v1917, %v2118
    %v2127 = vsub.f32 %v2087, %v2119
    %v2128 = vsub.f32 %v2089, %v2120
    %v2129 = vmul.f32 %v201, %v2121
    %v2130 = vmul.f32 %v201, %v2122
    %v2131 = vmul.f32 %v201, %v2123
    %v2132 = vmul.f32 %v201, %v2124
    %v2133 = vmul.f32 %v202, %v2125
    %v2134 = vmul.f32 %v202, %v2126
    %v2135 = vmul.f32 %v202, %v2127
    %v2136 = vmul.f32 %v202, %v2128
    %v2137 = vld [vmem:[%s2] sm:$0xf]
    %v2139 = vlaneseq
    %v2140 = vshrl.u32 %v2139, 7
    %v2141 = vsub.s32 0, %v2140
    %v2142 = vrot.slane %v2137, %v2141
    %v2143 = vlaneseq
    %v2144 = vshrl.u32 %v2143, 7
    %v2145 = vsub.s32 1, %v2144
    %v2146 = vrot.slane %v2137, %v2145
    %v2147 = vlaneseq
    %v2148 = vshrl.u32 %v2147, 7
    %v2149 = vsub.s32 2, %v2148
    %v2150 = vrot.slane %v2137, %v2149
    %v2151 = vlaneseq
    %v2152 = vshrl.u32 %v2151, 7
    %v2153 = vsub.s32 3, %v2152
    %v2154 = vrot.slane %v2137, %v2153
    %v2159 = vadd.f32 %v2129, %v2142
    %v2160 = vadd.f32 %v2130, %v2146
    %v2161 = vadd.f32 %v2131, %v2150
    %v2162 = vadd.f32 %v2132, %v2154
    %v2163 = vadd.f32 %v2133, %v2142
    %v2164 = vadd.f32 %v2134, %v2146
    %v2165 = vadd.f32 %v2135, %v2150
    %v2166 = vadd.f32 %v2136, %v2154
    %v2167 = vadd.f32 %v2159, %v2160
    %v2168 = vadd.f32 %v2167, %v2161
    %v2169 = vadd.f32 %v2168, %v2162
    %2170 = vadd.xlane.f32.xlu0 %v2169
    %v2171 = vpop.xlane.xlu0 %2170
    %v2172 = vadd.f32 %v2163, %v2164
    %v2173 = vadd.f32 %v2172, %v2165
    %v2174 = vadd.f32 %v2173, %v2166
    %2175 = vadd.xlane.f32.xlu0 %v2174
    %v2176 = vpop.xlane.xlu0 %2175
    %v2177 = vrcp.pop 512.0
    %v2178 = vmul.f32 %v2171, %v2177
    %v2179 = vmul.f32 %v2176, %v2177
    %v2180 = vsub.f32 %v2159, %v2178
    %v2181 = vsub.f32 %v2160, %v2178
    %v2182 = vsub.f32 %v2161, %v2178
    %v2183 = vsub.f32 %v2162, %v2178
    %v2184 = vsub.f32 %v2163, %v2179
    %v2185 = vsub.f32 %v2164, %v2179
    %v2186 = vsub.f32 %v2165, %v2179
    %v2187 = vsub.f32 %v2166, %v2179
    %v2188 = vmul.f32 %v2180, %v2180
    %v2189 = vmul.f32 %v2181, %v2181
    %v2190 = vmul.f32 %v2182, %v2182
    %v2191 = vmul.f32 %v2183, %v2183
    %v2192 = vmul.f32 %v2184, %v2184
    %v2193 = vmul.f32 %v2185, %v2185
    %v2194 = vmul.f32 %v2186, %v2186
    %v2195 = vmul.f32 %v2187, %v2187
    %v2196 = vadd.f32 %v2188, %v2189
    %v2197 = vadd.f32 %v2196, %v2190
    %v2198 = vadd.f32 %v2197, %v2191
    %2199 = vadd.xlane.f32.xlu0 %v2198
    %v2200 = vpop.xlane.xlu0 %2199
    %v2201 = vadd.f32 %v2192, %v2193
    %v2202 = vadd.f32 %v2201, %v2194
    %v2203 = vadd.f32 %v2202, %v2195
    %2204 = vadd.xlane.f32.xlu0 %v2203
    %v2205 = vpop.xlane.xlu0 %2204
    %v2206 = vmul.f32 %v2200, %v2177
    %v2207 = vmul.f32 %v2205, %v2177
    %v2208 = vadd.f32 %v2206, 1e-05
    %v2209 = vadd.f32 %v2207, 1e-05
    %v2210 = vrsqrt.pop %v2208
    %v2211 = vrsqrt.pop %v2209
    %v2212 = vmul.f32 %v2180, %v2210
    %v2213 = vmul.f32 %v2181, %v2210
    %v2214 = vmul.f32 %v2182, %v2210
    %v2215 = vmul.f32 %v2183, %v2210
    %v2216 = vmul.f32 %v2184, %v2211
    %v2217 = vmul.f32 %v2185, %v2211
    %v2218 = vmul.f32 %v2186, %v2211
    %v2219 = vmul.f32 %v2187, %v2211
    %v2220 = vmax.f32 %v2212, 0.0
    %v2221 = vmax.f32 %v2213, 0.0
    %v2222 = vmax.f32 %v2214, 0.0
    %v2223 = vmax.f32 %v2215, 0.0
    %v2224 = vmax.f32 %v2216, 0.0
    %v2225 = vmax.f32 %v2217, 0.0
    %v2226 = vmax.f32 %v2218, 0.0
    %v2227 = vmax.f32 %v2219, 0.0
    %v2228 = vpack.c.bf16 %v2224, %v2220
    %v2229 = vpack.c.bf16 %v2225, %v2221
    %v2230 = vpack.c.bf16 %v2226, %v2222
    %v2231 = vpack.c.bf16 %v2227, %v2223
    %v2232 = vld [vmem:[#allocation7] sm:$0xff]
    %v2233 = vld [vmem:[#allocation7 + $0x8] sm:$0xff]
    %v2234 = vld [vmem:[#allocation7 + $0x10] sm:$0xff]
    %v2235 = vld [vmem:[#allocation7 + $0x18] sm:$0xff]
    %v2236 = vld [vmem:[#allocation7 + $0x20] sm:$0xff]
    %v2237 = vld [vmem:[#allocation7 + $0x28] sm:$0xff]
    %v2238 = vld [vmem:[#allocation7 + $0x30] sm:$0xff]
    %v2239 = vld [vmem:[#allocation7 + $0x38] sm:$0xff]
    %v2240 = vld [vmem:[#allocation7 + $0x40] sm:$0xff]
    %v2241 = vld [vmem:[#allocation7 + $0x48] sm:$0xff]
    %v2242 = vld [vmem:[#allocation7 + $0x50] sm:$0xff]
    %v2243 = vld [vmem:[#allocation7 + $0x58] sm:$0xff]
    %v2244 = vld [vmem:[#allocation7 + $0x60] sm:$0xff]
    %v2245 = vld [vmem:[#allocation7 + $0x68] sm:$0xff]
    %v2246 = vld [vmem:[#allocation7 + $0x70] sm:$0xff]
    %v2247 = vld [vmem:[#allocation7 + $0x78] sm:$0xff]
    %v2248 = vld [vmem:[#allocation7 + $0x80] sm:$0xff]
    %v2249 = vld [vmem:[#allocation7 + $0x88] sm:$0xff]
    %v2250 = vld [vmem:[#allocation7 + $0x90] sm:$0xff]
    %v2251 = vld [vmem:[#allocation7 + $0x98] sm:$0xff]
    %v2252 = vld [vmem:[#allocation7 + $0xa0] sm:$0xff]
    %v2253 = vld [vmem:[#allocation7 + $0xa8] sm:$0xff]
    %v2254 = vld [vmem:[#allocation7 + $0xb0] sm:$0xff]
    %v2255 = vld [vmem:[#allocation7 + $0xb8] sm:$0xff]
    %v2256 = vld [vmem:[#allocation7 + $0xc0] sm:$0xff]
    %v2257 = vld [vmem:[#allocation7 + $0xc8] sm:$0xff]
    %v2258 = vld [vmem:[#allocation7 + $0xd0] sm:$0xff]
    %v2259 = vld [vmem:[#allocation7 + $0xd8] sm:$0xff]
    %v2260 = vld [vmem:[#allocation7 + $0xe0] sm:$0xff]
    %v2261 = vld [vmem:[#allocation7 + $0xe8] sm:$0xff]
    %v2262 = vld [vmem:[#allocation7 + $0xf0] sm:$0xff]
    %v2263 = vld [vmem:[#allocation7 + $0xf8] sm:$0xff]
    %v2264 = vld [vmem:[#allocation7 + $0x100] sm:$0xff]
    %v2265 = vld [vmem:[#allocation7 + $0x108] sm:$0xff]
    %v2266 = vld [vmem:[#allocation7 + $0x110] sm:$0xff]
    %v2267 = vld [vmem:[#allocation7 + $0x118] sm:$0xff]
    %v2268 = vld [vmem:[#allocation7 + $0x120] sm:$0xff]
    %v2269 = vld [vmem:[#allocation7 + $0x128] sm:$0xff]
    %v2270 = vld [vmem:[#allocation7 + $0x130] sm:$0xff]
    %v2271 = vld [vmem:[#allocation7 + $0x138] sm:$0xff]
    %v2272 = vld [vmem:[#allocation7 + $0x140] sm:$0xff]
    %v2273 = vld [vmem:[#allocation7 + $0x148] sm:$0xff]
    %v2274 = vld [vmem:[#allocation7 + $0x150] sm:$0xff]
    %v2275 = vld [vmem:[#allocation7 + $0x158] sm:$0xff]
    %v2276 = vld [vmem:[#allocation7 + $0x160] sm:$0xff]
    %v2277 = vld [vmem:[#allocation7 + $0x168] sm:$0xff]
    %v2278 = vld [vmem:[#allocation7 + $0x170] sm:$0xff]
    %v2279 = vld [vmem:[#allocation7 + $0x178] sm:$0xff]
    %v2280 = vld [vmem:[#allocation7 + $0x180] sm:$0xff]
    %v2281 = vld [vmem:[#allocation7 + $0x188] sm:$0xff]
    %v2282 = vld [vmem:[#allocation7 + $0x190] sm:$0xff]
    %v2283 = vld [vmem:[#allocation7 + $0x198] sm:$0xff]
    %v2284 = vld [vmem:[#allocation7 + $0x1a0] sm:$0xff]
    %v2285 = vld [vmem:[#allocation7 + $0x1a8] sm:$0xff]
    %v2286 = vld [vmem:[#allocation7 + $0x1b0] sm:$0xff]
    %v2287 = vld [vmem:[#allocation7 + $0x1b8] sm:$0xff]
    %v2288 = vld [vmem:[#allocation7 + $0x1c0] sm:$0xff]
    %v2289 = vld [vmem:[#allocation7 + $0x1c8] sm:$0xff]
    %v2290 = vld [vmem:[#allocation7 + $0x1d0] sm:$0xff]
    %v2291 = vld [vmem:[#allocation7 + $0x1d8] sm:$0xff]
    %v2292 = vld [vmem:[#allocation7 + $0x1e0] sm:$0xff]
    %v2293 = vld [vmem:[#allocation7 + $0x1e8] sm:$0xff]
    %v2294 = vld [vmem:[#allocation7 + $0x1f0] sm:$0xff]
    %v2295 = vld [vmem:[#allocation7 + $0x1f8] sm:$0xff]
    %v2296 = vld [vmem:[%s5] sm:$0x3]
    %v2298 = vlaneseq
    %v2299 = vshrl.u32 %v2298, 7
    %v2300 = vsub.s32 0, %v2299
    %v2301 = vrot.slane %v2296, %v2300
    %v2302 = vlaneseq
    %v2303 = vshrl.u32 %v2302, 7
    %v2304 = vsub.s32 1, %v2303
    %v2305 = vrot.slane %v2296, %v2304
    %v2372 = vunpack.c.l.b16 %v2232
    %v2373 = vunpack.c.h.b16 %v2232
    %v2374 = vunpack.c.l.b16 %v2233
    %v2375 = vunpack.c.h.b16 %v2233
    %v2376 = vunpack.c.l.b16 %v2234
    %v2377 = vunpack.c.h.b16 %v2234
    %v2378 = vunpack.c.l.b16 %v2235
    %v2379 = vunpack.c.h.b16 %v2235
    %v2380 = vunpack.c.l.b16 %v2236
    %v2381 = vunpack.c.h.b16 %v2236
    %v2382 = vunpack.c.l.b16 %v2237
    %v2383 = vunpack.c.h.b16 %v2237
    %v2384 = vunpack.c.l.b16 %v2238
    %v2385 = vunpack.c.h.b16 %v2238
    %v2386 = vunpack.c.l.b16 %v2239
    %v2387 = vunpack.c.h.b16 %v2239
    %v2388 = vunpack.c.l.b16 %v2240
    %v2389 = vunpack.c.h.b16 %v2240
    %v2390 = vunpack.c.l.b16 %v2241
    %v2391 = vunpack.c.h.b16 %v2241
    %v2392 = vunpack.c.l.b16 %v2242
    %v2393 = vunpack.c.h.b16 %v2242
    %v2394 = vunpack.c.l.b16 %v2243
    %v2395 = vunpack.c.h.b16 %v2243
    %v2396 = vunpack.c.l.b16 %v2244
    %v2397 = vunpack.c.h.b16 %v2244
    %v2398 = vunpack.c.l.b16 %v2245
    %v2399 = vunpack.c.h.b16 %v2245
    %v2400 = vunpack.c.l.b16 %v2246
    %v2401 = vunpack.c.h.b16 %v2246
    %v2402 = vunpack.c.l.b16 %v2247
    %v2403 = vunpack.c.h.b16 %v2247
    %v2404 = vunpack.c.l.b16 %v2248
    %v2405 = vunpack.c.h.b16 %v2248
    %v2406 = vunpack.c.l.b16 %v2249
    %v2407 = vunpack.c.h.b16 %v2249
    %v2408 = vunpack.c.l.b16 %v2250
    %v2409 = vunpack.c.h.b16 %v2250
    %v2410 = vunpack.c.l.b16 %v2251
    %v2411 = vunpack.c.h.b16 %v2251
    %v2412 = vunpack.c.l.b16 %v2252
    %v2413 = vunpack.c.h.b16 %v2252
    %v2414 = vunpack.c.l.b16 %v2253
    %v2415 = vunpack.c.h.b16 %v2253
    %v2416 = vunpack.c.l.b16 %v2254
    %v2417 = vunpack.c.h.b16 %v2254
    %v2418 = vunpack.c.l.b16 %v2255
    %v2419 = vunpack.c.h.b16 %v2255
    %v2420 = vunpack.c.l.b16 %v2256
    %v2421 = vunpack.c.h.b16 %v2256
    %v2422 = vunpack.c.l.b16 %v2257
    %v2423 = vunpack.c.h.b16 %v2257
    %v2424 = vunpack.c.l.b16 %v2258
    %v2425 = vunpack.c.h.b16 %v2258
    %v2426 = vunpack.c.l.b16 %v2259
    %v2427 = vunpack.c.h.b16 %v2259
    %v2428 = vunpack.c.l.b16 %v2260
    %v2429 = vunpack.c.h.b16 %v2260
    %v2430 = vunpack.c.l.b16 %v2261
    %v2431 = vunpack.c.h.b16 %v2261
    %v2432 = vunpack.c.l.b16 %v2262
    %v2433 = vunpack.c.h.b16 %v2262
    %v2434 = vunpack.c.l.b16 %v2263
    %v2435 = vunpack.c.h.b16 %v2263
    %v2436 = vunpack.c.l.b16 %v2264
    %v2437 = vunpack.c.h.b16 %v2264
    %v2438 = vunpack.c.l.b16 %v2265
    %v2439 = vunpack.c.h.b16 %v2265
    %v2440 = vunpack.c.l.b16 %v2266
    %v2441 = vunpack.c.h.b16 %v2266
    %v2442 = vunpack.c.l.b16 %v2267
    %v2443 = vunpack.c.h.b16 %v2267
    %v2444 = vunpack.c.l.b16 %v2268
    %v2445 = vunpack.c.h.b16 %v2268
    %v2446 = vunpack.c.l.b16 %v2269
    %v2447 = vunpack.c.h.b16 %v2269
    %v2448 = vunpack.c.l.b16 %v2270
    %v2449 = vunpack.c.h.b16 %v2270
    %v2450 = vunpack.c.l.b16 %v2271
    %v2451 = vunpack.c.h.b16 %v2271
    %v2452 = vunpack.c.l.b16 %v2272
    %v2453 = vunpack.c.h.b16 %v2272
    %v2454 = vunpack.c.l.b16 %v2273
    %v2455 = vunpack.c.h.b16 %v2273
    %v2456 = vunpack.c.l.b16 %v2274
    %v2457 = vunpack.c.h.b16 %v2274
    %v2458 = vunpack.c.l.b16 %v2275
    %v2459 = vunpack.c.h.b16 %v2275
    %v2460 = vunpack.c.l.b16 %v2276
    %v2461 = vunpack.c.h.b16 %v2276
    %v2462 = vunpack.c.l.b16 %v2277
    %v2463 = vunpack.c.h.b16 %v2277
    %v2464 = vunpack.c.l.b16 %v2278
    %v2465 = vunpack.c.h.b16 %v2278
    %v2466 = vunpack.c.l.b16 %v2279
    %v2467 = vunpack.c.h.b16 %v2279
    %v2468 = vunpack.c.l.b16 %v2280
    %v2469 = vunpack.c.h.b16 %v2280
    %v2470 = vunpack.c.l.b16 %v2281
    %v2471 = vunpack.c.h.b16 %v2281
    %v2472 = vunpack.c.l.b16 %v2282
    %v2473 = vunpack.c.h.b16 %v2282
    %v2474 = vunpack.c.l.b16 %v2283
    %v2475 = vunpack.c.h.b16 %v2283
    %v2476 = vunpack.c.l.b16 %v2284
    %v2477 = vunpack.c.h.b16 %v2284
    %v2478 = vunpack.c.l.b16 %v2285
    %v2479 = vunpack.c.h.b16 %v2285
    %v2480 = vunpack.c.l.b16 %v2286
    %v2481 = vunpack.c.h.b16 %v2286
    %v2482 = vunpack.c.l.b16 %v2287
    %v2483 = vunpack.c.h.b16 %v2287
    %v2484 = vunpack.c.l.b16 %v2288
    %v2485 = vunpack.c.h.b16 %v2288
    %v2486 = vunpack.c.l.b16 %v2289
    %v2487 = vunpack.c.h.b16 %v2289
    %v2488 = vunpack.c.l.b16 %v2290
    %v2489 = vunpack.c.h.b16 %v2290
    %v2490 = vunpack.c.l.b16 %v2291
    %v2491 = vunpack.c.h.b16 %v2291
    %v2492 = vunpack.c.l.b16 %v2292
    %v2493 = vunpack.c.h.b16 %v2292
    %v2494 = vunpack.c.l.b16 %v2293
    %v2495 = vunpack.c.h.b16 %v2293
    %v2496 = vunpack.c.l.b16 %v2294
    %v2497 = vunpack.c.h.b16 %v2294
    %v2498 = vunpack.c.l.b16 %v2295
    %v2499 = vunpack.c.h.b16 %v2295
    %v2500 = vpack.c.b16 %v2374, %v2372
    %v2501 = vpack.c.b16 %v2375, %v2373
    %v2502 = vpack.c.b16 %v2378, %v2376
    %v2503 = vpack.c.b16 %v2379, %v2377
    %v2504 = vpack.c.b16 %v2382, %v2380
    %v2505 = vpack.c.b16 %v2383, %v2381
    %v2506 = vpack.c.b16 %v2386, %v2384
    %v2507 = vpack.c.b16 %v2387, %v2385
    %v2508 = vpack.c.b16 %v2390, %v2388
    %v2509 = vpack.c.b16 %v2391, %v2389
    %v2510 = vpack.c.b16 %v2394, %v2392
    %v2511 = vpack.c.b16 %v2395, %v2393
    %v2512 = vpack.c.b16 %v2398, %v2396
    %v2513 = vpack.c.b16 %v2399, %v2397
    %v2514 = vpack.c.b16 %v2402, %v2400
    %v2515 = vpack.c.b16 %v2403, %v2401
    %v2516 = vpack.c.b16 %v2406, %v2404
    %v2517 = vpack.c.b16 %v2407, %v2405
    %v2518 = vpack.c.b16 %v2410, %v2408
    %v2519 = vpack.c.b16 %v2411, %v2409
    %v2520 = vpack.c.b16 %v2414, %v2412
    %v2521 = vpack.c.b16 %v2415, %v2413
    %v2522 = vpack.c.b16 %v2418, %v2416
    %v2523 = vpack.c.b16 %v2419, %v2417
    %v2524 = vpack.c.b16 %v2422, %v2420
    %v2525 = vpack.c.b16 %v2423, %v2421
    %v2526 = vpack.c.b16 %v2426, %v2424
    %v2527 = vpack.c.b16 %v2427, %v2425
    %v2528 = vpack.c.b16 %v2430, %v2428
    %v2529 = vpack.c.b16 %v2431, %v2429
    %v2530 = vpack.c.b16 %v2434, %v2432
    %v2531 = vpack.c.b16 %v2435, %v2433
    %v2532 = vpack.c.b16 %v2438, %v2436
    %v2533 = vpack.c.b16 %v2439, %v2437
    %v2534 = vpack.c.b16 %v2442, %v2440
    %v2535 = vpack.c.b16 %v2443, %v2441
    %v2536 = vpack.c.b16 %v2446, %v2444
    %v2537 = vpack.c.b16 %v2447, %v2445
    %v2538 = vpack.c.b16 %v2450, %v2448
    %v2539 = vpack.c.b16 %v2451, %v2449
    %v2540 = vpack.c.b16 %v2454, %v2452
    %v2541 = vpack.c.b16 %v2455, %v2453
    %v2542 = vpack.c.b16 %v2458, %v2456
    %v2543 = vpack.c.b16 %v2459, %v2457
    %v2544 = vpack.c.b16 %v2462, %v2460
    %v2545 = vpack.c.b16 %v2463, %v2461
    %v2546 = vpack.c.b16 %v2466, %v2464
    %v2547 = vpack.c.b16 %v2467, %v2465
    %v2548 = vpack.c.b16 %v2470, %v2468
    %v2549 = vpack.c.b16 %v2471, %v2469
    %v2550 = vpack.c.b16 %v2474, %v2472
    %v2551 = vpack.c.b16 %v2475, %v2473
    %v2552 = vpack.c.b16 %v2478, %v2476
    %v2553 = vpack.c.b16 %v2479, %v2477
    %v2554 = vpack.c.b16 %v2482, %v2480
    %v2555 = vpack.c.b16 %v2483, %v2481
    %v2556 = vpack.c.b16 %v2486, %v2484
    %v2557 = vpack.c.b16 %v2487, %v2485
    %v2558 = vpack.c.b16 %v2490, %v2488
    %v2559 = vpack.c.b16 %v2491, %v2489
    %v2560 = vpack.c.b16 %v2494, %v2492
    %v2561 = vpack.c.b16 %v2495, %v2493
    %v2562 = vpack.c.b16 %v2498, %v2496
    %v2563 = vpack.c.b16 %v2499, %v2497
    %2628 = vmatprep.subr.bf16.mxu0 %v2501
    %2629 = vmatpush1.bf16.msra.mxu0 %v2500
    %2630 = vmatprep.subr.bf16.mxu0 %v2503
    %2631 = vmatpush1.bf16.msra.mxu0 %v2502
    %2632 = vmatprep.subr.bf16.mxu0 %v2505
    %2633 = vmatpush1.bf16.msra.mxu0 %v2504
    %2634 = vmatprep.subr.bf16.mxu0 %v2507
    %2635 = vmatpush1.bf16.msra.mxu0 %v2506
    %2636 = vmatprep.subr.bf16.mxu0 %v2509
    %2637 = vmatpush1.bf16.msra.mxu0 %v2508
    %2638 = vmatprep.subr.bf16.mxu0 %v2511
    %2639 = vmatpush1.bf16.msra.mxu0 %v2510
    %2640 = vmatprep.subr.bf16.mxu0 %v2513
    %2641 = vmatpush1.bf16.msra.mxu0 %v2512
    %2642 = vmatprep.subr.bf16.mxu0 %v2515
    %2643 = vmatpush1.bf16.msra.mxu0 %v2514
    %2644 = vmatprep.subr.bf16.mxu0 %v2517
    %2645 = vmatpush1.bf16.msra.mxu0 %v2516
    %2646 = vmatprep.subr.bf16.mxu0 %v2519
    %2647 = vmatpush1.bf16.msra.mxu0 %v2518
    %2648 = vmatprep.subr.bf16.mxu0 %v2521
    %2649 = vmatpush1.bf16.msra.mxu0 %v2520
    %2650 = vmatprep.subr.bf16.mxu0 %v2523
    %2651 = vmatpush1.bf16.msra.mxu0 %v2522
    %2652 = vmatprep.subr.bf16.mxu0 %v2525
    %2653 = vmatpush1.bf16.msra.mxu0 %v2524
    %2654 = vmatprep.subr.bf16.mxu0 %v2527
    %2655 = vmatpush1.bf16.msra.mxu0 %v2526
    %2656 = vmatprep.subr.bf16.mxu0 %v2529
    %2657 = vmatpush1.bf16.msra.mxu0 %v2528
    %2658 = vmatprep.subr.bf16.mxu0 %v2531
    %2659 = vmatpush1.bf16.msra.mxu0 %v2530
    %2660 = vmatprep.mubr.bf16.mxu0 %v2229
    %2661 = vmatmul.mubr.bf16.gmra.mrb[0].mxu0 %v2228
    %v2662 = vpop.f32.mrb[0].mxu0
    %v2663 = vadd.f32 %v2301, %v2662
    %v2664 = vpop.f32.mrb[0].mxu0
    %v2665 = vadd.f32 %v2305, %v2664
    %v2666 = vpop.f32.mrb[0].mxu0
    %v2667 = vadd.f32 %v2301, %v2666
    %v2668 = vpop.f32.mrb[0].mxu0
    %v2669 = vadd.f32 %v2305, %v2668
    %2670 = vdwg.mxu0
    %2671 = vmatprep.subr.bf16.mxu0 %v2533
    %2672 = vmatpush1.bf16.msra.mxu0 %v2532
    %2673 = vmatprep.subr.bf16.mxu0 %v2535
    %2674 = vmatpush1.bf16.msra.mxu0 %v2534
    %2675 = vmatprep.subr.bf16.mxu0 %v2537
    %2676 = vmatpush1.bf16.msra.mxu0 %v2536
    %2677 = vmatprep.subr.bf16.mxu0 %v2539
    %2678 = vmatpush1.bf16.msra.mxu0 %v2538
    %2679 = vmatprep.subr.bf16.mxu0 %v2541
    %2680 = vmatpush1.bf16.msra.mxu0 %v2540
    %2681 = vmatprep.subr.bf16.mxu0 %v2543
    %2682 = vmatpush1.bf16.msra.mxu0 %v2542
    %2683 = vmatprep.subr.bf16.mxu0 %v2545
    %2684 = vmatpush1.bf16.msra.mxu0 %v2544
    %2685 = vmatprep.subr.bf16.mxu0 %v2547
    %2686 = vmatpush1.bf16.msra.mxu0 %v2546
    %2687 = vmatprep.subr.bf16.mxu0 %v2549
    %2688 = vmatpush1.bf16.msra.mxu0 %v2548
    %2689 = vmatprep.subr.bf16.mxu0 %v2551
    %2690 = vmatpush1.bf16.msra.mxu0 %v2550
    %2691 = vmatprep.subr.bf16.mxu0 %v2553
    %2692 = vmatpush1.bf16.msra.mxu0 %v2552
    %2693 = vmatprep.subr.bf16.mxu0 %v2555
    %2694 = vmatpush1.bf16.msra.mxu0 %v2554
    %2695 = vmatprep.subr.bf16.mxu0 %v2557
    %2696 = vmatpush1.bf16.msra.mxu0 %v2556
    %2697 = vmatprep.subr.bf16.mxu0 %v2559
    %2698 = vmatpush1.bf16.msra.mxu0 %v2558
    %2699 = vmatprep.subr.bf16.mxu0 %v2561
    %2700 = vmatpush1.bf16.msra.mxu0 %v2560
    %2701 = vmatprep.subr.bf16.mxu0 %v2563
    %2702 = vmatpush1.bf16.msra.mxu0 %v2562
    %2703 = vmatprep.mubr.bf16.mxu0 %v2231
    %2704 = vmatmul.mubr.bf16.gmra.mrb[0].mxu0 %v2230
    %v2705 = vpop.f32.mrb[0].mxu0
    %v2706 = vadd.f32 %v2663, %v2705
    %v2707 = vpop.f32.mrb[0].mxu0
    %v2708 = vadd.f32 %v2665, %v2707
    %v2709 = vpop.f32.mrb[0].mxu0
    %v2710 = vadd.f32 %v2667, %v2709
    %v2711 = vpop.f32.mrb[0].mxu0
    %v2712 = vadd.f32 %v2669, %v2711
    %2713 = vdwg.mxu0
    %v2714 = vadd.f32 %v2706, %v2708
    %2715 = vadd.xlane.f32.xlu0 %v2714
    %v2716 = vpop.xlane.xlu0 %2715
    %v2717 = vadd.f32 %v2710, %v2712
    %2718 = vadd.xlane.f32.xlu0 %v2717
    %v2719 = vpop.xlane.xlu0 %2718
    %v2720 = vrcp.pop 256.0
    %v2721 = vmul.f32 %v2716, %v2720
    %v2722 = vmul.f32 %v2719, %v2720
    %v2723 = vsub.f32 %v2706, %v2721
    %v2724 = vsub.f32 %v2708, %v2721
    %v2725 = vsub.f32 %v2710, %v2722
    %v2726 = vsub.f32 %v2712, %v2722
    %v2727 = vmul.f32 %v2723, %v2723
    %v2728 = vmul.f32 %v2724, %v2724
    %v2729 = vmul.f32 %v2725, %v2725
    %v2730 = vmul.f32 %v2726, %v2726
    %v2731 = vadd.f32 %v2727, %v2728
    %2732 = vadd.xlane.f32.xlu0 %v2731
    %v2733 = vpop.xlane.xlu0 %2732
    %v2734 = vadd.f32 %v2729, %v2730
    %2735 = vadd.xlane.f32.xlu0 %v2734
    %v2736 = vpop.xlane.xlu0 %2735
    %v2737 = vmul.f32 %v2733, %v2720
    %v2738 = vmul.f32 %v2736, %v2720
    %v2739 = vadd.f32 %v2737, 1e-05
    %v2740 = vadd.f32 %v2738, 1e-05
    %v2741 = vrsqrt.pop %v2739
    %v2742 = vrsqrt.pop %v2740
    %v2743 = vmul.f32 %v2723, %v2741
    %v2744 = vmul.f32 %v2724, %v2741
    %v2745 = vmul.f32 %v2725, %v2742
    %v2746 = vmul.f32 %v2726, %v2742
    %v2747 = vmax.f32 %v2743, 0.0
    %v2748 = vmax.f32 %v2744, 0.0
    %v2749 = vmax.f32 %v2745, 0.0
    %v2750 = vmax.f32 %v2746, 0.0
    %v2751 = vpack.c.bf16 %v2749, %v2747
    %v2752 = vpack.c.bf16 %v2750, %v2748
    %v2753 = vld [vmem:[#allocation8] sm:$0xf]
    %v2754 = vld [vmem:[#allocation8 + $0x4] sm:$0xf]
    %v2755 = vld [vmem:[#allocation8 + $0x8] sm:$0xf]
    %v2756 = vld [vmem:[#allocation8 + $0xc] sm:$0xf]
    %v2757 = vld [vmem:[#allocation8 + $0x10] sm:$0xf]
    %v2758 = vld [vmem:[#allocation8 + $0x14] sm:$0xf]
    %v2759 = vld [vmem:[#allocation8 + $0x18] sm:$0xf]
    %v2760 = vld [vmem:[#allocation8 + $0x1c] sm:$0xf]
    %v2761 = vld [vmem:[#allocation8 + $0x20] sm:$0xf]
    %v2762 = vld [vmem:[#allocation8 + $0x24] sm:$0xf]
    %v2763 = vld [vmem:[#allocation8 + $0x28] sm:$0xf]
    %v2764 = vld [vmem:[#allocation8 + $0x2c] sm:$0xf]
    %v2765 = vld [vmem:[#allocation8 + $0x30] sm:$0xf]
    %v2766 = vld [vmem:[#allocation8 + $0x34] sm:$0xf]
    %v2767 = vld [vmem:[#allocation8 + $0x38] sm:$0xf]
    %v2768 = vld [vmem:[#allocation8 + $0x3c] sm:$0xf]
    %v2769 = vld [vmem:[#allocation8 + $0x40] sm:$0xf]
    %v2770 = vld [vmem:[#allocation8 + $0x44] sm:$0xf]
    %v2771 = vld [vmem:[#allocation8 + $0x48] sm:$0xf]
    %v2772 = vld [vmem:[#allocation8 + $0x4c] sm:$0xf]
    %v2773 = vld [vmem:[#allocation8 + $0x50] sm:$0xf]
    %v2774 = vld [vmem:[#allocation8 + $0x54] sm:$0xf]
    %v2775 = vld [vmem:[#allocation8 + $0x58] sm:$0xf]
    %v2776 = vld [vmem:[#allocation8 + $0x5c] sm:$0xf]
    %v2777 = vld [vmem:[#allocation8 + $0x60] sm:$0xf]
    %v2778 = vld [vmem:[#allocation8 + $0x64] sm:$0xf]
    %v2779 = vld [vmem:[#allocation8 + $0x68] sm:$0xf]
    %v2780 = vld [vmem:[#allocation8 + $0x6c] sm:$0xf]
    %v2781 = vld [vmem:[#allocation8 + $0x70] sm:$0xf]
    %v2782 = vld [vmem:[#allocation8 + $0x74] sm:$0xf]
    %v2783 = vld [vmem:[#allocation8 + $0x78] sm:$0xf]
    %v2784 = vld [vmem:[#allocation8 + $0x7c] sm:$0xf]
    %v2785 = vld [vmem:[%s7] sm:$0x1]
    %v2787 = vlaneseq
    %v2788 = vshrl.u32 %v2787, 7
    %v2789 = vsub.s32 0, %v2788
    %v2790 = vrot.slane %v2785, %v2789
    %v2824 = vunpack.c.l.b16 %v2753
    %v2825 = vunpack.c.l.b16 %v2754
    %v2826 = vunpack.c.l.b16 %v2755
    %v2827 = vunpack.c.l.b16 %v2756
    %v2828 = vunpack.c.l.b16 %v2757
    %v2829 = vunpack.c.l.b16 %v2758
    %v2830 = vunpack.c.l.b16 %v2759
    %v2831 = vunpack.c.l.b16 %v2760
    %v2832 = vunpack.c.l.b16 %v2761
    %v2833 = vunpack.c.l.b16 %v2762
    %v2834 = vunpack.c.l.b16 %v2763
    %v2835 = vunpack.c.l.b16 %v2764
    %v2836 = vunpack.c.l.b16 %v2765
    %v2837 = vunpack.c.l.b16 %v2766
    %v2838 = vunpack.c.l.b16 %v2767
    %v2839 = vunpack.c.l.b16 %v2768
    %v2840 = vunpack.c.l.b16 %v2769
    %v2841 = vunpack.c.l.b16 %v2770
    %v2842 = vunpack.c.l.b16 %v2771
    %v2843 = vunpack.c.l.b16 %v2772
    %v2844 = vunpack.c.l.b16 %v2773
    %v2845 = vunpack.c.l.b16 %v2774
    %v2846 = vunpack.c.l.b16 %v2775
    %v2847 = vunpack.c.l.b16 %v2776
    %v2848 = vunpack.c.l.b16 %v2777
    %v2849 = vunpack.c.l.b16 %v2778
    %v2850 = vunpack.c.l.b16 %v2779
    %v2851 = vunpack.c.l.b16 %v2780
    %v2852 = vunpack.c.l.b16 %v2781
    %v2853 = vunpack.c.l.b16 %v2782
    %v2854 = vunpack.c.l.b16 %v2783
    %v2855 = vunpack.c.l.b16 %v2784
    %v2856 = vpack.c.b16 %v2825, %v2824
    %v2857 = vpack.c.b16 %v2827, %v2826
    %v2858 = vpack.c.b16 %v2829, %v2828
    %v2859 = vpack.c.b16 %v2831, %v2830
    %v2860 = vpack.c.b16 %v2833, %v2832
    %v2861 = vpack.c.b16 %v2835, %v2834
    %v2862 = vpack.c.b16 %v2837, %v2836
    %v2863 = vpack.c.b16 %v2839, %v2838
    %v2864 = vpack.c.b16 %v2841, %v2840
    %v2865 = vpack.c.b16 %v2843, %v2842
    %v2866 = vpack.c.b16 %v2845, %v2844
    %v2867 = vpack.c.b16 %v2847, %v2846
    %v2868 = vpack.c.b16 %v2849, %v2848
    %v2869 = vpack.c.b16 %v2851, %v2850
    %v2870 = vpack.c.b16 %v2853, %v2852
    %v2871 = vpack.c.b16 %v2855, %v2854
    %2888 = vmatprep.subr.bf16.mxu0 0
    %2889 = vmatpush1.bf16.msra.mxu0 %v2856
    %2890 = vmatprep.subr.bf16.mxu0 0
    %2891 = vmatpush1.bf16.msra.mxu0 %v2857
    %2892 = vmatprep.subr.bf16.mxu0 0
    %2893 = vmatpush1.bf16.msra.mxu0 %v2858
    %2894 = vmatprep.subr.bf16.mxu0 0
    %2895 = vmatpush1.bf16.msra.mxu0 %v2859
    %2896 = vmatprep.subr.bf16.mxu0 0
    %2897 = vmatpush1.bf16.msra.mxu0 %v2860
    %2898 = vmatprep.subr.bf16.mxu0 0
    %2899 = vmatpush1.bf16.msra.mxu0 %v2861
    %2900 = vmatprep.subr.bf16.mxu0 0
    %2901 = vmatpush1.bf16.msra.mxu0 %v2862
    %2902 = vmatprep.subr.bf16.mxu0 0
    %2903 = vmatpush1.bf16.msra.mxu0 %v2863
    %2904 = vmatprep.subr.bf16.mxu0 0
    %2905 = vmatpush1.bf16.msra.mxu0 %v2864
    %2906 = vmatprep.subr.bf16.mxu0 0
    %2907 = vmatpush1.bf16.msra.mxu0 %v2865
    %2908 = vmatprep.subr.bf16.mxu0 0
    %2909 = vmatpush1.bf16.msra.mxu0 %v2866
    %2910 = vmatprep.subr.bf16.mxu0 0
    %2911 = vmatpush1.bf16.msra.mxu0 %v2867
    %2912 = vmatprep.subr.bf16.mxu0 0
    %2913 = vmatpush1.bf16.msra.mxu0 %v2868
    %2914 = vmatprep.subr.bf16.mxu0 0
    %2915 = vmatpush1.bf16.msra.mxu0 %v2869
    %2916 = vmatprep.subr.bf16.mxu0 0
    %2917 = vmatpush1.bf16.msra.mxu0 %v2870
    %2918 = vmatprep.subr.bf16.mxu0 0
    %2919 = vmatpush1.bf16.msra.mxu0 %v2871
    %2920 = vmatprep.mubr.bf16.mxu0 %v2752
    %2921 = vmatmul.mubr.bf16.gmra.mrb[0].mxu0 %v2751
    %v2922 = vpop.f32.mrb[0].mxu0
    %v2923 = vadd.f32 %v2790, %v2922
    %v2924 = vpop.f32.mrb[0].mxu0
    %v2925 = vpop.f32.mrb[0].mxu0
    %v2926 = vadd.f32 %v2790, %v2925
    %v2927 = vpop.f32.mrb[0].mxu0
    %2928 = vdwg.mxu0
    %2929 = vadd.xlane.f32.xlu0 %v2923
    %v2930 = vpop.xlane.xlu0 %2929
    %2931 = vadd.xlane.f32.xlu0 %v2926
    %v2932 = vpop.xlane.xlu0 %2931
    %v2933 = vrcp.pop 128.0
    %v2934 = vmul.f32 %v2930, %v2933
    %v2935 = vmul.f32 %v2932, %v2933
    %v2936 = vsub.f32 %v2923, %v2934
    %v2937 = vsub.f32 %v2926, %v2935
    %v2938 = vmul.f32 %v2936, %v2936
    %v2939 = vmul.f32 %v2937, %v2937
    %2940 = vadd.xlane.f32.xlu0 %v2938
    %v2941 = vpop.xlane.xlu0 %2940
    %2942 = vadd.xlane.f32.xlu0 %v2939
    %v2943 = vpop.xlane.xlu0 %2942
    %v2944 = vmul.f32 %v2941, %v2933
    %v2945 = vmul.f32 %v2943, %v2933
    %v2946 = vadd.f32 %v2944, 1e-05
    %v2947 = vadd.f32 %v2945, 1e-05
    %v2948 = vrsqrt.pop %v2946
    %v2949 = vrsqrt.pop %v2947
    %v2950 = vmul.f32 %v2936, %v2948
    %v2951 = vmul.f32 %v2937, %v2949
    %v2952 = vmax.f32 %v2950, 0.0
    %v2953 = vmax.f32 %v2951, 0.0
    %v2954 = vpack.c.bf16 %v2953, %v2952
    %v2955 = vld [vmem:[#allocation10] sm:$0xf]
    %v2956 = vld [vmem:[#allocation10 + $0x4] sm:$0xf]
    %v2957 = vld [vmem:[#allocation10 + $0x8] sm:$0xf]
    %v2958 = vld [vmem:[#allocation10 + $0xc] sm:$0xf]
    %v2959 = vld [vmem:[#allocation10 + $0x10] sm:$0xf]
    %v2960 = vld [vmem:[#allocation10 + $0x14] sm:$0xf]
    %v2961 = vld [vmem:[#allocation10 + $0x18] sm:$0xf]
    %v2962 = vld [vmem:[#allocation10 + $0x1c] sm:$0xf]
    %v2963 = vld [vmem:[#allocation10 + $0x20] sm:$0xf]
    %v2964 = vld [vmem:[#allocation10 + $0x24] sm:$0xf]
    %v2965 = vld [vmem:[#allocation10 + $0x28] sm:$0xf]
    %v2966 = vld [vmem:[#allocation10 + $0x2c] sm:$0xf]
    %v2967 = vld [vmem:[#allocation10 + $0x30] sm:$0xf]
    %v2968 = vld [vmem:[#allocation10 + $0x34] sm:$0xf]
    %v2969 = vld [vmem:[#allocation10 + $0x38] sm:$0xf]
    %v2970 = vld [vmem:[#allocation10 + $0x3c] sm:$0xf]
    %v2971 = vld [vmem:[%s9] sm:$0x1]
    %v2973 = vlaneseq
    %v2974 = vshrl.u32 %v2973, 7
    %v2975 = vsub.s32 0, %v2974
    %v2976 = vrot.slane %v2971, %v2975
    %v2994 = vunpack.c.l.b16 %v2955
    %v2995 = vunpack.c.l.b16 %v2956
    %v2996 = vunpack.c.l.b16 %v2957
    %v2997 = vunpack.c.l.b16 %v2958
    %v2998 = vunpack.c.l.b16 %v2959
    %v2999 = vunpack.c.l.b16 %v2960
    %v3000 = vunpack.c.l.b16 %v2961
    %v3001 = vunpack.c.l.b16 %v2962
    %v3002 = vunpack.c.l.b16 %v2963
    %v3003 = vunpack.c.l.b16 %v2964
    %v3004 = vunpack.c.l.b16 %v2965
    %v3005 = vunpack.c.l.b16 %v2966
    %v3006 = vunpack.c.l.b16 %v2967
    %v3007 = vunpack.c.l.b16 %v2968
    %v3008 = vunpack.c.l.b16 %v2969
    %v3009 = vunpack.c.l.b16 %v2970
    %v3010 = vpack.c.b16 %v2995, %v2994
    %v3011 = vpack.c.b16 %v2997, %v2996
    %v3012 = vpack.c.b16 %v2999, %v2998
    %v3013 = vpack.c.b16 %v3001, %v3000
    %v3014 = vpack.c.b16 %v3003, %v3002
    %v3015 = vpack.c.b16 %v3005, %v3004
    %v3016 = vpack.c.b16 %v3007, %v3006
    %v3017 = vpack.c.b16 %v3009, %v3008
    %3026 = vmatprep.subr.bf16.mxu0 0
    %3027 = vmatpush1.bf16.msra.mxu0 %v3010
    %3028 = vmatprep.subr.bf16.mxu0 0
    %3029 = vmatpush1.bf16.msra.mxu0 %v3011
    %3030 = vmatprep.subr.bf16.mxu0 0
    %3031 = vmatpush1.bf16.msra.mxu0 %v3012
    %3032 = vmatprep.subr.bf16.mxu0 0
    %3033 = vmatpush1.bf16.msra.mxu0 %v3013
    %3034 = vmatprep.subr.bf16.mxu0 0
    %3035 = vmatpush1.bf16.msra.mxu0 %v3014
    %3036 = vmatprep.subr.bf16.mxu0 0
    %3037 = vmatpush1.bf16.msra.mxu0 %v3015
    %3038 = vmatprep.subr.bf16.mxu0 0
    %3039 = vmatpush1.bf16.msra.mxu0 %v3016
    %3040 = vmatprep.subr.bf16.mxu0 0
    %3041 = vmatpush1.bf16.msra.mxu0 %v3017
    %3042 = vmatprep.subr.bf16.mxu0 0
    %3043 = vmatpush1.bf16.msra.mxu0 0
    %3044 = vmatprep.subr.bf16.mxu0 0
    %3045 = vmatpush1.bf16.msra.mxu0 0
    %3046 = vmatprep.subr.bf16.mxu0 0
    %3047 = vmatpush1.bf16.msra.mxu0 0
    %3048 = vmatprep.subr.bf16.mxu0 0
    %3049 = vmatpush1.bf16.msra.mxu0 0
    %3050 = vmatprep.subr.bf16.mxu0 0
    %3051 = vmatpush1.bf16.msra.mxu0 0
    %3052 = vmatprep.subr.bf16.mxu0 0
    %3053 = vmatpush1.bf16.msra.mxu0 0
    %3054 = vmatprep.subr.bf16.mxu0 0
    %3055 = vmatpush1.bf16.msra.mxu0 0
    %3056 = vmatprep.subr.bf16.mxu0 0
    %3057 = vmatpush1.bf16.msra.mxu0 0
    %3058 = vmatprep.mubr.bf16.mxu0 0
    %3059 = vmatmul.mubr.bf16.gmra.mrb[0].mxu0 %v2954
    %v3060 = vpop.f32.mrb[0].mxu0
    %v3061 = vadd.f32 %v2976, %v3060
    %v3062 = vpop.f32.mrb[0].mxu0
    %v3063 = vpop.f32.mrb[0].mxu0
    %v3064 = vadd.f32 %v2976, %v3063
    %v3065 = vpop.f32.mrb[0].mxu0
    %3066 = vdwg.mxu0
    %v3067 = vxor.u32 %v3061, 2147483648
    %v3068 = vxor.u32 %v3064, 2147483648
    %v3069 = vmul.f32 %v3067, 1.442695
    %v3070 = vpow.pop %v3069
    %v3071 = vmul.f32 %v3068, 1.442695
    %v3072 = vpow.pop %v3071
    %v3073 = vadd.f32 %v3070, 1.0
    %v3074 = vadd.f32 %v3072, 1.0
    %v3075 = vrcp.pop %v3073
    %v3076 = vmul.f32 1.0, %v3075
    %v3077 = vrcp.pop %v3074
    %v3078 = vmul.f32 1.0, %v3077
    %3079 = vst [vmem:[#allocation11] sm:$0xff] %v3076
    %3080 = vst [vmem:[#allocation11 + $0x8] sm:$0xff] %v3078
    // Predicated region
    $region62: #{tpu_custom_call.1} parent=1 // pred_check
      _
    $region63: #{tpu_custom_call.1} parent=1 // pred_check_branch
      %3082 = sbr.rel (0) target = $region65
    $region64: #{tpu_custom_call.1} parent=1 // pred_region
      %s3084 = ssub.s32 256, 256
      %3085 = vsyncadd [#allocation4], %s3084
      %s3086 = sshll.u32 [#allocation11], 4
      %s3087 = int_to_ptr.vmem [resolvable:$true] %s3086
      %3092 = dma.vmem_to_hbm [thread:$0]  %s3087, 256, %s10, [#allocation4], 128, 128, 8
    $region65: #{tpu_custom_call.1} parent=1 // pred_fallthru
      _
    // Predicated region
    $region66: #{tpu_custom_call.1} parent=1 // pred_check
      _
    $region67: #{tpu_custom_call.1} parent=1 // pred_check_branch
      %3094 = sbr.rel (0) target = $region69
    $region68: #{tpu_custom_call.1} parent=1 // pred_region
      %3095 = dma.done [#allocation4], 256
    $region69: #{tpu_custom_call.1} parent=1 // pred_fallthru
      _
    %3096 = vsyncpa [#allocation3], 1
    %3097 = vsyncpa [#allocation6], 1
    %3098 = vsyncpa [#allocation9], 1
    %3099 = vsyncpa [#allocation4], 1

// kernel: tpu_custom_call.1
$region0: #{tpu_custom_call.1}
  #allocation0 [shape = 'u32[]', space=smem, size = 0x4, offset = 0x4, fixed_abs, tag = 'smem constant byte address 0x4 - core index']
  #allocation1 [shape = 'u32[144,128]{1,0:T(1,128)}', space=vmem, size = 0x12000, scoped, tag = 'internal scratch']
  %s0 = inlined_call_operand.hbm [shape: f32[16,1024], index: 0, kind: input, shape index: {}]
  %s1 = inlined_call_operand.hbm [shape: bf16[1024,512], index: 1, kind: input, shape index: {}]
  %s2 = inlined_call_operand.vmem [shape: f32[1,512], index: 2, kind: input, shape index: {}]
  %s3 = inlined_call_operand.vmem [shape: f32[1,512], index: 3, kind: input, shape index: {}]
  %s4 = inlined_call_operand.hbm [shape: bf16[512,256], index: 4, kind: input, shape index: {}]
  %s5 = inlined_call_operand.vmem [shape: f32[1,256], index: 5, kind: input, shape index: {}]
  %s6 = inlined_call_operand.hbm [shape: bf16[256,128], index: 6, kind: input, shape index: {}]
  %s7 = inlined_call_operand.vmem [shape: f32[1,128], index: 7, kind: input, shape index: {}]
  %s8 = inlined_call_operand.hbm [shape: bf16[128,128], index: 8, kind: input, shape index: {}]
  %s9 = inlined_call_operand.vmem [shape: f32[1,128], index: 9, kind: input, shape index: {}]
  %s10 = inlined_call_operand.hbm [shape: f32[16,128], index: 10, kind: output, shape index: {}]
  %s11 = sld [smem:[#allocation0]]
  $region70: #{tpu_custom_call.1} parent=0
    _
  %s13 = ssub.s32 1, %s11
  %s14 = scalar_select 0, %s13, %s11
  $region1: #{tpu_custom_call.1} parent=0
    #allocation2 [shape = 'u8[65536]{0}', space=vmem, size = 0x10000, scoped, tag = 'input window, operand 0, single buffered']
    #allocation3 [shape = 's32[1]{0}', space=sflag, size = 0x4, scoped, tag = 'scoped memory for tpu_custom_call.1']
    #allocation4 [shape = 's32[1]{0}', space=sflag, size = 0x4, scoped, tag = 'scoped memory for tpu_custom_call.1']
    #allocation5 [shape = 'u8[1048576]{0}', space=vmem, size = 0x100000, scoped, tag = 'input window, operand 1, single buffered']
    #allocation6 [shape = 's32[1]{0}', space=sflag, size = 0x4, scoped, tag = 'scoped memory for tpu_custom_call.1']
    #allocation7 [shape = 'u8[262144]{0}', space=vmem, size = 0x40000, scoped, tag = 'input window, operand 4, single buffered']
    #allocation8 [shape = 'u8[65536]{0}', space=vmem, size = 0x10000, scoped, tag = 'input window, operand 6, single buffered']
    #allocation9 [shape = 's32[1]{0}', space=sflag, size = 0x4, scoped, tag = 'scoped memory for tpu_custom_call.1']
    #allocation10 [shape = 'u8[32768]{0}', space=vmem, size = 0x8000, scoped, tag = 'input window, operand 8, single buffered']
    #allocation11 [shape = 'u8[8192]{0}', space=vmem, size = 0x2000, scoped, tag = 'output window, operand 0, single buffered']
    %15 = vsyncpa [#allocation3], 0
    %16 = vsyncpa [#allocation6], 0
    %17 = vsyncpa [#allocation9], 0
    %18 = vsyncpa [#allocation4], 0
    // Predicated region
    $region2: #{tpu_custom_call.1} parent=1 // pred_check
      _
    $region3: #{tpu_custom_call.1} parent=1 // pred_check_branch
      %20 = sbr.rel (0) target = $region5
    $region4: #{tpu_custom_call.1} parent=1 // pred_region
      %s22 = ssub.s32 2048, 2048
      %23 = vsyncadd [#allocation3], %s22
      %s24 = sshll.u32 [#allocation2], 4
      %s25 = int_to_ptr.vmem [resolvable:$true] %s24
      %30 = dma.hbm_to_vmem [thread:$0]  %s0, 2048, %s25, [#allocation3], 1024, 1024, 64
    $region5: #{tpu_custom_call.1} parent=1 // pred_fallthru
      _
    // Predicated region
    $region6: #{tpu_custom_call.1} parent=1 // pred_check
      _
    $region7: #{tpu_custom_call.1} parent=1 // pred_check_branch
      %32 = sbr.rel (0) target = $region9
    $region8: #{tpu_custom_call.1} parent=1 // pred_region
      %s34 = ssub.s32 32768, 32768
      %35 = vsyncadd [#allocation6], %s34
      %s36 = sshll.u32 [#allocation5], 4
      %s37 = int_to_ptr.vmem [resolvable:$true] %s36
      %42 = dma.hbm_to_vmem [thread:$0]  %s1, 32768, %s37, [#allocation6], 256, 256, 16
    $region9: #{tpu_custom_call.1} parent=1 // pred_fallthru
      _
    // Predicated region
    $region10: #{tpu_custom_call.1} parent=1 // pred_check
      _
    $region11: #{tpu_custom_call.1} parent=1 // pred_check_branch
      %44 = sbr.rel (0) target = $region13
    $region12: #{tpu_custom_call.1} parent=1 // pred_region
      _
    $region13: #{tpu_custom_call.1} parent=1 // pred_fallthru
      _
    // Predicated region
    $region14: #{tpu_custom_call.1} parent=1 // pred_check
      _
    $region15: #{tpu_custom_call.1} parent=1 // pred_check_branch
      %46 = sbr.rel (0) target = $region17
    $region16: #{tpu_custom_call.1} parent=1 // pred_region
      _
    $region17: #{tpu_custom_call.1} parent=1 // pred_fallthru
      _
    // Predicated region
    $region18: #{tpu_custom_call.1} parent=1 // pred_check
      _
    $region19: #{tpu_custom_call.1} parent=1 // pred_check_branch
      %48 = sbr.rel (0) target = $region21
    $region20: #{tpu_custom_call.1} parent=1 // pred_region
      %s50 = ssub.s32 8192, 8192
      %51 = vsyncadd [#allocation6], %s50
      %s52 = sshll.u32 [#allocation7], 4
      %s53 = int_to_ptr.vmem [resolvable:$true] %s52
      %58 = dma.hbm_to_vmem [thread:$0]  %s4, 8192, %s53, [#allocation6], 128, 128, 8
    $region21: #{tpu_custom_call.1} parent=1 // pred_fallthru
      _
    // Predicated region
    $region22: #{tpu_custom_call.1} parent=1 // pred_check
      _
    $region23: #{tpu_custom_call.1} parent=1 // pred_check_branch
      %60 = sbr.rel (0) target = $region25
    $region24: #{tpu_custom_call.1} parent=1 // pred_region
      _
    $region25: #{tpu_custom_call.1} parent=1 // pred_fallthru
      _
    // Predicated region
    $region26: #{tpu_custom_call.1} parent=1 // pred_check
      _
    $region27: #{tpu_custom_call.1} parent=1 // pred_check_branch
      %62 = sbr.rel (0) target = $region29
    $region28: #{tpu_custom_call.1} parent=1 // pred_region
      %s64 = ssub.s32 2048, 2048
      %65 = vsyncadd [#allocation9], %s64
      %s66 = sshll.u32 [#allocation8], 4
      %s67 = int_to_ptr.vmem [resolvable:$true] %s66
      %72 = dma.hbm_to_vmem [thread:$0]  %s6, 2048, %s67, [#allocation9], 64, 64, 4
    $region29: #{tpu_custom_call.1} parent=1 // pred_fallthru
      _
    // Predicated region
    $region30: #{tpu_custom_call.1} parent=1 // pred_check
      _
    $region31: #{tpu_custom_call.1} parent=1 // pred_check_branch
      %74 = sbr.rel (0) target = $region33
    $region32: #{tpu_custom_call.1} parent=1 // pred_region
      _
    $region33: #{tpu_custom_call.1} parent=1 // pred_fallthru
      _
    // Predicated region
    $region34: #{tpu_custom_call.1} parent=1 // pred_check
      _
    $region35: #{tpu_custom_call.1} parent=1 // pred_check_branch
      %76 = sbr.rel (0) target = $region37
    $region36: #{tpu_custom_call.1} parent=1 // pred_region
      %s78 = ssub.s32 1024, 1024
      %79 = vsyncadd [#allocation9], %s78
      %s80 = sshll.u32 [#allocation10], 4
      %s81 = int_to_ptr.vmem [resolvable:$true] %s80
      %86 = dma.hbm_to_vmem [thread:$0]  %s8, 1024, %s81, [#allocation9], 64, 64, 4
    $region37: #{tpu_custom_call.1} parent=1 // pred_fallthru
      _
    // Predicated region
    $region38: #{tpu_custom_call.1} parent=1 // pred_check
      _
    $region39: #{tpu_custom_call.1} parent=1 // pred_check_branch
      %88 = sbr.rel (0) target = $region41
    $region40: #{tpu_custom_call.1} parent=1 // pred_region
      _
    $region41: #{tpu_custom_call.1} parent=1 // pred_fallthru
      _
    // Predicated region
    $region42: #{tpu_custom_call.1} parent=1 // pred_check
      _
    $region43: #{tpu_custom_call.1} parent=1 // pred_check_branch
      %90 = sbr.rel (0) target = $region45
    $region44: #{tpu_custom_call.1} parent=1 // pred_region
      %91 = dma.done [#allocation3], 2048
    $region45: #{tpu_custom_call.1} parent=1 // pred_fallthru
      _
    // Predicated region
    $region46: #{tpu_custom_call.1} parent=1 // pred_check
      _
    $region47: #{tpu_custom_call.1} parent=1 // pred_check_branch
      %93 = sbr.rel (0) target = $region49
    $region48: #{tpu_custom_call.1} parent=1 // pred_region
      %94 = dma.done [#allocation6], 32768
    $region49: #{tpu_custom_call.1} parent=1 // pred_fallthru
      _
    // Predicated region
    $region50: #{tpu_custom_call.1} parent=1 // pred_check
      _
    $region51: #{tpu_custom_call.1} parent=1 // pred_check_branch
      %96 = sbr.rel (0) target = $region53
    $region52: #{tpu_custom_call.1} parent=1 // pred_region
      %97 = dma.done [#allocation6], 8192
    $region53: #{tpu_custom_call.1} parent=1 // pred_fallthru
      _
    // Predicated region
    $region54: #{tpu_custom_call.1} parent=1 // pred_check
      _
    $region55: #{tpu_custom_call.1} parent=1 // pred_check_branch
      %99 = sbr.rel (0) target = $region57
    $region56: #{tpu_custom_call.1} parent=1 // pred_region
      %100 = dma.done [#allocation9], 2048
    $region57: #{tpu_custom_call.1} parent=1 // pred_fallthru
      _
    // Predicated region
    $region58: #{tpu_custom_call.1} parent=1 // pred_check
      _
    $region59: #{tpu_custom_call.1} parent=1 // pred_check_branch
      %102 = sbr.rel (0) target = $region61
    $region60: #{tpu_custom_call.1} parent=1 // pred_region
      %103 = dma.done [#allocation9], 1024
    $region61: #{tpu_custom_call.1} parent=1 // pred_fallthru
      _
    %v105 = vld [vmem:[#allocation2] sm:$0xff]
    %v106 = vld [vmem:[#allocation2 + $0x8] sm:$0xff]
    %v107 = vld [vmem:[#allocation2 + $0x10] sm:$0xff]
    %v108 = vld [vmem:[#allocation2 + $0x18] sm:$0xff]
    %v109 = vld [vmem:[#allocation2 + $0x20] sm:$0xff]
    %v110 = vld [vmem:[#allocation2 + $0x28] sm:$0xff]
    %v111 = vld [vmem:[#allocation2 + $0x30] sm:$0xff]
    %v112 = vld [vmem:[#allocation2 + $0x38] sm:$0xff]
    %v113 = vld [vmem:[#allocation2 + $0x40] sm:$0xff]
    %v114 = vld [vmem:[#allocation2 + $0x48] sm:$0xff]
    %v115 = vld [vmem:[#allocation2 + $0x50] sm:$0xff]
    %v116 = vld [vmem:[#allocation2 + $0x58] sm:$0xff]
    %v117 = vld [vmem:[#allocation2 + $0x60] sm:$0xff]
    %v118 = vld [vmem:[#allocation2 + $0x68] sm:$0xff]
    %v119 = vld [vmem:[#allocation2 + $0x70] sm:$0xff]
    %v120 = vld [vmem:[#allocation2 + $0x78] sm:$0xff]
    %v121 = vadd.f32 %v105, %v106
    %v122 = vadd.f32 %v121, %v107
    %v123 = vadd.f32 %v122, %v108
    %v124 = vadd.f32 %v123, %v109
    %v125 = vadd.f32 %v124, %v110
    %v126 = vadd.f32 %v125, %v111
    %v127 = vadd.f32 %v126, %v112
    %128 = vadd.xlane.f32.xlu0 %v127
    %v129 = vpop.xlane.xlu0 %128
    %v130 = vadd.f32 %v113, %v114
    %v131 = vadd.f32 %v130, %v115
    %v132 = vadd.f32 %v131, %v116
    %v133 = vadd.f32 %v132, %v117
    %v134 = vadd.f32 %v133, %v118
    %v135 = vadd.f32 %v134, %v119
    %v136 = vadd.f32 %v135, %v120
    %137 = vadd.xlane.f32.xlu0 %v136
    %v138 = vpop.xlane.xlu0 %137
    %v139 = vmul.f32 %v105, %v105
    %v140 = vmul.f32 %v106, %v106
    %v141 = vmul.f32 %v107, %v107
    %v142 = vmul.f32 %v108, %v108
    %v143 = vmul.f32 %v109, %v109
    %v144 = vmul.f32 %v110, %v110
    %v145 = vmul.f32 %v111, %v111
    %v146 = vmul.f32 %v112, %v112
    %v147 = vmul.f32 %v113, %v113
    %v148 = vmul.f32 %v114, %v114
    %v149 = vmul.f32 %v115, %v115
    %v150 = vmul.f32 %v116, %v116
    %v151 = vmul.f32 %v117, %v117
    %v152 = vmul.f32 %v118, %v118
    %v153 = vmul.f32 %v119, %v119
    %v154 = vmul.f32 %v120, %v120
    %v155 = vadd.f32 %v139, %v140
    %v156 = vadd.f32 %v155, %v141
    %v157 = vadd.f32 %v156, %v142
    %v158 = vadd.f32 %v157, %v143
    %v159 = vadd.f32 %v158, %v144
    %v160 = vadd.f32 %v159, %v145
    %v161 = vadd.f32 %v160, %v146
    %162 = vadd.xlane.f32.xlu0 %v161
    %v163 = vpop.xlane.xlu0 %162
    %v164 = vadd.f32 %v147, %v148
    %v165 = vadd.f32 %v164, %v149
    %v166 = vadd.f32 %v165, %v150
    %v167 = vadd.f32 %v166, %v151
    %v168 = vadd.f32 %v167, %v152
    %v169 = vadd.f32 %v168, %v153
    %v170 = vadd.f32 %v169, %v154
    %171 = vadd.xlane.f32.xlu0 %v170
    %v172 = vpop.xlane.xlu0 %171
    %v173 = vmul.f32 %v129, 0.0009765625
    %v174 = vmul.f32 %v138, 0.0009765625
    %v175 = vmul.f32 %v173, 1024.0
    %v176 = vmul.f32 %v174, 1024.0
    %v177 = vmul.f32 %v175, %v173
    %v178 = vmul.f32 %v176, %v174
    %v179 = vsub.f32 %v163, %v177
    %v180 = vsub.f32 %v172, %v178
    %v181 = vmul.f32 %v179, 0.0009775171
    %v182 = vmul.f32 %v180, 0.0009775171
    %v183 = vmax.f32 %v181, 0.0
    %v184 = vmax.f32 %v182, 0.0
    %v185 = vrsqrt.pop %v183
    %v186 = vmul.f32 %v183, %v185
    %vm187 = vcmp.eq.f32.partialorder %v183, inf
    %v188 = vsel %vm187, %v183, %v186
    %vm189 = vcmp.eq.f32.partialorder %v183, 0.0
    %v190 = vand.u32 %v183, 2147483648
    %v191 = vsel %vm189, %v190, %v188
    %v192 = vrsqrt.pop %v184
    %v193 = vmul.f32 %v184, %v192
    %vm194 = vcmp.eq.f32.partialorder %v184, inf
    %v195 = vsel %vm194, %v184, %v193
    %vm196 = vcmp.eq.f32.partialorder %v184, 0.0
    %v197 = vand.u32 %v184, 2147483648
    %v198 = vsel %vm196, %v197, %v195
    %v199 = vadd.f32 %v191, 1e-08
    %v200 = vadd.f32 %v198, 1e-08
    %v201 = vrcp.pop %v199
    %v202 = vrcp.pop %v200
    %v203 = vpack.c.bf16 %v113, %v105
    %v204 = vpack.c.bf16 %v114, %v106
    %v205 = vpack.c.bf16 %v115, %v107
    %v206 = vpack.c.bf16 %v116, %v108
    %v207 = vpack.c.bf16 %v117, %v109
    %v208 = vpack.c.bf16 %v118, %v110
    %v209 = vpack.c.bf16 %v119, %v111
    %v210 = vpack.c.bf16 %v120, %v112
    %v211 = vld [vmem:[#allocation5] sm:$0xff]
    %v212 = vld [vmem:[#allocation5 + $0x8] sm:$0xff]
    %v213 = vld [vmem:[#allocation5 + $0x10] sm:$0xff]
    %v214 = vld [vmem:[#allocation5 + $0x18] sm:$0xff]
    %v215 = vld [vmem:[#allocation5 + $0x20] sm:$0xff]
    %v216 = vld [vmem:[#allocation5 + $0x28] sm:$0xff]
    %v217 = vld [vmem:[#allocation5 + $0x30] sm:$0xff]
    %v218 = vld [vmem:[#allocation5 + $0x38] sm:$0xff]
    %v219 = vld [vmem:[#allocation5 + $0x40] sm:$0xff]
    %v220 = vld [vmem:[#allocation5 + $0x48] sm:$0xff]
    %v221 = vld [vmem:[#allocation5 + $0x50] sm:$0xff]
    %v222 = vld [vmem:[#allocation5 + $0x58] sm:$0xff]
    %v223 = vld [vmem:[#allocation5 + $0x60] sm:$0xff]
    %v224 = vld [vmem:[#allocation5 + $0x68] sm:$0xff]
    %v225 = vld [vmem:[#allocation5 + $0x70] sm:$0xff]
    %v226 = vld [vmem:[#allocation5 + $0x78] sm:$0xff]
    %v227 = vld [vmem:[#allocation5 + $0x80] sm:$0xff]
    %v228 = vld [vmem:[#allocation5 + $0x88] sm:$0xff]
    %v229 = vld [vmem:[#allocation5 + $0x90] sm:$0xff]
    %v230 = vld [vmem:[#allocation5 + $0x98] sm:$0xff]
    %v231 = vld [vmem:[#allocation5 + $0xa0] sm:$0xff]
    %v232 = vld [vmem:[#allocation5 + $0xa8] sm:$0xff]
    %v233 = vld [vmem:[#allocation5 + $0xb0] sm:$0xff]
    %v234 = vld [vmem:[#allocation5 + $0xb8] sm:$0xff]
    %v235 = vld [vmem:[#allocation5 + $0xc0] sm:$0xff]
    %v236 = vld [vmem:[#allocation5 + $0xc8] sm:$0xff]
    %v237 = vld [vmem:[#allocation5 + $0xd0] sm:$0xff]
    %v238 = vld [vmem:[#allocation5 + $0xd8] sm:$0xff]
    %v239 = vld [vmem:[#allocation5 + $0xe0] sm:$0xff]
    %v240 = vld [vmem:[#allocation5 + $0xe8] sm:$0xff]
    %v241 = vld [vmem:[#allocation5 + $0xf0] sm:$0xff]
    %v242 = vld [vmem:[#allocation5 + $0xf8] sm:$0xff]
    %v243 = vld [vmem:[#allocation5 + $0x100] sm:$0xff]
    %v244 = vld [vmem:[#allocation5 + $0x108] sm:$0xff]
    %v245 = vld [vmem:[#allocation5 + $0x110] sm:$0xff]
    %v246 = vld [vmem:[#allocation5 + $0x118] sm:$0xff]
    %v247 = vld [vmem:[#allocation5 + $0x120] sm:$0xff]
    %v248 = vld [vmem:[#allocation5 + $0x128] sm:$0xff]
    %v249 = vld [vmem:[#allocation5 + $0x130] sm:$0xff]
    %v250 = vld [vmem:[#allocation5 + $0x138] sm:$0xff]
    %v251 = vld [vmem:[#allocation5 + $0x140] sm:$0xff]
    %v252 = vld [vmem:[#allocation5 + $0x148] sm:$0xff]
    %v253 = vld [vmem:[#allocation5 + $0x150] sm:$0xff]
    %v254 = vld [vmem:[#allocation5 + $0x158] sm:$0xff]
    %v255 = vld [vmem:[#allocation5 + $0x160] sm:$0xff]
    %v256 = vld [vmem:[#allocation5 + $0x168] sm:$0xff]
    %v257 = vld [vmem:[#allocation5 + $0x170] sm:$0xff]
    %v258 = vld [vmem:[#allocation5 + $0x178] sm:$0xff]
    %v259 = vld [vmem:[#allocation5 + $0x180] sm:$0xff]
    %v260 = vld [vmem:[#allocation5 + $0x188] sm:$0xff]
    %v261 = vld [vmem:[#allocation5 + $0x190] sm:$0xff]
    %v262 = vld [vmem:[#allocation5 + $0x198] sm:$0xff]
    %v263 = vld [vmem:[#allocation5 + $0x1a0] sm:$0xff]
    %v264 = vld [vmem:[#allocation5 + $0x1a8] sm:$0xff]
    %v265 = vld [vmem:[#allocation5 + $0x1b0] sm:$0xff]
    %v266 = vld [vmem:[#allocation5 + $0x1b8] sm:$0xff]
    %v267 = vld [vmem:[#allocation5 + $0x1c0] sm:$0xff]
    %v268 = vld [vmem:[#allocation5 + $0x1c8] sm:$0xff]
    %v269 = vld [vmem:[#allocation5 + $0x1d0] sm:$0xff]
    %v270 = vld [vmem:[#allocation5 + $0x1d8] sm:$0xff]
    %v271 = vld [vmem:[#allocation5 + $0x1e0] sm:$0xff]
    %v272 = vld [vmem:[#allocation5 + $0x1e8] sm:$0xff]
    %v273 = vld [vmem:[#allocation5 + $0x1f0] sm:$0xff]
    %v274 = vld [vmem:[#allocation5 + $0x1f8] sm:$0xff]
    %v275 = vld [vmem:[#allocation5 + $0x200] sm:$0xff]
    %v276 = vld [vmem:[#allocation5 + $0x208] sm:$0xff]
    %v277 = vld [vmem:[#allocation5 + $0x210] sm:$0xff]
    %v278 = vld [vmem:[#allocation5 + $0x218] sm:$0xff]
    %v279 = vld [vmem:[#allocation5 + $0x220] sm:$0xff]
    %v280 = vld [vmem:[#allocation5 + $0x228] sm:$0xff]
    %v281 = vld [vmem:[#allocation5 + $0x230] sm:$0xff]
    %v282 = vld [vmem:[#allocation5 + $0x238] sm:$0xff]
    %v283 = vld [vmem:[#allocation5 + $0x240] sm:$0xff]
    %v284 = vld [vmem:[#allocation5 + $0x248] sm:$0xff]
    %v285 = vld [vmem:[#allocation5 + $0x250] sm:$0xff]
    %v286 = vld [vmem:[#allocation5 + $0x258] sm:$0xff]
    %v287 = vld [vmem:[#allocation5 + $0x260] sm:$0xff]
    %v288 = vld [vmem:[#allocation5 + $0x268] sm:$0xff]
    %v289 = vld [vmem:[#allocation5 + $0x270] sm:$0xff]
    %v290 = vld [vmem:[#allocation5 + $0x278] sm:$0xff]
    %v291 = vld [vmem:[#allocation5 + $0x280] sm:$0xff]
    %v292 = vld [vmem:[#allocation5 + $0x288] sm:$0xff]
    %v293 = vld [vmem:[#allocation5 + $0x290] sm:$0xff]
    %v294 = vld [vmem:[#allocation5 + $0x298] sm:$0xff]
    %v295 = vld [vmem:[#allocation5 + $0x2a0] sm:$0xff]
    %v296 = vld [vmem:[#allocation5 + $0x2a8] sm:$0xff]
    %v297 = vld [vmem:[#allocation5 + $0x2b0] sm:$0xff]
    %v298 = vld [vmem:[#allocation5 + $0x2b8] sm:$0xff]
    %v299 = vld [vmem:[#allocation5 + $0x2c0] sm:$0xff]
    %v300 = vld [vmem:[#allocation5 + $0x2c8] sm:$0xff]
    %v301 = vld [vmem:[#allocation5 + $0x2d0] sm:$0xff]
    %v302 = vld [vmem:[#allocation5 + $0x2d8] sm:$0xff]
    %v303 = vld [vmem:[#allocation5 + $0x2e0] sm:$0xff]
    %v304 = vld [vmem:[#allocation5 + $0x2e8] sm:$0xff]
    %v305 = vld [vmem:[#allocation5 + $0x2f0] sm:$0xff]
    %v306 = vld [vmem:[#allocation5 + $0x2f8] sm:$0xff]
    %v307 = vld [vmem:[#allocation5 + $0x300] sm:$0xff]
    %v308 = vld [vmem:[#allocation5 + $0x308] sm:$0xff]
    %v309 = vld [vmem:[#allocation5 + $0x310] sm:$0xff]
    %v310 = vld [vmem:[#allocation5 + $0x318] sm:$0xff]
    %v311 = vld [vmem:[#allocation5 + $0x320] sm:$0xff]
    %v312 = vld [vmem:[#allocation5 + $0x328] sm:$0xff]
    %v313 = vld [vmem:[#allocation5 + $0x330] sm:$0xff]
    %v314 = vld [vmem:[#allocation5 + $0x338] sm:$0xff]
    %v315 = vld [vmem:[#allocation5 + $0x340] sm:$0xff]
    %v316 = vld [vmem:[#allocation5 + $0x348] sm:$0xff]
    %v317 = vld [vmem:[#allocation5 + $0x350] sm:$0xff]
    %v318 = vld [vmem:[#allocation5 + $0x358] sm:$0xff]
    %v319 = vld [vmem:[#allocation5 + $0x360] sm:$0xff]
    %v320 = vld [vmem:[#allocation5 + $0x368] sm:$0xff]
    %v321 = vld [vmem:[#allocation5 + $0x370] sm:$0xff]
    %v322 = vld [vmem:[#allocation5 + $0x378] sm:$0xff]
    %v323 = vld [vmem:[#allocation5 + $0x380] sm:$0xff]
    %v324 = vld [vmem:[#allocation5 + $0x388] sm:$0xff]
    %v325 = vld [vmem:[#allocation5 + $0x390] sm:$0xff]
    %v326 = vld [vmem:[#allocation5 + $0x398] sm:$0xff]
    %v327 = vld [vmem:[#allocation5 + $0x3a0] sm:$0xff]
    %v328 = vld [vmem:[#allocation5 + $0x3a8] sm:$0xff]
    %v329 = vld [vmem:[#allocation5 + $0x3b0] sm:$0xff]
    %v330 = vld [vmem:[#allocation5 + $0x3b8] sm:$0xff]
    %v331 = vld [vmem:[#allocation5 + $0x3c0] sm:$0xff]
    %v332 = vld [vmem:[#allocation5 + $0x3c8] sm:$0xff]
    %v333 = vld [vmem:[#allocation5 + $0x3d0] sm:$0xff]
    %v334 = vld [vmem:[#allocation5 + $0x3d8] sm:$0xff]
    %v335 = vld [vmem:[#allocation5 + $0x3e0] sm:$0xff]
    %v336 = vld [vmem:[#allocation5 + $0x3e8] sm:$0xff]
    %v337 = vld [vmem:[#allocation5 + $0x3f0] sm:$0xff]
    %v338 = vld [vmem:[#allocation5 + $0x3f8] sm:$0xff]
    %v339 = vld [vmem:[#allocation5 + $0x400] sm:$0xff]
    %v340 = vld [vmem:[#allocation5 + $0x408] sm:$0xff]
    %v341 = vld [vmem:[#allocation5 + $0x410] sm:$0xff]
    %v342 = vld [vmem:[#allocation5 + $0x418] sm:$0xff]
    %v343 = vld [vmem:[#allocation5 + $0x420] sm:$0xff]
    %v344 = vld [vmem:[#allocation5 + $0x428] sm:$0xff]
    %v345 = vld [vmem:[#allocation5 + $0x430] sm:$0xff]
    %v346 = vld [vmem:[#allocation5 + $0x438] sm:$0xff]
    %v347 = vld [vmem:[#allocation5 + $0x440] sm:$0xff]
    %v348 = vld [vmem:[#allocation5 + $0x448] sm:$0xff]
    %v349 = vld [vmem:[#allocation5 + $0x450] sm:$0xff]
    %v350 = vld [vmem:[#allocation5 + $0x458] sm:$0xff]
    %v351 = vld [vmem:[#allocation5 + $0x460] sm:$0xff]
    %v352 = vld [vmem:[#allocation5 + $0x468] sm:$0xff]
    %v353 = vld [vmem:[#allocation5 + $0x470] sm:$0xff]
    %v354 = vld [vmem:[#allocation5 + $0x478] sm:$0xff]
    %v355 = vld [vmem:[#allocation5 + $0x480] sm:$0xff]
    %v356 = vld [vmem:[#allocation5 + $0x488] sm:$0xff]
    %v357 = vld [vmem:[#allocation5 + $0x490] sm:$0xff]
    %v358 = vld [vmem:[#allocation5 + $0x498] sm:$0xff]
    %v359 = vld [vmem:[#allocation5 + $0x4a0] sm:$0xff]
    %v360 = vld [vmem:[#allocation5 + $0x4a8] sm:$0xff]
    %v361 = vld [vmem:[#allocation5 + $0x4b0] sm:$0xff]
    %v362 = vld [vmem:[#allocation5 + $0x4b8] sm:$0xff]
    %v363 = vld [vmem:[#allocation5 + $0x4c0] sm:$0xff]
    %v364 = vld [vmem:[#allocation5 + $0x4c8] sm:$0xff]
    %v365 = vld [vmem:[#allocation5 + $0x4d0] sm:$0xff]
    %v366 = vld [vmem:[#allocation5 + $0x4d8] sm:$0xff]
    %v367 = vld [vmem:[#allocation5 + $0x4e0] sm:$0xff]
    %v368 = vld [vmem:[#allocation5 + $0x4e8] sm:$0xff]
    %v369 = vld [vmem:[#allocation5 + $0x4f0] sm:$0xff]
    %v370 = vld [vmem:[#allocation5 + $0x4f8] sm:$0xff]
    %v371 = vld [vmem:[#allocation5 + $0x500] sm:$0xff]
    %v372 = vld [vmem:[#allocation5 + $0x508] sm:$0xff]
    %v373 = vld [vmem:[#allocation5 + $0x510] sm:$0xff]
    %v374 = vld [vmem:[#allocation5 + $0x518] sm:$0xff]
    %v375 = vld [vmem:[#allocation5 + $0x520] sm:$0xff]
    %v376 = vld [vmem:[#allocation5 + $0x528] sm:$0xff]
    %v377 = vld [vmem:[#allocation5 + $0x530] sm:$0xff]
    %v378 = vld [vmem:[#allocation5 + $0x538] sm:$0xff]
    %v379 = vld [vmem:[#allocation5 + $0x540] sm:$0xff]
    %v380 = vld [vmem:[#allocation5 + $0x548] sm:$0xff]
    %v381 = vld [vmem:[#allocation5 + $0x550] sm:$0xff]
    %v382 = vld [vmem:[#allocation5 + $0x558] sm:$0xff]
    %v383 = vld [vmem:[#allocation5 + $0x560] sm:$0xff]
    %v384 = vld [vmem:[#allocation5 + $0x568] sm:$0xff]
    %v385 = vld [vmem:[#allocation5 + $0x570] sm:$0xff]
    %v386 = vld [vmem:[#allocation5 + $0x578] sm:$0xff]
    %v387 = vld [vmem:[#allocation5 + $0x580] sm:$0xff]
    %v388 = vld [vmem:[#allocation5 + $0x588] sm:$0xff]
    %v389 = vld [vmem:[#allocation5 + $0x590] sm:$0xff]
    %v390 = vld [vmem:[#allocation5 + $0x598] sm:$0xff]
    %v391 = vld [vmem:[#allocation5 + $0x5a0] sm:$0xff]
    %v392 = vld [vmem:[#allocation5 + $0x5a8] sm:$0xff]
    %v393 = vld [vmem:[#allocation5 + $0x5b0] sm:$0xff]
    %v394 = vld [vmem:[#allocation5 + $0x5b8] sm:$0xff]
    %v395 = vld [vmem:[#allocation5 + $0x5c0] sm:$0xff]
    %v396 = vld [vmem:[#allocation5 + $0x5c8] sm:$0xff]
    %v397 = vld [vmem:[#allocation5 + $0x5d0] sm:$0xff]
    %v398 = vld [vmem:[#allocation5 + $0x5d8] sm:$0xff]
    %v399 = vld [vmem:[#allocation5 + $0x5e0] sm:$0xff]
    %v400 = vld [vmem:[#allocation5 + $0x5e8] sm:$0xff]
    %v401 = vld [vmem:[#allocation5 + $0x5f0] sm:$0xff]
    %v402 = vld [vmem:[#allocation5 + $0x5f8] sm:$0xff]
    %v403 = vld [vmem:[#allocation5 + $0x600] sm:$0xff]
    %v404 = vld [vmem:[#allocation5 + $0x608] sm:$0xff]
    %v405 = vld [vmem:[#allocation5 + $0x610] sm:$0xff]
    %v406 = vld [vmem:[#allocation5 + $0x618] sm:$0xff]
    %v407 = vld [vmem:[#allocation5 + $0x620] sm:$0xff]
    %v408 = vld [vmem:[#allocation5 + $0x628] sm:$0xff]
    %v409 = vld [vmem:[#allocation5 + $0x630] sm:$0xff]
    %v410 = vld [vmem:[#allocation5 + $0x638] sm:$0xff]
    %v411 = vld [vmem:[#allocation5 + $0x640] sm:$0xff]
    %v412 = vld [vmem:[#allocation5 + $0x648] sm:$0xff]
    %v413 = vld [vmem:[#allocation5 + $0x650] sm:$0xff]
    %v414 = vld [vmem:[#allocation5 + $0x658] sm:$0xff]
    %v415 = vld [vmem:[#allocation5 + $0x660] sm:$0xff]
    %v416 = vld [vmem:[#allocation5 + $0x668] sm:$0xff]
    %v417 = vld [vmem:[#allocation5 + $0x670] sm:$0xff]
    %v418 = vld [vmem:[#allocation5 + $0x678] sm:$0xff]
    %v419 = vld [vmem:[#allocation5 + $0x680] sm:$0xff]
    %v420 = vld [vmem:[#allocation5 + $0x688] sm:$0xff]
    %v421 = vld [vmem:[#allocation5 + $0x690] sm:$0xff]
    %v422 = vld [vmem:[#allocation5 + $0x698] sm:$0xff]
    %v423 = vld [vmem:[#allocation5 + $0x6a0] sm:$0xff]
    %v424 = vld [vmem:[#allocation5 + $0x6a8] sm:$0xff]
    %v425 = vld [vmem:[#allocation5 + $0x6b0] sm:$0xff]
    %v426 = vld [vmem:[#allocation5 + $0x6b8] sm:$0xff]
    %v427 = vld [vmem:[#allocation5 + $0x6c0] sm:$0xff]
    %v428 = vld [vmem:[#allocation5 + $0x6c8] sm:$0xff]
    %v429 = vld [vmem:[#allocation5 + $0x6d0] sm:$0xff]
    %v430 = vld [vmem:[#allocation5 + $0x6d8] sm:$0xff]
    %v431 = vld [vmem:[#allocation5 + $0x6e0] sm:$0xff]
    %v432 = vld [vmem:[#allocation5 + $0x6e8] sm:$0xff]
    %v433 = vld [vmem:[#allocation5 + $0x6f0] sm:$0xff]
    %v434 = vld [vmem:[#allocation5 + $0x6f8] sm:$0xff]
    %v435 = vld [vmem:[#allocation5 + $0x700] sm:$0xff]
    %v436 = vld [vmem:[#allocation5 + $0x708] sm:$0xff]
    %v437 = vld [vmem:[#allocation5 + $0x710] sm:$0xff]
    %v438 = vld [vmem:[#allocation5 + $0x718] sm:$0xff]
    %v439 = vld [vmem:[#allocation5 + $0x720] sm:$0xff]
    %v440 = vld [vmem:[#allocation5 + $0x728] sm:$0xff]
    %v441 = vld [vmem:[#allocation5 + $0x730] sm:$0xff]
    %v442 = vld [vmem:[#allocation5 + $0x738] sm:$0xff]
    %v443 = vld [vmem:[#allocation5 + $0x740] sm:$0xff]
    %v444 = vld [vmem:[#allocation5 + $0x748] sm:$0xff]
    %v445 = vld [vmem:[#allocation5 + $0x750] sm:$0xff]
    %v446 = vld [vmem:[#allocation5 + $0x758] sm:$0xff]
    %v447 = vld [vmem:[#allocation5 + $0x760] sm:$0xff]
    %v448 = vld [vmem:[#allocation5 + $0x768] sm:$0xff]
    %v449 = vld [vmem:[#allocation5 + $0x770] sm:$0xff]
    %v450 = vld [vmem:[#allocation5 + $0x778] sm:$0xff]
    %v451 = vld [vmem:[#allocation5 + $0x780] sm:$0xff]
    %v452 = vld [vmem:[#allocation5 + $0x788] sm:$0xff]
    %v453 = vld [vmem:[#allocation5 + $0x790] sm:$0xff]
    %v454 = vld [vmem:[#allocation5 + $0x798] sm:$0xff]
    %v455 = vld [vmem:[#allocation5 + $0x7a0] sm:$0xff]
    %v456 = vld [vmem:[#allocation5 + $0x7a8] sm:$0xff]
    %v457 = vld [vmem:[#allocation5 + $0x7b0] sm:$0xff]
    %v458 = vld [vmem:[#allocation5 + $0x7b8] sm:$0xff]
    %v459 = vld [vmem:[#allocation5 + $0x7c0] sm:$0xff]
    %v460 = vld [vmem:[#allocation5 + $0x7c8] sm:$0xff]
    %v461 = vld [vmem:[#allocation5 + $0x7d0] sm:$0xff]
    %v462 = vld [vmem:[#allocation5 + $0x7d8] sm:$0xff]
    %v463 = vld [vmem:[#allocation5 + $0x7e0] sm:$0xff]
    %v464 = vld [vmem:[#allocation5 + $0x7e8] sm:$0xff]
    %v465 = vld [vmem:[#allocation5 + $0x7f0] sm:$0xff]
    %v466 = vld [vmem:[#allocation5 + $0x7f8] sm:$0xff]
    %v723 = vunpack.c.l.b16 %v211
    %v724 = vunpack.c.h.b16 %v211
    %v725 = vunpack.c.l.b16 %v212
    %v726 = vunpack.c.h.b16 %v212
    %v727 = vunpack.c.l.b16 %v213
    %v728 = vunpack.c.h.b16 %v213
    %v729 = vunpack.c.l.b16 %v214
    %v730 = vunpack.c.h.b16 %v214
    %v731 = vunpack.c.l.b16 %v215
    %v732 = vunpack.c.h.b16 %v215
    %v733 = vunpack.c.l.b16 %v216
    %v734 = vunpack.c.h.b16 %v216
    %v735 = vunpack.c.l.b16 %v217
    %v736 = vunpack.c.h.b16 %v217
    %v737 = vunpack.c.l.b16 %v218
    %v738 = vunpack.c.h.b16 %v218
    %v739 = vunpack.c.l.b16 %v219
    %v740 = vunpack.c.h.b16 %v219
    %v741 = vunpack.c.l.b16 %v220
    %v742 = vunpack.c.h.b16 %v220
    %v743 = vunpack.c.l.b16 %v221
    %v744 = vunpack.c.h.b16 %v221
    %v745 = vunpack.c.l.b16 %v222
    %v746 = vunpack.c.h.b16 %v222
    %v747 = vunpack.c.l.b16 %v223
    %v748 = vunpack.c.h.b16 %v223
    %v749 = vunpack.c.l.b16 %v224
    %v750 = vunpack.c.h.b16 %v224
    %v751 = vunpack.c.l.b16 %v225
    %v752 = vunpack.c.h.b16 %v225
    %v753 = vunpack.c.l.b16 %v226
    %v754 = vunpack.c.h.b16 %v226
    %v755 = vunpack.c.l.b16 %v227
    %v756 = vunpack.c.h.b16 %v227
    %v757 = vunpack.c.l.b16 %v228
    %v758 = vunpack.c.h.b16 %v228
    %v759 = vunpack.c.l.b16 %v229
    %v760 = vunpack.c.h.b16 %v229
    %v761 = vunpack.c.l.b16 %v230
    %v762 = vunpack.c.h.b16 %v230
    %v763 = vunpack.c.l.b16 %v231
    %v764 = vunpack.c.h.b16 %v231
    %v765 = vunpack.c.l.b16 %v232
    %v766 = vunpack.c.h.b16 %v232
    %v767 = vunpack.c.l.b16 %v233
    %v768 = vunpack.c.h.b16 %v233
    %v769 = vunpack.c.l.b16 %v234
    %v770 = vunpack.c.h.b16 %v234
    %v771 = vunpack.c.l.b16 %v235
    %v772 = vunpack.c.h.b16 %v235
    %v773 = vunpack.c.l.b16 %v236
    %v774 = vunpack.c.h.b16 %v236
    %v775 = vunpack.c.l.b16 %v237
    %v776 = vunpack.c.h.b16 %v237
    %v777 = vunpack.c.l.b16 %v238
    %v778 = vunpack.c.h.b16 %v238
    %v779 = vunpack.c.l.b16 %v239
    %v780 = vunpack.c.h.b16 %v239
    %v781 = vunpack.c.l.b16 %v240
    %v782 = vunpack.c.h.b16 %v240
    %v783 = vunpack.c.l.b16 %v241
    %v784 = vunpack.c.h.b16 %v241
    %v785 = vunpack.c.l.b16 %v242
    %v786 = vunpack.c.h.b16 %v242
    %v787 = vunpack.c.l.b16 %v243
    %v788 = vunpack.c.h.b16 %v243
    %v789 = vunpack.c.l.b16 %v244
    %v790 = vunpack.c.h.b16 %v244
    %v791 = vunpack.c.l.b16 %v245
    %v792 = vunpack.c.h.b16 %v245
    %v793 = vunpack.c.l.b16 %v246
    %v794 = vunpack.c.h.b16 %v246
    %v795 = vunpack.c.l.b16 %v247
    %v796 = vunpack.c.h.b16 %v247
    %v797 = vunpack.c.l.b16 %v248
    %v798 = vunpack.c.h.b16 %v248
    %v799 = vunpack.c.l.b16 %v249
    %v800 = vunpack.c.h.b16 %v249
    %v801 = vunpack.c.l.b16 %v250
    %v802 = vunpack.c.h.b16 %v250
    %v803 = vunpack.c.l.b16 %v251
    %v804 = vunpack.c.h.b16 %v251
    %v805 = vunpack.c.l.b16 %v252
    %v806 = vunpack.c.h.b16 %v252
    %v807 = vunpack.c.l.b16 %v253
    %v808 = vunpack.c.h.b16 %v253
    %v809 = vunpack.c.l.b16 %v254
    %v810 = vunpack.c.h.b16 %v254
    %v811 = vunpack.c.l.b16 %v255
    %v812 = vunpack.c.h.b16 %v255
    %v813 = vunpack.c.l.b16 %v256
    %v814 = vunpack.c.h.b16 %v256
    %v815 = vunpack.c.l.b16 %v257
    %v816 = vunpack.c.h.b16 %v257
    %v817 = vunpack.c.l.b16 %v258
    %v818 = vunpack.c.h.b16 %v258
    %v819 = vunpack.c.l.b16 %v259
    %v820 = vunpack.c.h.b16 %v259
    %v821 = vunpack.c.l.b16 %v260
    %v822 = vunpack.c.h.b16 %v260
    %v823 = vunpack.c.l.b16 %v261
    %v824 = vunpack.c.h.b16 %v261
    %v825 = vunpack.c.l.b16 %v262
    %v826 = vunpack.c.h.b16 %v262
    %v827 = vunpack.c.l.b16 %v263
    %v828 = vunpack.c.h.b16 %v263
    %v829 = vunpack.c.l.b16 %v264
    %v830 = vunpack.c.h.b16 %v264
    %v831 = vunpack.c.l.b16 %v265
    %v832 = vunpack.c.h.b16 %v265
    %v833 = vunpack.c.l.b16 %v266
    %v834 = vunpack.c.h.b16 %v266
    %v835 = vunpack.c.l.b16 %v267
    %v836 = vunpack.c.h.b16 %v267
    %v837 = vunpack.c.l.b16 %v268
    %v838 = vunpack.c.h.b16 %v268
    %v839 = vunpack.c.l.b16 %v269
    %v840 = vunpack.c.h.b16 %v269
    %v841 = vunpack.c.l.b16 %v270
    %v842 = vunpack.c.h.b16 %v270
    %v843 = vunpack.c.l.b16 %v271
    %v844 = vunpack.c.h.b16 %v271
    %v845 = vunpack.c.l.b16 %v272
    %v846 = vunpack.c.h.b16 %v272
    %v847 = vunpack.c.l.b16 %v273
    %v848 = vunpack.c.h.b16 %v273
    %v849 = vunpack.c.l.b16 %v274
    %v850 = vunpack.c.h.b16 %v274
    %v851 = vunpack.c.l.b16 %v275
    %v852 = vunpack.c.h.b16 %v275
    %v853 = vunpack.c.l.b16 %v276
    %v854 = vunpack.c.h.b16 %v276
    %v855 = vunpack.c.l.b16 %v277
    %v856 = vunpack.c.h.b16 %v277
    %v857 = vunpack.c.l.b16 %v278
    %v858 = vunpack.c.h.b16 %v278
    %v859 = vunpack.c.l.b16 %v279
    %v860 = vunpack.c.h.b16 %v279
    %v861 = vunpack.c.l.b16 %v280
    %v862 = vunpack.c.h.b16 %v280
    %v863 = vunpack.c.l.b16 %v281
    %v864 = vunpack.c.h.b16 %v281
    %v865 = vunpack.c.l.b16 %v282
    %v866 = vunpack.c.h.b16 %v282
    %v867 = vunpack.c.l.b16 %v283
    %v868 = vunpack.c.h.b16 %v283
    %v869 = vunpack.c.l.b16 %v284
    %v870 = vunpack.c.h.b16 %v284
    %v871 = vunpack.c.l.b16 %v285
    %v872 = vunpack.c.h.b16 %v285
    %v873 = vunpack.c.l.b16 %v286
    %v874 = vunpack.c.h.b16 %v286
    %v875 = vunpack.c.l.b16 %v287
    %v876 = vunpack.c.h.b16 %v287
    %v877 = vunpack.c.l.b16 %v288
    %v878 = vunpack.c.h.b16 %v288
    %v879 = vunpack.c.l.b16 %v289
    %v880 = vunpack.c.h.b16 %v289
    %v881 = vunpack.c.l.b16 %v290
    %v882 = vunpack.c.h.b16 %v290
    %v883 = vunpack.c.l.b16 %v291
    %v884 = vunpack.c.h.b16 %v291
    %v885 = vunpack.c.l.b16 %v292
    %v886 = vunpack.c.h.b16 %v292
    %v887 = vunpack.c.l.b16 %v293
    %v888 = vunpack.c.h.b16 %v293
    %v889 = vunpack.c.l.b16 %v294
    %v890 = vunpack.c.h.b16 %v294
    %v891 = vunpack.c.l.b16 %v295
    %v892 = vunpack.c.h.b16 %v295
    %v893 = vunpack.c.l.b16 %v296
    %v894 = vunpack.c.h.b16 %v296
    %v895 = vunpack.c.l.b16 %v297
    %v896 = vunpack.c.h.b16 %v297
    %v897 = vunpack.c.l.b16 %v298
    %v898 = vunpack.c.h.b16 %v298
    %v899 = vunpack.c.l.b16 %v299
    %v900 = vunpack.c.h.b16 %v299
    %v901 = vunpack.c.l.b16 %v300
    %v902 = vunpack.c.h.b16 %v300
    %v903 = vunpack.c.l.b16 %v301
    %v904 = vunpack.c.h.b16 %v301
    %v905 = vunpack.c.l.b16 %v302
    %v906 = vunpack.c.h.b16 %v302
    %v907 = vunpack.c.l.b16 %v303
    %v908 = vunpack.c.h.b16 %v303
    %v909 = vunpack.c.l.b16 %v304
    %v910 = vunpack.c.h.b16 %v304
    %v911 = vunpack.c.l.b16 %v305
    %v912 = vunpack.c.h.b16 %v305
    %v913 = vunpack.c.l.b16 %v306
    %v914 = vunpack.c.h.b16 %v306
    %v915 = vunpack.c.l.b16 %v307
    %v916 = vunpack.c.h.b16 %v307
    %v917 = vunpack.c.l.b16 %v308
    %v918 = vunpack.c.h.b16 %v308
    %v919 = vunpack.c.l.b16 %v309
    %v920 = vunpack.c.h.b16 %v309
    %v921 = vunpack.c.l.b16 %v310
    %v922 = vunpack.c.h.b16 %v310
    %v923 = vunpack.c.l.b16 %v311
    %v924 = vunpack.c.h.b16 %v311
    %v925 = vunpack.c.l.b16 %v312
    %v926 = vunpack.c.h.b16 %v312
    %v927 = vunpack.c.l.b16 %v313
    %v928 = vunpack.c.h.b16 %v313
    %v929 = vunpack.c.l.b16 %v314
    %v930 = vunpack.c.h.b16 %v314
    %v931 = vunpack.c.l.b16 %v315
    %v932 = vunpack.c.h.b16 %v315
    %v933 = vunpack.c.l.b16 %v316
    %v934 = vunpack.c.h.b16 %v316
    %v935 = vunpack.c.l.b16 %v317
    %v936 = vunpack.c.h.b16 %v317
    %v937 = vunpack.c.l.b16 %v318
    %v938 = vunpack.c.h.b16 %v318
    %v939 = vunpack.c.l.b16 %v319
    %v940 = vunpack.c.h.b16 %v319
    %v941 = vunpack.c.l.b16 %v320
    %v942 = vunpack.c.h.b16 %v320
    %v943 = vunpack.c.l.b16 %v321
    %v944 = vunpack.c.h.b16 %v321
    %v945 = vunpack.c.l.b16 %v322
    %v946 = vunpack.c.h.b16 %v322
    %v947 = vunpack.c.l.b16 %v323
    %v948 = vunpack.c.h.b16 %v323
    %v949 = vunpack.c.l.b16 %v324
    %v950 = vunpack.c.h.b16 %v324
    %v951 = vunpack.c.l.b16 %v325
    %v952 = vunpack.c.h.b16 %v325
    %v953 = vunpack.c.l.b16 %v326
    %v954 = vunpack.c.h.b16 %v326
    %v955 = vunpack.c.l.b16 %v327
    %v956 = vunpack.c.h.b16 %v327
    %v957 = vunpack.c.l.b16 %v328
    %v958 = vunpack.c.h.b16 %v328
    %v959 = vunpack.c.l.b16 %v329
    %v960 = vunpack.c.h.b16 %v329
    %v961 = vunpack.c.l.b16 %v330
    %v962 = vunpack.c.h.b16 %v330
    %v963 = vunpack.c.l.b16 %v331
    %v964 = vunpack.c.h.b16 %v331
    %v965 = vunpack.c.l.b16 %v332
    %v966 = vunpack.c.h.b16 %v332
    %v967 = vunpack.c.l.b16 %v333
    %v968 = vunpack.c.h.b16 %v333
    %v969 = vunpack.c.l.b16 %v334
    %v970 = vunpack.c.h.b16 %v334
    %v971 = vunpack.c.l.b16 %v335
    %v972 = vunpack.c.h.b16 %v335
    %v973 = vunpack.c.l.b16 %v336
    %v974 = vunpack.c.h.b16 %v336
    %v975 = vunpack.c.l.b16 %v337
    %v976 = vunpack.c.h.b16 %v337
    %v977 = vunpack.c.l.b16 %v338
    %v978 = vunpack.c.h.b16 %v338
    %v979 = vunpack.c.l.b16 %v339
    %v980 = vunpack.c.h.b16 %v339
    %v981 = vunpack.c.l.b16 %v340
    %v982 = vunpack.c.h.b16 %v340
    %v983 = vunpack.c.l.b16 %v341
    %v984 = vunpack.c.h.b16 %v341
    %v985 = vunpack.c.l.b16 %v342
    %v986 = vunpack.c.h.b16 %v342
    %v987 = vunpack.c.l.b16 %v343
    %v988 = vunpack.c.h.b16 %v343
    %v989 = vunpack.c.l.b16 %v344
    %v990 = vunpack.c.h.b16 %v344
    %v991 = vunpack.c.l.b16 %v345
    %v992 = vunpack.c.h.b16 %v345
    %v993 = vunpack.c.l.b16 %v346
    %v994 = vunpack.c.h.b16 %v346
    %v995 = vunpack.c.l.b16 %v347
    %v996 = vunpack.c.h.b16 %v347
    %v997 = vunpack.c.l.b16 %v348
    %v998 = vunpack.c.h.b16 %v348
    %v999 = vunpack.c.l.b16 %v349
    %v1000 = vunpack.c.h.b16 %v349
    %v1001 = vunpack.c.l.b16 %v350
    %v1002 = vunpack.c.h.b16 %v350
    %v1003 = vunpack.c.l.b16 %v351
    %v1004 = vunpack.c.h.b16 %v351
    %v1005 = vunpack.c.l.b16 %v352
    %v1006 = vunpack.c.h.b16 %v352
    %v1007 = vunpack.c.l.b16 %v353
    %v1008 = vunpack.c.h.b16 %v353
    %v1009 = vunpack.c.l.b16 %v354
    %v1010 = vunpack.c.h.b16 %v354
    %v1011 = vunpack.c.l.b16 %v355
    %v1012 = vunpack.c.h.b16 %v355
    %v1013 = vunpack.c.l.b16 %v356
    %v1014 = vunpack.c.h.b16 %v356
    %v1015 = vunpack.c.l.b16 %v357
    %v1016 = vunpack.c.h.b16 %v357
    %v1017 = vunpack.c.l.b16 %v358
    %v1018 = vunpack.c.h.b16 %v358
    %v1019 = vunpack.c.l.b16 %v359
    %v1020 = vunpack.c.h.b16 %v359
    %v1021 = vunpack.c.l.b16 %v360
    %v1022 = vunpack.c.h.b16 %v360
    %v1023 = vunpack.c.l.b16 %v361
    %v1024 = vunpack.c.h.b16 %v361
    %v1025 = vunpack.c.l.b16 %v362
    %v1026 = vunpack.c.h.b16 %v362
    %v1027 = vunpack.c.l.b16 %v363
    %v1028 = vunpack.c.h.b16 %v363
    %v1029 = vunpack.c.l.b16 %v364
    %v1030 = vunpack.c.h.b16 %v364
    %v1031 = vunpack.c.l.b16 %v365
    %v1032 = vunpack.c.h.b16 %v365
    %v1033 = vunpack.c.l.b16 %v366
    %v1034 = vunpack.c.h.b16 %v366
    %v1035 = vunpack.c.l.b16 %v367
    %v1036 = vunpack.c.h.b16 %v367
    %v1037 = vunpack.c.l.b16 %v368
    %v1038 = vunpack.c.h.b16 %v368
    %v1039 = vunpack.c.l.b16 %v369
    %v1040 = vunpack.c.h.b16 %v369
    %v1041 = vunpack.c.l.b16 %v370
    %v1042 = vunpack.c.h.b16 %v370
    %v1043 = vunpack.c.l.b16 %v371
    %v1044 = vunpack.c.h.b16 %v371
    %v1045 = vunpack.c.l.b16 %v372
    %v1046 = vunpack.c.h.b16 %v372
    %v1047 = vunpack.c.l.b16 %v373
    %v1048 = vunpack.c.h.b16 %v373
    %v1049 = vunpack.c.l.b16 %v374
    %v1050 = vunpack.c.h.b16 %v374
    %v1051 = vunpack.c.l.b16 %v375
    %v1052 = vunpack.c.h.b16 %v375
    %v1053 = vunpack.c.l.b16 %v376
    %v1054 = vunpack.c.h.b16 %v376
    %v1055 = vunpack.c.l.b16 %v377
    %v1056 = vunpack.c.h.b16 %v377
    %v1057 = vunpack.c.l.b16 %v378
    %v1058 = vunpack.c.h.b16 %v378
    %v1059 = vunpack.c.l.b16 %v379
    %v1060 = vunpack.c.h.b16 %v379
    %v1061 = vunpack.c.l.b16 %v380
    %v1062 = vunpack.c.h.b16 %v380
    %v1063 = vunpack.c.l.b16 %v381
    %v1064 = vunpack.c.h.b16 %v381
    %v1065 = vunpack.c.l.b16 %v382
    %v1066 = vunpack.c.h.b16 %v382
    %v1067 = vunpack.c.l.b16 %v383
    %v1068 = vunpack.c.h.b16 %v383
    %v1069 = vunpack.c.l.b16 %v384
    %v1070 = vunpack.c.h.b16 %v384
    %v1071 = vunpack.c.l.b16 %v385
    %v1072 = vunpack.c.h.b16 %v385
    %v1073 = vunpack.c.l.b16 %v386
    %v1074 = vunpack.c.h.b16 %v386
    %v1075 = vunpack.c.l.b16 %v387
    %v1076 = vunpack.c.h.b16 %v387
    %v1077 = vunpack.c.l.b16 %v388
    %v1078 = vunpack.c.h.b16 %v388
    %v1079 = vunpack.c.l.b16 %v389
    %v1080 = vunpack.c.h.b16 %v389
    %v1081 = vunpack.c.l.b16 %v390
    %v1082 = vunpack.c.h.b16 %v390
    %v1083 = vunpack.c.l.b16 %v391
    %v1084 = vunpack.c.h.b16 %v391
    %v1085 = vunpack.c.l.b16 %v392
    %v1086 = vunpack.c.h.b16 %v392
    %v1087 = vunpack.c.l.b16 %v393
    %v1088 = vunpack.c.h.b16 %v393
    %v1089 = vunpack.c.l.b16 %v394
    %v1090 = vunpack.c.h.b16 %v394
    %v1091 = vunpack.c.l.b16 %v395
    %v1092 = vunpack.c.h.b16 %v395
    %v1093 = vunpack.c.l.b16 %v396
    %v1094 = vunpack.c.h.b16 %v396
    %v1095 = vunpack.c.l.b16 %v397
    %v1096 = vunpack.c.h.b16 %v397
    %v1097 = vunpack.c.l.b16 %v398
    %v1098 = vunpack.c.h.b16 %v398
    %v1099 = vunpack.c.l.b16 %v399
    %v1100 = vunpack.c.h.b16 %v399
    %v1101 = vunpack.c.l.b16 %v400
    %v1102 = vunpack.c.h.b16 %v400
    %v1103 = vunpack.c.l.b16 %v401
    %v1104 = vunpack.c.h.b16 %v401
    %v1105 = vunpack.c.l.b16 %v402
    %v1106 = vunpack.c.h.b16 %v402
    %v1107 = vunpack.c.l.b16 %v403
    %v1108 = vunpack.c.h.b16 %v403
    %v1109 = vunpack.c.l.b16 %v404
    %v1110 = vunpack.c.h.b16 %v404
    %v1111 = vunpack.c.l.b16 %v405
    %v1112 = vunpack.c.h.b16 %v405
    %v1113 = vunpack.c.l.b16 %v406
    %v1114 = vunpack.c.h.b16 %v406
    %v1115 = vunpack.c.l.b16 %v407
    %v1116 = vunpack.c.h.b16 %v407
    %v1117 = vunpack.c.l.b16 %v408
    %v1118 = vunpack.c.h.b16 %v408
    %v1119 = vunpack.c.l.b16 %v409
    %v1120 = vunpack.c.h.b16 %v409
    %v1121 = vunpack.c.l.b16 %v410
    %v1122 = vunpack.c.h.b16 %v410
    %v1123 = vunpack.c.l.b16 %v411
    %v1124 = vunpack.c.h.b16 %v411
    %v1125 = vunpack.c.l.b16 %v412
    %v1126 = vunpack.c.h.b16 %v412
    %v1127 = vunpack.c.l.b16 %v413
    %v1128 = vunpack.c.h.b16 %v413
    %v1129 = vunpack.c.l.b16 %v414
    %v1130 = vunpack.c.h.b16 %v414
    %v1131 = vunpack.c.l.b16 %v415
    %v1132 = vunpack.c.h.b16 %v415
    %v1133 = vunpack.c.l.b16 %v416
    %v1134 = vunpack.c.h.b16 %v416
    %v1135 = vunpack.c.l.b16 %v417
    %v1136 = vunpack.c.h.b16 %v417
    %v1137 = vunpack.c.l.b16 %v418
    %v1138 = vunpack.c.h.b16 %v418
    %v1139 = vunpack.c.l.b16 %v419
    %v1140 = vunpack.c.h.b16 %v419
    %v1141 = vunpack.c.l.b16 %v420
    %v1142 = vunpack.c.h.b16 %v420
    %v1143 = vunpack.c.l.b16 %v421
    %v1144 = vunpack.c.h.b16 %v421
    %v1145 = vunpack.c.l.b16 %v422
    %v1146 = vunpack.c.h.b16 %v422
    %v1147 = vunpack.c.l.b16 %v423
    %v1148 = vunpack.c.h.b16 %v423
    %v1149 = vunpack.c.l.b16 %v424
    %v1150 = vunpack.c.h.b16 %v424
    %v1151 = vunpack.c.l.b16 %v425
    %v1152 = vunpack.c.h.b16 %v425
    %v1153 = vunpack.c.l.b16 %v426
    %v1154 = vunpack.c.h.b16 %v426
    %v1155 = vunpack.c.l.b16 %v427
    %v1156 = vunpack.c.h.b16 %v427
    %v1157 = vunpack.c.l.b16 %v428
    %v1158 = vunpack.c.h.b16 %v428
    %v1159 = vunpack.c.l.b16 %v429
    %v1160 = vunpack.c.h.b16 %v429
    %v1161 = vunpack.c.l.b16 %v430
    %v1162 = vunpack.c.h.b16 %v430
    %v1163 = vunpack.c.l.b16 %v431
    %v1164 = vunpack.c.h.b16 %v431
    %v1165 = vunpack.c.l.b16 %v432
    %v1166 = vunpack.c.h.b16 %v432
    %v1167 = vunpack.c.l.b16 %v433
    %v1168 = vunpack.c.h.b16 %v433
    %v1169 = vunpack.c.l.b16 %v434
    %v1170 = vunpack.c.h.b16 %v434
    %v1171 = vunpack.c.l.b16 %v435
    %v1172 = vunpack.c.h.b16 %v435
    %v1173 = vunpack.c.l.b16 %v436
    %v1174 = vunpack.c.h.b16 %v436
    %v1175 = vunpack.c.l.b16 %v437
    %v1176 = vunpack.c.h.b16 %v437
    %v1177 = vunpack.c.l.b16 %v438
    %v1178 = vunpack.c.h.b16 %v438
    %v1179 = vunpack.c.l.b16 %v439
    %v1180 = vunpack.c.h.b16 %v439
    %v1181 = vunpack.c.l.b16 %v440
    %v1182 = vunpack.c.h.b16 %v440
    %v1183 = vunpack.c.l.b16 %v441
    %v1184 = vunpack.c.h.b16 %v441
    %v1185 = vunpack.c.l.b16 %v442
    %v1186 = vunpack.c.h.b16 %v442
    %v1187 = vunpack.c.l.b16 %v443
    %v1188 = vunpack.c.h.b16 %v443
    %v1189 = vunpack.c.l.b16 %v444
    %v1190 = vunpack.c.h.b16 %v444
    %v1191 = vunpack.c.l.b16 %v445
    %v1192 = vunpack.c.h.b16 %v445
    %v1193 = vunpack.c.l.b16 %v446
    %v1194 = vunpack.c.h.b16 %v446
    %v1195 = vunpack.c.l.b16 %v447
    %v1196 = vunpack.c.h.b16 %v447
    %v1197 = vunpack.c.l.b16 %v448
    %v1198 = vunpack.c.h.b16 %v448
    %v1199 = vunpack.c.l.b16 %v449
    %v1200 = vunpack.c.h.b16 %v449
    %v1201 = vunpack.c.l.b16 %v450
    %v1202 = vunpack.c.h.b16 %v450
    %v1203 = vunpack.c.l.b16 %v451
    %v1204 = vunpack.c.h.b16 %v451
    %v1205 = vunpack.c.l.b16 %v452
    %v1206 = vunpack.c.h.b16 %v452
    %v1207 = vunpack.c.l.b16 %v453
    %v1208 = vunpack.c.h.b16 %v453
    %v1209 = vunpack.c.l.b16 %v454
    %v1210 = vunpack.c.h.b16 %v454
    %v1211 = vunpack.c.l.b16 %v455
    %v1212 = vunpack.c.h.b16 %v455
    %v1213 = vunpack.c.l.b16 %v456
    %v1214 = vunpack.c.h.b16 %v456
    %v1215 = vunpack.c.l.b16 %v457
    %v1216 = vunpack.c.h.b16 %v457
    %v1217 = vunpack.c.l.b16 %v458
    %v1218 = vunpack.c.h.b16 %v458
    %v1219 = vunpack.c.l.b16 %v459
    %v1220 = vunpack.c.h.b16 %v459
    %v1221 = vunpack.c.l.b16 %v460
    %v1222 = vunpack.c.h.b16 %v460
    %v1223 = vunpack.c.l.b16 %v461
    %v1224 = vunpack.c.h.b16 %v461
    %v1225 = vunpack.c.l.b16 %v462
    %v1226 = vunpack.c.h.b16 %v462
    %v1227 = vunpack.c.l.b16 %v463
    %v1228 = vunpack.c.h.b16 %v463
    %v1229 = vunpack.c.l.b16 %v464
    %v1230 = vunpack.c.h.b16 %v464
    %v1231 = vunpack.c.l.b16 %v465
    %v1232 = vunpack.c.h.b16 %v465
    %v1233 = vunpack.c.l.b16 %v466
    %v1234 = vunpack.c.h.b16 %v466
    %v1235 = vpack.c.b16 %v727, %v723
    %v1236 = vpack.c.b16 %v728, %v724
    %v1237 = vpack.c.b16 %v729, %v725
    %v1238 = vpack.c.b16 %v730, %v726
    %v1239 = vpack.c.b16 %v735, %v731
    %v1240 = vpack.c.b16 %v736, %v732
    %v1241 = vpack.c.b16 %v737, %v733
    %v1242 = vpack.c.b16 %v738, %v734
    %v1243 = vpack.c.b16 %v743, %v739
    %v1244 = vpack.c.b16 %v744, %v740
    %v1245 = vpack.c.b16 %v745, %v741
    %v1246 = vpack.c.b16 %v746, %v742
    %v1247 = vpack.c.b16 %v751, %v747
    %v1248 = vpack.c.b16 %v752, %v748
    %v1249 = vpack.c.b16 %v753, %v749
    %v1250 = vpack.c.b16 %v754, %v750
    %v1251 = vpack.c.b16 %v759, %v755
    %v1252 = vpack.c.b16 %v760, %v756
    %v1253 = vpack.c.b16 %v761, %v757
    %v1254 = vpack.c.b16 %v762, %v758
    %v1255 = vpack.c.b16 %v767, %v763
    %v1256 = vpack.c.b16 %v768, %v764
    %v1257 = vpack.c.b16 %v769, %v765
    %v1258 = vpack.c.b16 %v770, %v766
    %v1259 = vpack.c.b16 %v775, %v771
    %v1260 = vpack.c.b16 %v776, %v772
    %v1261 = vpack.c.b16 %v777, %v773
    %v1262 = vpack.c.b16 %v778, %v774
    %v1263 = vpack.c.b16 %v783, %v779
    %v1264 = vpack.c.b16 %v784, %v780
    %v1265 = vpack.c.b16 %v785, %v781
    %v1266 = vpack.c.b16 %v786, %v782
    %v1267 = vpack.c.b16 %v791, %v787
    %v1268 = vpack.c.b16 %v792, %v788
    %v1269 = vpack.c.b16 %v793, %v789
    %v1270 = vpack.c.b16 %v794, %v790
    %v1271 = vpack.c.b16 %v799, %v795
    %v1272 = vpack.c.b16 %v800, %v796
    %v1273 = vpack.c.b16 %v801, %v797
    %v1274 = vpack.c.b16 %v802, %v798
    %v1275 = vpack.c.b16 %v807, %v803
    %v1276 = vpack.c.b16 %v808, %v804
    %v1277 = vpack.c.b16 %v809, %v805
    %v1278 = vpack.c.b16 %v810, %v806
    %v1279 = vpack.c.b16 %v815, %v811
    %v1280 = vpack.c.b16 %v816, %v812
    %v1281 = vpack.c.b16 %v817, %v813
    %v1282 = vpack.c.b16 %v818, %v814
    %v1283 = vpack.c.b16 %v823, %v819
    %v1284 = vpack.c.b16 %v824, %v820
    %v1285 = vpack.c.b16 %v825, %v821
    %v1286 = vpack.c.b16 %v826, %v822
    %v1287 = vpack.c.b16 %v831, %v827
    %v1288 = vpack.c.b16 %v832, %v828
    %v1289 = vpack.c.b16 %v833, %v829
    %v1290 = vpack.c.b16 %v834, %v830
    %v1291 = vpack.c.b16 %v839, %v835
    %v1292 = vpack.c.b16 %v840, %v836
    %v1293 = vpack.c.b16 %v841, %v837
    %v1294 = vpack.c.b16 %v842, %v838
    %v1295 = vpack.c.b16 %v847, %v843
    %v1296 = vpack.c.b16 %v848, %v844
    %v1297 = vpack.c.b16 %v849, %v845
    %v1298 = vpack.c.b16 %v850, %v846
    %v1299 = vpack.c.b16 %v855, %v851
    %v1300 = vpack.c.b16 %v856, %v852
    %v1301 = vpack.c.b16 %v857, %v853
    %v1302 = vpack.c.b16 %v858, %v854
    %v1303 = vpack.c.b16 %v863, %v859
    %v1304 = vpack.c.b16 %v864, %v860
    %v1305 = vpack.c.b16 %v865, %v861
    %v1306 = vpack.c.b16 %v866, %v862
    %v1307 = vpack.c.b16 %v871, %v867
    %v1308 = vpack.c.b16 %v872, %v868
    %v1309 = vpack.c.b16 %v873, %v869
    %v1310 = vpack.c.b16 %v874, %v870
    %v1311 = vpack.c.b16 %v879, %v875
    %v1312 = vpack.c.b16 %v880, %v876
    %v1313 = vpack.c.b16 %v881, %v877
    %v1314 = vpack.c.b16 %v882, %v878
    %v1315 = vpack.c.b16 %v887, %v883
    %v1316 = vpack.c.b16 %v888, %v884
    %v1317 = vpack.c.b16 %v889, %v885
    %v1318 = vpack.c.b16 %v890, %v886
    %v1319 = vpack.c.b16 %v895, %v891
    %v1320 = vpack.c.b16 %v896, %v892
    %v1321 = vpack.c.b16 %v897, %v893
    %v1322 = vpack.c.b16 %v898, %v894
    %v1323 = vpack.c.b16 %v903, %v899
    %v1324 = vpack.c.b16 %v904, %v900
    %v1325 = vpack.c.b16 %v905, %v901
    %v1326 = vpack.c.b16 %v906, %v902
    %v1327 = vpack.c.b16 %v911, %v907
    %v1328 = vpack.c.b16 %v912, %v908
    %v1329 = vpack.c.b16 %v913, %v909
    %v1330 = vpack.c.b16 %v914, %v910
    %v1331 = vpack.c.b16 %v919, %v915
    %v1332 = vpack.c.b16 %v920, %v916
    %v1333 = vpack.c.b16 %v921, %v917
    %v1334 = vpack.c.b16 %v922, %v918
    %v1335 = vpack.c.b16 %v927, %v923
    %v1336 = vpack.c.b16 %v928, %v924
    %v1337 = vpack.c.b16 %v929, %v925
    %v1338 = vpack.c.b16 %v930, %v926
    %v1339 = vpack.c.b16 %v935, %v931
    %v1340 = vpack.c.b16 %v936, %v932
    %v1341 = vpack.c.b16 %v937, %v933
    %v1342 = vpack.c.b16 %v938, %v934
    %v1343 = vpack.c.b16 %v943, %v939
    %v1344 = vpack.c.b16 %v944, %v940
    %v1345 = vpack.c.b16 %v945, %v941
    %v1346 = vpack.c.b16 %v946, %v942
    %v1347 = vpack.c.b16 %v951, %v947
    %v1348 = vpack.c.b16 %v952, %v948
    %v1349 = vpack.c.b16 %v953, %v949
    %v1350 = vpack.c.b16 %v954, %v950
    %v1351 = vpack.c.b16 %v959, %v955
    %v1352 = vpack.c.b16 %v960, %v956
    %v1353 = vpack.c.b16 %v961, %v957
    %v1354 = vpack.c.b16 %v962, %v958
    %v1355 = vpack.c.b16 %v967, %v963
    %v1356 = vpack.c.b16 %v968, %v964
    %v1357 = vpack.c.b16 %v969, %v965
    %v1358 = vpack.c.b16 %v970, %v966
    %v1359 = vpack.c.b16 %v975, %v971
    %v1360 = vpack.c.b16 %v976, %v972
    %v1361 = vpack.c.b16 %v977, %v973
    %v1362 = vpack.c.b16 %v978, %v974
    %v1363 = vpack.c.b16 %v983, %v979
    %v1364 = vpack.c.b16 %v984, %v980
    %v1365 = vpack.c.b16 %v985, %v981
    %v1366 = vpack.c.b16 %v986, %v982
    %v1367 = vpack.c.b16 %v991, %v987
    %v1368 = vpack.c.b16 %v992, %v988
    %v1369 = vpack.c.b16 %v993, %v989
    %v1370 = vpack.c.b16 %v994, %v990
    %v1371 = vpack.c.b16 %v999, %v995
    %v1372 = vpack.c.b16 %v1000, %v996
    %v1373 = vpack.c.b16 %v1001, %v997
    %v1374 = vpack.c.b16 %v1002, %v998
    %v1375 = vpack.c.b16 %v1007, %v1003
    %v1376 = vpack.c.b16 %v1008, %v1004
    %v1377 = vpack.c.b16 %v1009, %v1005
    %v1378 = vpack.c.b16 %v1010, %v1006
    %v1379 = vpack.c.b16 %v1015, %v1011
    %v1380 = vpack.c.b16 %v1016, %v1012
    %v1381 = vpack.c.b16 %v1017, %v1013
    %v1382 = vpack.c.b16 %v1018, %v1014
    %v1383 = vpack.c.b16 %v1023, %v1019
    %v1384 = vpack.c.b16 %v1024, %v1020
    %v1385 = vpack.c.b16 %v1025, %v1021
    %v1386 = vpack.c.b16 %v1026, %v1022
    %v1387 = vpack.c.b16 %v1031, %v1027
    %v1388 = vpack.c.b16 %v1032, %v1028
    %v1389 = vpack.c.b16 %v1033, %v1029
    %v1390 = vpack.c.b16 %v1034, %v1030
    %v1391 = vpack.c.b16 %v1039, %v1035
    %v1392 = vpack.c.b16 %v1040, %v1036
    %v1393 = vpack.c.b16 %v1041, %v1037
    %v1394 = vpack.c.b16 %v1042, %v1038
    %v1395 = vpack.c.b16 %v1047, %v1043
    %v1396 = vpack.c.b16 %v1048, %v1044
    %v1397 = vpack.c.b16 %v1049, %v1045
    %v1398 = vpack.c.b16 %v1050, %v1046
    %v1399 = vpack.c.b16 %v1055, %v1051
    %v1400 = vpack.c.b16 %v1056, %v1052
    %v1401 = vpack.c.b16 %v1057, %v1053
    %v1402 = vpack.c.b16 %v1058, %v1054
    %v1403 = vpack.c.b16 %v1063, %v1059
    %v1404 = vpack.c.b16 %v1064, %v1060
    %v1405 = vpack.c.b16 %v1065, %v1061
    %v1406 = vpack.c.b16 %v1066, %v1062
    %v1407 = vpack.c.b16 %v1071, %v1067
    %v1408 = vpack.c.b16 %v1072, %v1068
    %v1409 = vpack.c.b16 %v1073, %v1069
    %v1410 = vpack.c.b16 %v1074, %v1070
    %v1411 = vpack.c.b16 %v1079, %v1075
    %v1412 = vpack.c.b16 %v1080, %v1076
    %v1413 = vpack.c.b16 %v1081, %v1077
    %v1414 = vpack.c.b16 %v1082, %v1078
    %v1415 = vpack.c.b16 %v1087, %v1083
    %v1416 = vpack.c.b16 %v1088, %v1084
    %v1417 = vpack.c.b16 %v1089, %v1085
    %v1418 = vpack.c.b16 %v1090, %v1086
    %v1419 = vpack.c.b16 %v1095, %v1091
    %v1420 = vpack.c.b16 %v1096, %v1092
    %v1421 = vpack.c.b16 %v1097, %v1093
    %v1422 = vpack.c.b16 %v1098, %v1094
    %v1423 = vpack.c.b16 %v1103, %v1099
    %v1424 = vpack.c.b16 %v1104, %v1100
    %v1425 = vpack.c.b16 %v1105, %v1101
    %v1426 = vpack.c.b16 %v1106, %v1102
    %v1427 = vpack.c.b16 %v1111, %v1107
    %v1428 = vpack.c.b16 %v1112, %v1108
    %v1429 = vpack.c.b16 %v1113, %v1109
    %v1430 = vpack.c.b16 %v1114, %v1110
    %v1431 = vpack.c.b16 %v1119, %v1115
    %v1432 = vpack.c.b16 %v1120, %v1116
    %v1433 = vpack.c.b16 %v1121, %v1117
    %v1434 = vpack.c.b16 %v1122, %v1118
    %v1435 = vpack.c.b16 %v1127, %v1123
    %v1436 = vpack.c.b16 %v1128, %v1124
    %v1437 = vpack.c.b16 %v1129, %v1125
    %v1438 = vpack.c.b16 %v1130, %v1126
    %v1439 = vpack.c.b16 %v1135, %v1131
    %v1440 = vpack.c.b16 %v1136, %v1132
    %v1441 = vpack.c.b16 %v1137, %v1133
    %v1442 = vpack.c.b16 %v1138, %v1134
    %v1443 = vpack.c.b16 %v1143, %v1139
    %v1444 = vpack.c.b16 %v1144, %v1140
    %v1445 = vpack.c.b16 %v1145, %v1141
    %v1446 = vpack.c.b16 %v1146, %v1142
    %v1447 = vpack.c.b16 %v1151, %v1147
    %v1448 = vpack.c.b16 %v1152, %v1148
    %v1449 = vpack.c.b16 %v1153, %v1149
    %v1450 = vpack.c.b16 %v1154, %v1150
    %v1451 = vpack.c.b16 %v1159, %v1155
    %v1452 = vpack.c.b16 %v1160, %v1156
    %v1453 = vpack.c.b16 %v1161, %v1157
    %v1454 = vpack.c.b16 %v1162, %v1158
    %v1455 = vpack.c.b16 %v1167, %v1163
    %v1456 = vpack.c.b16 %v1168, %v1164
    %v1457 = vpack.c.b16 %v1169, %v1165
    %v1458 = vpack.c.b16 %v1170, %v1166
    %v1459 = vpack.c.b16 %v1175, %v1171
    %v1460 = vpack.c.b16 %v1176, %v1172
    %v1461 = vpack.c.b16 %v1177, %v1173
    %v1462 = vpack.c.b16 %v1178, %v1174
    %v1463 = vpack.c.b16 %v1183, %v1179
    %v1464 = vpack.c.b16 %v1184, %v1180
    %v1465 = vpack.c.b16 %v1185, %v1181
    %v1466 = vpack.c.b16 %v1186, %v1182
    %v1467 = vpack.c.b16 %v1191, %v1187
    %v1468 = vpack.c.b16 %v1192, %v1188
    %v1469 = vpack.c.b16 %v1193, %v1189
    %v1470 = vpack.c.b16 %v1194, %v1190
    %v1471 = vpack.c.b16 %v1199, %v1195
    %v1472 = vpack.c.b16 %v1200, %v1196
    %v1473 = vpack.c.b16 %v1201, %v1197
    %v1474 = vpack.c.b16 %v1202, %v1198
    %v1475 = vpack.c.b16 %v1207, %v1203
    %v1476 = vpack.c.b16 %v1208, %v1204
    %v1477 = vpack.c.b16 %v1209, %v1205
    %v1478 = vpack.c.b16 %v1210, %v1206
    %v1479 = vpack.c.b16 %v1215, %v1211
    %v1480 = vpack.c.b16 %v1216, %v1212
    %v1481 = vpack.c.b16 %v1217, %v1213
    %v1482 = vpack.c.b16 %v1218, %v1214
    %v1483 = vpack.c.b16 %v1223, %v1219
    %v1484 = vpack.c.b16 %v1224, %v1220
    %v1485 = vpack.c.b16 %v1225, %v1221
    %v1486 = vpack.c.b16 %v1226, %v1222
    %v1487 = vpack.c.b16 %v1231, %v1227
    %v1488 = vpack.c.b16 %v1232, %v1228
    %v1489 = vpack.c.b16 %v1233, %v1229
    %v1490 = vpack.c.b16 %v1234, %v1230
    %1747 = vmatprep.subr.bf16.mxu0 %v1236
    %1748 = vmatpush1.bf16.msra.mxu0 %v1235
    %1749 = vmatprep.subr.bf16.mxu0 %v1240
    %1750 = vmatpush1.bf16.msra.mxu0 %v1239
    %1751 = vmatprep.subr.bf16.mxu0 %v1244
    %1752 = vmatpush1.bf16.msra.mxu0 %v1243
    %1753 = vmatprep.subr.bf16.mxu0 %v1248
    %1754 = vmatpush1.bf16.msra.mxu0 %v1247
    %1755 = vmatprep.subr.bf16.mxu0 %v1252
    %1756 = vmatpush1.bf16.msra.mxu0 %v1251
    %1757 = vmatprep.subr.bf16.mxu0 %v1256
    %1758 = vmatpush1.bf16.msra.mxu0 %v1255
    %1759 = vmatprep.subr.bf16.mxu0 %v1260
    %1760 = vmatpush1.bf16.msra.mxu0 %v1259
    %1761 = vmatprep.subr.bf16.mxu0 %v1264
    %1762 = vmatpush1.bf16.msra.mxu0 %v1263
    %1763 = vmatprep.subr.bf16.mxu0 %v1268
    %1764 = vmatpush1.bf16.msra.mxu0 %v1267
    %1765 = vmatprep.subr.bf16.mxu0 %v1272
    %1766 = vmatpush1.bf16.msra.mxu0 %v1271
    %1767 = vmatprep.subr.bf16.mxu0 %v1276
    %1768 = vmatpush1.bf16.msra.mxu0 %v1275
    %1769 = vmatprep.subr.bf16.mxu0 %v1280
    %1770 = vmatpush1.bf16.msra.mxu0 %v1279
    %1771 = vmatprep.subr.bf16.mxu0 %v1284
    %1772 = vmatpush1.bf16.msra.mxu0 %v1283
    %1773 = vmatprep.subr.bf16.mxu0 %v1288
    %1774 = vmatpush1.bf16.msra.mxu0 %v1287
    %1775 = vmatprep.subr.bf16.mxu0 %v1292
    %1776 = vmatpush1.bf16.msra.mxu0 %v1291
    %1777 = vmatprep.subr.bf16.mxu0 %v1296
    %1778 = vmatpush1.bf16.msra.mxu0 %v1295
    %1779 = vmatprep.mubr.bf16.mxu0 %v204
    %1780 = vmatmul.mubr.bf16.gmra.mrb[0].mxu0 %v203
    %v1781 = vpop.f32.mrb[0].mxu0
    %v1782 = vadd.f32 0.0, %v1781
    %v1783 = vpop.f32.mrb[0].mxu0
    %v1784 = vadd.f32 0.0, %v1783
    %v1785 = vpop.f32.mrb[0].mxu0
    %v1786 = vadd.f32 0.0, %v1785
    %v1787 = vpop.f32.mrb[0].mxu0
    %v1788 = vadd.f32 0.0, %v1787
    %1789 = vdwg.mxu0
    %1790 = vmatprep.subr.bf16.mxu0 %v1300
    %1791 = vmatpush1.bf16.msra.mxu0 %v1299
    %1792 = vmatprep.subr.bf16.mxu0 %v1304
    %1793 = vmatpush1.bf16.msra.mxu0 %v1303
    %1794 = vmatprep.subr.bf16.mxu0 %v1308
    %1795 = vmatpush1.bf16.msra.mxu0 %v1307
    %1796 = vmatprep.subr.bf16.mxu0 %v1312
    %1797 = vmatpush1.bf16.msra.mxu0 %v1311
    %1798 = vmatprep.subr.bf16.mxu0 %v1316
    %1799 = vmatpush1.bf16.msra.mxu0 %v1315
    %1800 = vmatprep.subr.bf16.mxu0 %v1320
    %1801 = vmatpush1.bf16.msra.mxu0 %v1319
    %1802 = vmatprep.subr.bf16.mxu0 %v1324
    %1803 = vmatpush1.bf16.msra.mxu0 %v1323
    %1804 = vmatprep.subr.bf16.mxu0 %v1328
    %1805 = vmatpush1.bf16.msra.mxu0 %v1327
    %1806 = vmatprep.subr.bf16.mxu0 %v1332
    %1807 = vmatpush1.bf16.msra.mxu0 %v1331
    %1808 = vmatprep.subr.bf16.mxu0 %v1336
    %1809 = vmatpush1.bf16.msra.mxu0 %v1335
    %1810 = vmatprep.subr.bf16.mxu0 %v1340
    %1811 = vmatpush1.bf16.msra.mxu0 %v1339
    %1812 = vmatprep.subr.bf16.mxu0 %v1344
    %1813 = vmatpush1.bf16.msra.mxu0 %v1343
    %1814 = vmatprep.subr.bf16.mxu0 %v1348
    %1815 = vmatpush1.bf16.msra.mxu0 %v1347
    %1816 = vmatprep.subr.bf16.mxu0 %v1352
    %1817 = vmatpush1.bf16.msra.mxu0 %v1351
    %1818 = vmatprep.subr.bf16.mxu0 %v1356
    %1819 = vmatpush1.bf16.msra.mxu0 %v1355
    %1820 = vmatprep.subr.bf16.mxu0 %v1360
    %1821 = vmatpush1.bf16.msra.mxu0 %v1359
    %1822 = vmatprep.mubr.bf16.mxu0 %v206
    %1823 = vmatmul.mubr.bf16.gmra.mrb[0].mxu0 %v205
    %v1824 = vpop.f32.mrb[0].mxu0
    %v1825 = vadd.f32 %v1782, %v1824
    %v1826 = vpop.f32.mrb[0].mxu0
    %v1827 = vadd.f32 %v1784, %v1826
    %v1828 = vpop.f32.mrb[0].mxu0
    %v1829 = vadd.f32 %v1786, %v1828
    %v1830 = vpop.f32.mrb[0].mxu0
    %v1831 = vadd.f32 %v1788, %v1830
    %1832 = vdwg.mxu0
    %1833 = vmatprep.subr.bf16.mxu0 %v1364
    %1834 = vmatpush1.bf16.msra.mxu0 %v1363
    %1835 = vmatprep.subr.bf16.mxu0 %v1368
    %1836 = vmatpush1.bf16.msra.mxu0 %v1367
    %1837 = vmatprep.subr.bf16.mxu0 %v1372
    %1838 = vmatpush1.bf16.msra.mxu0 %v1371
    %1839 = vmatprep.subr.bf16.mxu0 %v1376
    %1840 = vmatpush1.bf16.msra.mxu0 %v1375
    %1841 = vmatprep.subr.bf16.mxu0 %v1380
    %1842 = vmatpush1.bf16.msra.mxu0 %v1379
    %1843 = vmatprep.subr.bf16.mxu0 %v1384
    %1844 = vmatpush1.bf16.msra.mxu0 %v1383
    %1845 = vmatprep.subr.bf16.mxu0 %v1388
    %1846 = vmatpush1.bf16.msra.mxu0 %v1387
    %1847 = vmatprep.subr.bf16.mxu0 %v1392
    %1848 = vmatpush1.bf16.msra.mxu0 %v1391
    %1849 = vmatprep.subr.bf16.mxu0 %v1396
    %1850 = vmatpush1.bf16.msra.mxu0 %v1395
    %1851 = vmatprep.subr.bf16.mxu0 %v1400
    %1852 = vmatpush1.bf16.msra.mxu0 %v1399
    %1853 = vmatprep.subr.bf16.mxu0 %v1404
    %1854 = vmatpush1.bf16.msra.mxu0 %v1403
    %1855 = vmatprep.subr.bf16.mxu0 %v1408
    %1856 = vmatpush1.bf16.msra.mxu0 %v1407
    %1857 = vmatprep.subr.bf16.mxu0 %v1412
    %1858 = vmatpush1.bf16.msra.mxu0 %v1411
    %1859 = vmatprep.subr.bf16.mxu0 %v1416
    %1860 = vmatpush1.bf16.msra.mxu0 %v1415
    %1861 = vmatprep.subr.bf16.mxu0 %v1420
    %1862 = vmatpush1.bf16.msra.mxu0 %v1419
    %1863 = vmatprep.subr.bf16.mxu0 %v1424
    %1864 = vmatpush1.bf16.msra.mxu0 %v1423
    %1865 = vmatprep.mubr.bf16.mxu0 %v208
    %1866 = vmatmul.mubr.bf16.gmra.mrb[0].mxu0 %v207
    %v1867 = vpop.f32.mrb[0].mxu0
    %v1868 = vadd.f32 %v1825, %v1867
    %v1869 = vpop.f32.mrb[0].mxu0
    %v1870 = vadd.f32 %v1827, %v1869
    %v1871 = vpop.f32.mrb[0].mxu0
    %v1872 = vadd.f32 %v1829, %v1871
    %v1873 = vpop.f32.mrb[0].mxu0
    %v1874 = vadd.f32 %v1831, %v1873
    %1875 = vdwg.mxu0
    %1876 = vmatprep.subr.bf16.mxu0 %v1428
    %1877 = vmatpush1.bf16.msra.mxu0 %v1427
    %1878 = vmatprep.subr.bf16.mxu0 %v1432
    %1879 = vmatpush1.bf16.msra.mxu0 %v1431
    %1880 = vmatprep.subr.bf16.mxu0 %v1436
    %1881 = vmatpush1.bf16.msra.mxu0 %v1435
    %1882 = vmatprep.subr.bf16.mxu0 %v1440
    %1883 = vmatpush1.bf16.msra.mxu0 %v1439
    %1884 = vmatprep.subr.bf16.mxu0 %v1444
    %1885 = vmatpush1.bf16.msra.mxu0 %v1443
    %1886 = vmatprep.subr.bf16.mxu0 %v1448
    %1887 = vmatpush1.bf16.msra.mxu0 %v1447
    %1888 = vmatprep.subr.bf16.mxu0 %v1452
    %1889 = vmatpush1.bf16.msra.mxu0 %v1451
    %1890 = vmatprep.subr.bf16.mxu0 %v1456
    %1891 = vmatpush1.bf16.msra.mxu0 %v1455
    %1892 = vmatprep.subr.bf16.mxu0 %v1460
    %1893 = vmatpush1.bf16.msra.mxu0 %v1459
    %1894 = vmatprep.subr.bf16.mxu0 %v1464
    %1895 = vmatpush1.bf16.msra.mxu0 %v1463
    %1896 = vmatprep.subr.bf16.mxu0 %v1468
    %1897 = vmatpush1.bf16.msra.mxu0 %v1467
    %1898 = vmatprep.subr.bf16.mxu0 %v1472
    %1899 = vmatpush1.bf16.msra.mxu0 %v1471
    %1900 = vmatprep.subr.bf16.mxu0 %v1476
    %1901 = vmatpush1.bf16.msra.mxu0 %v1475
    %1902 = vmatprep.subr.bf16.mxu0 %v1480
    %1903 = vmatpush1.bf16.msra.mxu0 %v1479
    %1904 = vmatprep.subr.bf16.mxu0 %v1484
    %1905 = vmatpush1.bf16.msra.mxu0 %v1483
    %1906 = vmatprep.subr.bf16.mxu0 %v1488
    %1907 = vmatpush1.bf16.msra.mxu0 %v1487
    %1908 = vmatprep.mubr.bf16.mxu0 %v210
    %1909 = vmatmul.mubr.bf16.gmra.mrb[0].mxu0 %v209
    %v1910 = vpop.f32.mrb[0].mxu0
    %v1911 = vadd.f32 %v1868, %v1910
    %v1912 = vpop.f32.mrb[0].mxu0
    %v1913 = vadd.f32 %v1870, %v1912
    %v1914 = vpop.f32.mrb[0].mxu0
    %v1915 = vadd.f32 %v1872, %v1914
    %v1916 = vpop.f32.mrb[0].mxu0
    %v1917 = vadd.f32 %v1874, %v1916
    %1918 = vdwg.mxu0
    %1919 = vmatprep.subr.bf16.mxu0 %v1238
    %1920 = vmatpush1.bf16.msra.mxu0 %v1237
    %1921 = vmatprep.subr.bf16.mxu0 %v1242
    %1922 = vmatpush1.bf16.msra.mxu0 %v1241
    %1923 = vmatprep.subr.bf16.mxu0 %v1246
    %1924 = vmatpush1.bf16.msra.mxu0 %v1245
    %1925 = vmatprep.subr.bf16.mxu0 %v1250
    %1926 = vmatpush1.bf16.msra.mxu0 %v1249
    %1927 = vmatprep.subr.bf16.mxu0 %v1254
    %1928 = vmatpush1.bf16.msra.mxu0 %v1253
    %1929 = vmatprep.subr.bf16.mxu0 %v1258
    %1930 = vmatpush1.bf16.msra.mxu0 %v1257
    %1931 = vmatprep.subr.bf16.mxu0 %v1262
    %1932 = vmatpush1.bf16.msra.mxu0 %v1261
    %1933 = vmatprep.subr.bf16.mxu0 %v1266
    %1934 = vmatpush1.bf16.msra.mxu0 %v1265
    %1935 = vmatprep.subr.bf16.mxu0 %v1270
    %1936 = vmatpush1.bf16.msra.mxu0 %v1269
    %1937 = vmatprep.subr.bf16.mxu0 %v1274
    %1938 = vmatpush1.bf16.msra.mxu0 %v1273
    %1939 = vmatprep.subr.bf16.mxu0 %v1278
    %1940 = vmatpush1.bf16.msra.mxu0 %v1277
    %1941 = vmatprep.subr.bf16.mxu0 %v1282
    %1942 = vmatpush1.bf16.msra.mxu0 %v1281
    %1943 = vmatprep.subr.bf16.mxu0 %v1286
    %1944 = vmatpush1.bf16.msra.mxu0 %v1285
    %1945 = vmatprep.subr.bf16.mxu0 %v1290
    %1946 = vmatpush1.bf16.msra.mxu0 %v1289
    %1947 = vmatprep.subr.bf16.mxu0 %v1294
    %1948 = vmatpush1.bf16.msra.mxu0 %v1293
    %1949 = vmatprep.subr.bf16.mxu0 %v1298
    %1950 = vmatpush1.bf16.msra.mxu0 %v1297
    %1951 = vmatprep.mubr.bf16.mxu0 %v204
    %1952 = vmatmul.mubr.bf16.gmra.mrb[0].mxu0 %v203
    %v1953 = vpop.f32.mrb[0].mxu0
    %v1954 = vadd.f32 0.0, %v1953
    %v1955 = vpop.f32.mrb[0].mxu0
    %v1956 = vadd.f32 0.0, %v1955
    %v1957 = vpop.f32.mrb[0].mxu0
    %v1958 = vadd.f32 0.0, %v1957
    %v1959 = vpop.f32.mrb[0].mxu0
    %v1960 = vadd.f32 0.0, %v1959
    %1961 = vdwg.mxu0
    %1962 = vmatprep.subr.bf16.mxu0 %v1302
    %1963 = vmatpush1.bf16.msra.mxu0 %v1301
    %1964 = vmatprep.subr.bf16.mxu0 %v1306
    %1965 = vmatpush1.bf16.msra.mxu0 %v1305
    %1966 = vmatprep.subr.bf16.mxu0 %v1310
    %1967 = vmatpush1.bf16.msra.mxu0 %v1309
    %1968 = vmatprep.subr.bf16.mxu0 %v1314
    %1969 = vmatpush1.bf16.msra.mxu0 %v1313
    %1970 = vmatprep.subr.bf16.mxu0 %v1318
    %1971 = vmatpush1.bf16.msra.mxu0 %v1317
    %1972 = vmatprep.subr.bf16.mxu0 %v1322
    %1973 = vmatpush1.bf16.msra.mxu0 %v1321
    %1974 = vmatprep.subr.bf16.mxu0 %v1326
    %1975 = vmatpush1.bf16.msra.mxu0 %v1325
    %1976 = vmatprep.subr.bf16.mxu0 %v1330
    %1977 = vmatpush1.bf16.msra.mxu0 %v1329
    %1978 = vmatprep.subr.bf16.mxu0 %v1334
    %1979 = vmatpush1.bf16.msra.mxu0 %v1333
    %1980 = vmatprep.subr.bf16.mxu0 %v1338
    %1981 = vmatpush1.bf16.msra.mxu0 %v1337
    %1982 = vmatprep.subr.bf16.mxu0 %v1342
    %1983 = vmatpush1.bf16.msra.mxu0 %v1341
    %1984 = vmatprep.subr.bf16.mxu0 %v1346
    %1985 = vmatpush1.bf16.msra.mxu0 %v1345
    %1986 = vmatprep.subr.bf16.mxu0 %v1350
    %1987 = vmatpush1.bf16.msra.mxu0 %v1349
    %1988 = vmatprep.subr.bf16.mxu0 %v1354
    %1989 = vmatpush1.bf16.msra.mxu0 %v1353
    %1990 = vmatprep.subr.bf16.mxu0 %v1358
    %1991 = vmatpush1.bf16.msra.mxu0 %v1357
    %1992 = vmatprep.subr.bf16.mxu0 %v1362
    %1993 = vmatpush1.bf16.msra.mxu0 %v1361
    %1994 = vmatprep.mubr.bf16.mxu0 %v206
    %1995 = vmatmul.mubr.bf16.gmra.mrb[0].mxu0 %v205
    %v1996 = vpop.f32.mrb[0].mxu0
    %v1997 = vadd.f32 %v1954, %v1996
    %v1998 = vpop.f32.mrb[0].mxu0
    %v1999 = vadd.f32 %v1956, %v1998
    %v2000 = vpop.f32.mrb[0].mxu0
    %v2001 = vadd.f32 %v1958, %v2000
    %v2002 = vpop.f32.mrb[0].mxu0
    %v2003 = vadd.f32 %v1960, %v2002
    %2004 = vdwg.mxu0
    %2005 = vmatprep.subr.bf16.mxu0 %v1366
    %2006 = vmatpush1.bf16.msra.mxu0 %v1365
    %2007 = vmatprep.subr.bf16.mxu0 %v1370
    %2008 = vmatpush1.bf16.msra.mxu0 %v1369
    %2009 = vmatprep.subr.bf16.mxu0 %v1374
    %2010 = vmatpush1.bf16.msra.mxu0 %v1373
    %2011 = vmatprep.subr.bf16.mxu0 %v1378
    %2012 = vmatpush1.bf16.msra.mxu0 %v1377
    %2013 = vmatprep.subr.bf16.mxu0 %v1382
    %2014 = vmatpush1.bf16.msra.mxu0 %v1381
    %2015 = vmatprep.subr.bf16.mxu0 %v1386
    %2016 = vmatpush1.bf16.msra.mxu0 %v1385
    %2017 = vmatprep.subr.bf16.mxu0 %v1390
    %2018 = vmatpush1.bf16.msra.mxu0 %v1389
    %2019 = vmatprep.subr.bf16.mxu0 %v1394
    %2020 = vmatpush1.bf16.msra.mxu0 %v1393
    %2021 = vmatprep.subr.bf16.mxu0 %v1398
    %2022 = vmatpush1.bf16.msra.mxu0 %v1397
    %2023 = vmatprep.subr.bf16.mxu0 %v1402
    %2024 = vmatpush1.bf16.msra.mxu0 %v1401
    %2025 = vmatprep.subr.bf16.mxu0 %v1406
    %2026 = vmatpush1.bf16.msra.mxu0 %v1405
    %2027 = vmatprep.subr.bf16.mxu0 %v1410
    %2028 = vmatpush1.bf16.msra.mxu0 %v1409
    %2029 = vmatprep.subr.bf16.mxu0 %v1414
    %2030 = vmatpush1.bf16.msra.mxu0 %v1413
    %2031 = vmatprep.subr.bf16.mxu0 %v1418
    %2032 = vmatpush1.bf16.msra.mxu0 %v1417
    %2033 = vmatprep.subr.bf16.mxu0 %v1422
    %2034 = vmatpush1.bf16.msra.mxu0 %v1421
    %2035 = vmatprep.subr.bf16.mxu0 %v1426
    %2036 = vmatpush1.bf16.msra.mxu0 %v1425
    %2037 = vmatprep.mubr.bf16.mxu0 %v208
    %2038 = vmatmul.mubr.bf16.gmra.mrb[0].mxu0 %v207
    %v2039 = vpop.f32.mrb[0].mxu0
    %v2040 = vadd.f32 %v1997, %v2039
    %v2041 = vpop.f32.mrb[0].mxu0
    %v2042 = vadd.f32 %v1999, %v2041
    %v2043 = vpop.f32.mrb[0].mxu0
    %v2044 = vadd.f32 %v2001, %v2043
    %v2045 = vpop.f32.mrb[0].mxu0
    %v2046 = vadd.f32 %v2003, %v2045
    %2047 = vdwg.mxu0
    %2048 = vmatprep.subr.bf16.mxu0 %v1430
    %2049 = vmatpush1.bf16.msra.mxu0 %v1429
    %2050 = vmatprep.subr.bf16.mxu0 %v1434
    %2051 = vmatpush1.bf16.msra.mxu0 %v1433
    %2052 = vmatprep.subr.bf16.mxu0 %v1438
    %2053 = vmatpush1.bf16.msra.mxu0 %v1437
    %2054 = vmatprep.subr.bf16.mxu0 %v1442
    %2055 = vmatpush1.bf16.msra.mxu0 %v1441
    %2056 = vmatprep.subr.bf16.mxu0 %v1446
    %2057 = vmatpush1.bf16.msra.mxu0 %v1445
    %2058 = vmatprep.subr.bf16.mxu0 %v1450
    %2059 = vmatpush1.bf16.msra.mxu0 %v1449
    %2060 = vmatprep.subr.bf16.mxu0 %v1454
    %2061 = vmatpush1.bf16.msra.mxu0 %v1453
    %2062 = vmatprep.subr.bf16.mxu0 %v1458
    %2063 = vmatpush1.bf16.msra.mxu0 %v1457
    %2064 = vmatprep.subr.bf16.mxu0 %v1462
    %2065 = vmatpush1.bf16.msra.mxu0 %v1461
    %2066 = vmatprep.subr.bf16.mxu0 %v1466
    %2067 = vmatpush1.bf16.msra.mxu0 %v1465
    %2068 = vmatprep.subr.bf16.mxu0 %v1470
    %2069 = vmatpush1.bf16.msra.mxu0 %v1469
    %2070 = vmatprep.subr.bf16.mxu0 %v1474
    %2071 = vmatpush1.bf16.msra.mxu0 %v1473
    %2072 = vmatprep.subr.bf16.mxu0 %v1478
    %2073 = vmatpush1.bf16.msra.mxu0 %v1477
    %2074 = vmatprep.subr.bf16.mxu0 %v1482
    %2075 = vmatpush1.bf16.msra.mxu0 %v1481
    %2076 = vmatprep.subr.bf16.mxu0 %v1486
    %2077 = vmatpush1.bf16.msra.mxu0 %v1485
    %2078 = vmatprep.subr.bf16.mxu0 %v1490
    %2079 = vmatpush1.bf16.msra.mxu0 %v1489
    %2080 = vmatprep.mubr.bf16.mxu0 %v210
    %2081 = vmatmul.mubr.bf16.gmra.mrb[0].mxu0 %v209
    %v2082 = vpop.f32.mrb[0].mxu0
    %v2083 = vadd.f32 %v2040, %v2082
    %v2084 = vpop.f32.mrb[0].mxu0
    %v2085 = vadd.f32 %v2042, %v2084
    %v2086 = vpop.f32.mrb[0].mxu0
    %v2087 = vadd.f32 %v2044, %v2086
    %v2088 = vpop.f32.mrb[0].mxu0
    %v2089 = vadd.f32 %v2046, %v2088
    %2090 = vdwg.mxu0
    %v2091 = vld [vmem:[%s3] sm:$0xf]
    %v2093 = vlaneseq
    %v2094 = vshrl.u32 %v2093, 7
    %v2095 = vsub.s32 0, %v2094
    %v2096 = vrot.slane %v2091, %v2095
    %v2097 = vlaneseq
    %v2098 = vshrl.u32 %v2097, 7
    %v2099 = vsub.s32 1, %v2098
    %v2100 = vrot.slane %v2091, %v2099
    %v2101 = vlaneseq
    %v2102 = vshrl.u32 %v2101, 7
    %v2103 = vsub.s32 2, %v2102
    %v2104 = vrot.slane %v2091, %v2103
    %v2105 = vlaneseq
    %v2106 = vshrl.u32 %v2105, 7
    %v2107 = vsub.s32 3, %v2106
    %v2108 = vrot.slane %v2091, %v2107
    %v2113 = vmul.f32 %v173, %v2096
    %v2114 = vmul.f32 %v173, %v2100
    %v2115 = vmul.f32 %v173, %v2104
    %v2116 = vmul.f32 %v173, %v2108
    %v2117 = vmul.f32 %v174, %v2096
    %v2118 = vmul.f32 %v174, %v2100
    %v2119 = vmul.f32 %v174, %v2104
    %v2120 = vmul.f32 %v174, %v2108
    %v2121 = vsub.f32 %v1911, %v2113
    %v2122 = vsub.f32 %v1913, %v2114
    %v2123 = vsub.f32 %v2083, %v2115
    %v2124 = vsub.f32 %v2085, %v2116
    %v2125 = vsub.f32 %v1915, %v2117
    %v2126 = vsub.f32 %v1917, %v2118
    %v2127 = vsub.f32 %v2087, %v2119
    %v2128 = vsub.f32 %v2089, %v2120
    %v2129 = vmul.f32 %v201, %v2121
    %v2130 = vmul.f32 %v201, %v2122
    %v2131 = vmul.f32 %v201, %v2123
    %v2132 = vmul.f32 %v201, %v2124
    %v2133 = vmul.f32 %v202, %v2125
    %v2134 = vmul.f32 %v202, %v2126
    %v2135 = vmul.f32 %v202, %v2127
    %v2136 = vmul.f32 %v202, %v2128
    %v2137 = vld [vmem:[%s2] sm:$0xf]
    %v2139 = vlaneseq
    %v2140 = vshrl.u32 %v2139, 7
    %v2141 = vsub.s32 0, %v2140
    %v2142 = vrot.slane %v2137, %v2141
    %v2143 = vlaneseq
    %v2144 = vshrl.u32 %v2143, 7
    %v2145 = vsub.s32 1, %v2144
    %v2146 = vrot.slane %v2137, %v2145
    %v2147 = vlaneseq
    %v2148 = vshrl.u32 %v2147, 7
    %v2149 = vsub.s32 2, %v2148
    %v2150 = vrot.slane %v2137, %v2149
    %v2151 = vlaneseq
    %v2152 = vshrl.u32 %v2151, 7
    %v2153 = vsub.s32 3, %v2152
    %v2154 = vrot.slane %v2137, %v2153
    %v2159 = vadd.f32 %v2129, %v2142
    %v2160 = vadd.f32 %v2130, %v2146
    %v2161 = vadd.f32 %v2131, %v2150
    %v2162 = vadd.f32 %v2132, %v2154
    %v2163 = vadd.f32 %v2133, %v2142
    %v2164 = vadd.f32 %v2134, %v2146
    %v2165 = vadd.f32 %v2135, %v2150
    %v2166 = vadd.f32 %v2136, %v2154
    %v2167 = vadd.f32 %v2159, %v2160
    %v2168 = vadd.f32 %v2167, %v2161
    %v2169 = vadd.f32 %v2168, %v2162
    %2170 = vadd.xlane.f32.xlu0 %v2169
    %v2171 = vpop.xlane.xlu0 %2170
    %v2172 = vadd.f32 %v2163, %v2164
    %v2173 = vadd.f32 %v2172, %v2165
    %v2174 = vadd.f32 %v2173, %v2166
    %2175 = vadd.xlane.f32.xlu0 %v2174
    %v2176 = vpop.xlane.xlu0 %2175
    %v2177 = vrcp.pop 512.0
    %v2178 = vmul.f32 %v2171, %v2177
    %v2179 = vmul.f32 %v2176, %v2177
    %v2180 = vsub.f32 %v2159, %v2178
    %v2181 = vsub.f32 %v2160, %v2178
    %v2182 = vsub.f32 %v2161, %v2178
    %v2183 = vsub.f32 %v2162, %v2178
    %v2184 = vsub.f32 %v2163, %v2179
    %v2185 = vsub.f32 %v2164, %v2179
    %v2186 = vsub.f32 %v2165, %v2179
    %v2187 = vsub.f32 %v2166, %v2179
    %v2188 = vmul.f32 %v2180, %v2180
    %v2189 = vmul.f32 %v2181, %v2181
    %v2190 = vmul.f32 %v2182, %v2182
    %v2191 = vmul.f32 %v2183, %v2183
    %v2192 = vmul.f32 %v2184, %v2184
    %v2193 = vmul.f32 %v2185, %v2185
    %v2194 = vmul.f32 %v2186, %v2186
    %v2195 = vmul.f32 %v2187, %v2187
    %v2196 = vadd.f32 %v2188, %v2189
    %v2197 = vadd.f32 %v2196, %v2190
    %v2198 = vadd.f32 %v2197, %v2191
    %2199 = vadd.xlane.f32.xlu0 %v2198
    %v2200 = vpop.xlane.xlu0 %2199
    %v2201 = vadd.f32 %v2192, %v2193
    %v2202 = vadd.f32 %v2201, %v2194
    %v2203 = vadd.f32 %v2202, %v2195
    %2204 = vadd.xlane.f32.xlu0 %v2203
    %v2205 = vpop.xlane.xlu0 %2204
    %v2206 = vmul.f32 %v2200, %v2177
    %v2207 = vmul.f32 %v2205, %v2177
    %v2208 = vadd.f32 %v2206, 1e-05
    %v2209 = vadd.f32 %v2207, 1e-05
    %v2210 = vrsqrt.pop %v2208
    %v2211 = vrsqrt.pop %v2209
    %v2212 = vmul.f32 %v2180, %v2210
    %v2213 = vmul.f32 %v2181, %v2210
    %v2214 = vmul.f32 %v2182, %v2210
    %v2215 = vmul.f32 %v2183, %v2210
    %v2216 = vmul.f32 %v2184, %v2211
    %v2217 = vmul.f32 %v2185, %v2211
    %v2218 = vmul.f32 %v2186, %v2211
    %v2219 = vmul.f32 %v2187, %v2211
    %v2220 = vmax.f32 %v2212, 0.0
    %v2221 = vmax.f32 %v2213, 0.0
    %v2222 = vmax.f32 %v2214, 0.0
    %v2223 = vmax.f32 %v2215, 0.0
    %v2224 = vmax.f32 %v2216, 0.0
    %v2225 = vmax.f32 %v2217, 0.0
    %v2226 = vmax.f32 %v2218, 0.0
    %v2227 = vmax.f32 %v2219, 0.0
    %v2228 = vpack.c.bf16 %v2224, %v2220
    %v2229 = vpack.c.bf16 %v2225, %v2221
    %v2230 = vpack.c.bf16 %v2226, %v2222
    %v2231 = vpack.c.bf16 %v2227, %v2223
    %v2232 = vld [vmem:[#allocation7] sm:$0xff]
    %v2233 = vld [vmem:[#allocation7 + $0x8] sm:$0xff]
    %v2234 = vld [vmem:[#allocation7 + $0x10] sm:$0xff]
    %v2235 = vld [vmem:[#allocation7 + $0x18] sm:$0xff]
    %v2236 = vld [vmem:[#allocation7 + $0x20] sm:$0xff]
    %v2237 = vld [vmem:[#allocation7 + $0x28] sm:$0xff]
    %v2238 = vld [vmem:[#allocation7 + $0x30] sm:$0xff]
    %v2239 = vld [vmem:[#allocation7 + $0x38] sm:$0xff]
    %v2240 = vld [vmem:[#allocation7 + $0x40] sm:$0xff]
    %v2241 = vld [vmem:[#allocation7 + $0x48] sm:$0xff]
    %v2242 = vld [vmem:[#allocation7 + $0x50] sm:$0xff]
    %v2243 = vld [vmem:[#allocation7 + $0x58] sm:$0xff]
    %v2244 = vld [vmem:[#allocation7 + $0x60] sm:$0xff]
    %v2245 = vld [vmem:[#allocation7 + $0x68] sm:$0xff]
    %v2246 = vld [vmem:[#allocation7 + $0x70] sm:$0xff]
    %v2247 = vld [vmem:[#allocation7 + $0x78] sm:$0xff]
    %v2248 = vld [vmem:[#allocation7 + $0x80] sm:$0xff]
    %v2249 = vld [vmem:[#allocation7 + $0x88] sm:$0xff]
    %v2250 = vld [vmem:[#allocation7 + $0x90] sm:$0xff]
    %v2251 = vld [vmem:[#allocation7 + $0x98] sm:$0xff]
    %v2252 = vld [vmem:[#allocation7 + $0xa0] sm:$0xff]
    %v2253 = vld [vmem:[#allocation7 + $0xa8] sm:$0xff]
    %v2254 = vld [vmem:[#allocation7 + $0xb0] sm:$0xff]
    %v2255 = vld [vmem:[#allocation7 + $0xb8] sm:$0xff]
    %v2256 = vld [vmem:[#allocation7 + $0xc0] sm:$0xff]
    %v2257 = vld [vmem:[#allocation7 + $0xc8] sm:$0xff]
    %v2258 = vld [vmem:[#allocation7 + $0xd0] sm:$0xff]
    %v2259 = vld [vmem:[#allocation7 + $0xd8] sm:$0xff]
    %v2260 = vld [vmem:[#allocation7 + $0xe0] sm:$0xff]
    %v2261 = vld [vmem:[#allocation7 + $0xe8] sm:$0xff]
    %v2262 = vld [vmem:[#allocation7 + $0xf0] sm:$0xff]
    %v2263 = vld [vmem:[#allocation7 + $0xf8] sm:$0xff]
    %v2264 = vld [vmem:[#allocation7 + $0x100] sm:$0xff]
    %v2265 = vld [vmem:[#allocation7 + $0x108] sm:$0xff]
    %v2266 = vld [vmem:[#allocation7 + $0x110] sm:$0xff]
    %v2267 = vld [vmem:[#allocation7 + $0x118] sm:$0xff]
    %v2268 = vld [vmem:[#allocation7 + $0x120] sm:$0xff]
    %v2269 = vld [vmem:[#allocation7 + $0x128] sm:$0xff]
    %v2270 = vld [vmem:[#allocation7 + $0x130] sm:$0xff]
    %v2271 = vld [vmem:[#allocation7 + $0x138] sm:$0xff]
    %v2272 = vld [vmem:[#allocation7 + $0x140] sm:$0xff]
    %v2273 = vld [vmem:[#allocation7 + $0x148] sm:$0xff]
    %v2274 = vld [vmem:[#allocation7 + $0x150] sm:$0xff]
    %v2275 = vld [vmem:[#allocation7 + $0x158] sm:$0xff]
    %v2276 = vld [vmem:[#allocation7 + $0x160] sm:$0xff]
    %v2277 = vld [vmem:[#allocation7 + $0x168] sm:$0xff]
    %v2278 = vld [vmem:[#allocation7 + $0x170] sm:$0xff]
    %v2279 = vld [vmem:[#allocation7 + $0x178] sm:$0xff]
    %v2280 = vld [vmem:[#allocation7 + $0x180] sm:$0xff]
    %v2281 = vld [vmem:[#allocation7 + $0x188] sm:$0xff]
    %v2282 = vld [vmem:[#allocation7 + $0x190] sm:$0xff]
    %v2283 = vld [vmem:[#allocation7 + $0x198] sm:$0xff]
    %v2284 = vld [vmem:[#allocation7 + $0x1a0] sm:$0xff]
    %v2285 = vld [vmem:[#allocation7 + $0x1a8] sm:$0xff]
    %v2286 = vld [vmem:[#allocation7 + $0x1b0] sm:$0xff]
    %v2287 = vld [vmem:[#allocation7 + $0x1b8] sm:$0xff]
    %v2288 = vld [vmem:[#allocation7 + $0x1c0] sm:$0xff]
    %v2289 = vld [vmem:[#allocation7 + $0x1c8] sm:$0xff]
    %v2290 = vld [vmem:[#allocation7 + $0x1d0] sm:$0xff]
    %v2291 = vld [vmem:[#allocation7 + $0x1d8] sm:$0xff]
    %v2292 = vld [vmem:[#allocation7 + $0x1e0] sm:$0xff]
    %v2293 = vld [vmem:[#allocation7 + $0x1e8] sm:$0xff]
    %v2294 = vld [vmem:[#allocation7 + $0x1f0] sm:$0xff]
    %v2295 = vld [vmem:[#allocation7 + $0x1f8] sm:$0xff]
    %v2296 = vld [vmem:[%s5] sm:$0x3]
    %v2298 = vlaneseq
    %v2299 = vshrl.u32 %v2298, 7
    %v2300 = vsub.s32 0, %v2299
    %v2301 = vrot.slane %v2296, %v2300
    %v2302 = vlaneseq
    %v2303 = vshrl.u32 %v2302, 7
    %v2304 = vsub.s32 1, %v2303
    %v2305 = vrot.slane %v2296, %v2304
    %v2372 = vunpack.c.l.b16 %v2232
    %v2373 = vunpack.c.h.b16 %v2232
    %v2374 = vunpack.c.l.b16 %v2233
    %v2375 = vunpack.c.h.b16 %v2233
    %v2376 = vunpack.c.l.b16 %v2234
    %v2377 = vunpack.c.h.b16 %v2234
    %v2378 = vunpack.c.l.b16 %v2235
    %v2379 = vunpack.c.h.b16 %v2235
    %v2380 = vunpack.c.l.b16 %v2236
    %v2381 = vunpack.c.h.b16 %v2236
    %v2382 = vunpack.c.l.b16 %v2237
    %v2383 = vunpack.c.h.b16 %v2237
    %v2384 = vunpack.c.l.b16 %v2238
    %v2385 = vunpack.c.h.b16 %v2238
    %v2386 = vunpack.c.l.b16 %v2239
    %v2387 = vunpack.c.h.b16 %v2239
    %v2388 = vunpack.c.l.b16 %v2240
    %v2389 = vunpack.c.h.b16 %v2240
    %v2390 = vunpack.c.l.b16 %v2241
    %v2391 = vunpack.c.h.b16 %v2241
    %v2392 = vunpack.c.l.b16 %v2242
    %v2393 = vunpack.c.h.b16 %v2242
    %v2394 = vunpack.c.l.b16 %v2243
    %v2395 = vunpack.c.h.b16 %v2243
    %v2396 = vunpack.c.l.b16 %v2244
    %v2397 = vunpack.c.h.b16 %v2244
    %v2398 = vunpack.c.l.b16 %v2245
    %v2399 = vunpack.c.h.b16 %v2245
    %v2400 = vunpack.c.l.b16 %v2246
    %v2401 = vunpack.c.h.b16 %v2246
    %v2402 = vunpack.c.l.b16 %v2247
    %v2403 = vunpack.c.h.b16 %v2247
    %v2404 = vunpack.c.l.b16 %v2248
    %v2405 = vunpack.c.h.b16 %v2248
    %v2406 = vunpack.c.l.b16 %v2249
    %v2407 = vunpack.c.h.b16 %v2249
    %v2408 = vunpack.c.l.b16 %v2250
    %v2409 = vunpack.c.h.b16 %v2250
    %v2410 = vunpack.c.l.b16 %v2251
    %v2411 = vunpack.c.h.b16 %v2251
    %v2412 = vunpack.c.l.b16 %v2252
    %v2413 = vunpack.c.h.b16 %v2252
    %v2414 = vunpack.c.l.b16 %v2253
    %v2415 = vunpack.c.h.b16 %v2253
    %v2416 = vunpack.c.l.b16 %v2254
    %v2417 = vunpack.c.h.b16 %v2254
    %v2418 = vunpack.c.l.b16 %v2255
    %v2419 = vunpack.c.h.b16 %v2255
    %v2420 = vunpack.c.l.b16 %v2256
    %v2421 = vunpack.c.h.b16 %v2256
    %v2422 = vunpack.c.l.b16 %v2257
    %v2423 = vunpack.c.h.b16 %v2257
    %v2424 = vunpack.c.l.b16 %v2258
    %v2425 = vunpack.c.h.b16 %v2258
    %v2426 = vunpack.c.l.b16 %v2259
    %v2427 = vunpack.c.h.b16 %v2259
    %v2428 = vunpack.c.l.b16 %v2260
    %v2429 = vunpack.c.h.b16 %v2260
    %v2430 = vunpack.c.l.b16 %v2261
    %v2431 = vunpack.c.h.b16 %v2261
    %v2432 = vunpack.c.l.b16 %v2262
    %v2433 = vunpack.c.h.b16 %v2262
    %v2434 = vunpack.c.l.b16 %v2263
    %v2435 = vunpack.c.h.b16 %v2263
    %v2436 = vunpack.c.l.b16 %v2264
    %v2437 = vunpack.c.h.b16 %v2264
    %v2438 = vunpack.c.l.b16 %v2265
    %v2439 = vunpack.c.h.b16 %v2265
    %v2440 = vunpack.c.l.b16 %v2266
    %v2441 = vunpack.c.h.b16 %v2266
    %v2442 = vunpack.c.l.b16 %v2267
    %v2443 = vunpack.c.h.b16 %v2267
    %v2444 = vunpack.c.l.b16 %v2268
    %v2445 = vunpack.c.h.b16 %v2268
    %v2446 = vunpack.c.l.b16 %v2269
    %v2447 = vunpack.c.h.b16 %v2269
    %v2448 = vunpack.c.l.b16 %v2270
    %v2449 = vunpack.c.h.b16 %v2270
    %v2450 = vunpack.c.l.b16 %v2271
    %v2451 = vunpack.c.h.b16 %v2271
    %v2452 = vunpack.c.l.b16 %v2272
    %v2453 = vunpack.c.h.b16 %v2272
    %v2454 = vunpack.c.l.b16 %v2273
    %v2455 = vunpack.c.h.b16 %v2273
    %v2456 = vunpack.c.l.b16 %v2274
    %v2457 = vunpack.c.h.b16 %v2274
    %v2458 = vunpack.c.l.b16 %v2275
    %v2459 = vunpack.c.h.b16 %v2275
    %v2460 = vunpack.c.l.b16 %v2276
    %v2461 = vunpack.c.h.b16 %v2276
    %v2462 = vunpack.c.l.b16 %v2277
    %v2463 = vunpack.c.h.b16 %v2277
    %v2464 = vunpack.c.l.b16 %v2278
    %v2465 = vunpack.c.h.b16 %v2278
    %v2466 = vunpack.c.l.b16 %v2279
    %v2467 = vunpack.c.h.b16 %v2279
    %v2468 = vunpack.c.l.b16 %v2280
    %v2469 = vunpack.c.h.b16 %v2280
    %v2470 = vunpack.c.l.b16 %v2281
    %v2471 = vunpack.c.h.b16 %v2281
    %v2472 = vunpack.c.l.b16 %v2282
    %v2473 = vunpack.c.h.b16 %v2282
    %v2474 = vunpack.c.l.b16 %v2283
    %v2475 = vunpack.c.h.b16 %v2283
    %v2476 = vunpack.c.l.b16 %v2284
    %v2477 = vunpack.c.h.b16 %v2284
    %v2478 = vunpack.c.l.b16 %v2285
    %v2479 = vunpack.c.h.b16 %v2285
    %v2480 = vunpack.c.l.b16 %v2286
    %v2481 = vunpack.c.h.b16 %v2286
    %v2482 = vunpack.c.l.b16 %v2287
    %v2483 = vunpack.c.h.b16 %v2287
    %v2484 = vunpack.c.l.b16 %v2288
    %v2485 = vunpack.c.h.b16 %v2288
    %v2486 = vunpack.c.l.b16 %v2289
    %v2487 = vunpack.c.h.b16 %v2289
    %v2488 = vunpack.c.l.b16 %v2290
    %v2489 = vunpack.c.h.b16 %v2290
    %v2490 = vunpack.c.l.b16 %v2291
    %v2491 = vunpack.c.h.b16 %v2291
    %v2492 = vunpack.c.l.b16 %v2292
    %v2493 = vunpack.c.h.b16 %v2292
    %v2494 = vunpack.c.l.b16 %v2293
    %v2495 = vunpack.c.h.b16 %v2293
    %v2496 = vunpack.c.l.b16 %v2294
    %v2497 = vunpack.c.h.b16 %v2294
    %v2498 = vunpack.c.l.b16 %v2295
    %v2499 = vunpack.c.h.b16 %v2295
    %v2500 = vpack.c.b16 %v2374, %v2372
    %v2501 = vpack.c.b16 %v2375, %v2373
    %v2502 = vpack.c.b16 %v2378, %v2376
    %v2503 = vpack.c.b16 %v2379, %v2377
    %v2504 = vpack.c.b16 %v2382, %v2380
    %v2505 = vpack.c.b16 %v2383, %v2381
    %v2506 = vpack.c.b16 %v2386, %v2384
    %v2507 = vpack.c.b16 %v2387, %v2385
    %v2508 = vpack.c.b16 %v2390, %v2388
    %v2509 = vpack.c.b16 %v2391, %v2389
    %v2510 = vpack.c.b16 %v2394, %v2392
    %v2511 = vpack.c.b16 %v2395, %v2393
    %v2512 = vpack.c.b16 %v2398, %v2396
    %v2513 = vpack.c.b16 %v2399, %v2397
    %v2514 = vpack.c.b16 %v2402, %v2400
    %v2515 = vpack.c.b16 %v2403, %v2401
    %v2516 = vpack.c.b16 %v2406, %v2404
    %v2517 = vpack.c.b16 %v2407, %v2405
    %v2518 = vpack.c.b16 %v2410, %v2408
    %v2519 = vpack.c.b16 %v2411, %v2409
    %v2520 = vpack.c.b16 %v2414, %v2412
    %v2521 = vpack.c.b16 %v2415, %v2413
    %v2522 = vpack.c.b16 %v2418, %v2416
    %v2523 = vpack.c.b16 %v2419, %v2417
    %v2524 = vpack.c.b16 %v2422, %v2420
    %v2525 = vpack.c.b16 %v2423, %v2421
    %v2526 = vpack.c.b16 %v2426, %v2424
    %v2527 = vpack.c.b16 %v2427, %v2425
    %v2528 = vpack.c.b16 %v2430, %v2428
    %v2529 = vpack.c.b16 %v2431, %v2429
    %v2530 = vpack.c.b16 %v2434, %v2432
    %v2531 = vpack.c.b16 %v2435, %v2433
    %v2532 = vpack.c.b16 %v2438, %v2436
    %v2533 = vpack.c.b16 %v2439, %v2437
    %v2534 = vpack.c.b16 %v2442, %v2440
    %v2535 = vpack.c.b16 %v2443, %v2441
    %v2536 = vpack.c.b16 %v2446, %v2444
    %v2537 = vpack.c.b16 %v2447, %v2445
    %v2538 = vpack.c.b16 %v2450, %v2448
    %v2539 = vpack.c.b16 %v2451, %v2449
    %v2540 = vpack.c.b16 %v2454, %v2452
    %v2541 = vpack.c.b16 %v2455, %v2453
    %v2542 = vpack.c.b16 %v2458, %v2456
    %v2543 = vpack.c.b16 %v2459, %v2457
    %v2544 = vpack.c.b16 %v2462, %v2460
    %v2545 = vpack.c.b16 %v2463, %v2461
    %v2546 = vpack.c.b16 %v2466, %v2464
    %v2547 = vpack.c.b16 %v2467, %v2465
    %v2548 = vpack.c.b16 %v2470, %v2468
    %v2549 = vpack.c.b16 %v2471, %v2469
    %v2550 = vpack.c.b16 %v2474, %v2472
    %v2551 = vpack.c.b16 %v2475, %v2473
    %v2552 = vpack.c.b16 %v2478, %v2476
    %v2553 = vpack.c.b16 %v2479, %v2477
    %v2554 = vpack.c.b16 %v2482, %v2480
    %v2555 = vpack.c.b16 %v2483, %v2481
    %v2556 = vpack.c.b16 %v2486, %v2484
    %v2557 = vpack.c.b16 %v2487, %v2485
    %v2558 = vpack.c.b16 %v2490, %v2488
    %v2559 = vpack.c.b16 %v2491, %v2489
    %v2560 = vpack.c.b16 %v2494, %v2492
    %v2561 = vpack.c.b16 %v2495, %v2493
    %v2562 = vpack.c.b16 %v2498, %v2496
    %v2563 = vpack.c.b16 %v2499, %v2497
    %2628 = vmatprep.subr.bf16.mxu0 %v2501
    %2629 = vmatpush1.bf16.msra.mxu0 %v2500
    %2630 = vmatprep.subr.bf16.mxu0 %v2503
    %2631 = vmatpush1.bf16.msra.mxu0 %v2502
    %2632 = vmatprep.subr.bf16.mxu0 %v2505
    %2633 = vmatpush1.bf16.msra.mxu0 %v2504
    %2634 = vmatprep.subr.bf16.mxu0 %v2507
    %2635 = vmatpush1.bf16.msra.mxu0 %v2506
    %2636 = vmatprep.subr.bf16.mxu0 %v2509
    %2637 = vmatpush1.bf16.msra.mxu0 %v2508
    %2638 = vmatprep.subr.bf16.mxu0 %v2511
    %2639 = vmatpush1.bf16.msra.mxu0 %v2510
    %2640 = vmatprep.subr.bf16.mxu0 %v2513
    %2641 = vmatpush1.bf16.msra.mxu0 %v2512
    %2642 = vmatprep.subr.bf16.mxu0 %v2515
    %2643 = vmatpush1.bf16.msra.mxu0 %v2514
    %2644 = vmatprep.subr.bf16.mxu0 %v2517
    %2645 = vmatpush1.bf16.msra.mxu0 %v2516
    %2646 = vmatprep.subr.bf16.mxu0 %v2519
    %2647 = vmatpush1.bf16.msra.mxu0 %v2518
    %2648 = vmatprep.subr.bf16.mxu0 %v2521
    %2649 = vmatpush1.bf16.msra.mxu0 %v2520
    %2650 = vmatprep.subr.bf16.mxu0 %v2523
    %2651 = vmatpush1.bf16.msra.mxu0 %v2522
    %2652 = vmatprep.subr.bf16.mxu0 %v2525
    %2653 = vmatpush1.bf16.msra.mxu0 %v2524
    %2654 = vmatprep.subr.bf16.mxu0 %v2527
    %2655 = vmatpush1.bf16.msra.mxu0 %v2526
    %2656 = vmatprep.subr.bf16.mxu0 %v2529
    %2657 = vmatpush1.bf16.msra.mxu0 %v2528
    %2658 = vmatprep.subr.bf16.mxu0 %v2531
    %2659 = vmatpush1.bf16.msra.mxu0 %v2530
    %2660 = vmatprep.mubr.bf16.mxu0 %v2229
    %2661 = vmatmul.mubr.bf16.gmra.mrb[0].mxu0 %v2228
    %v2662 = vpop.f32.mrb[0].mxu0
    %v2663 = vadd.f32 %v2301, %v2662
    %v2664 = vpop.f32.mrb[0].mxu0
    %v2665 = vadd.f32 %v2305, %v2664
    %v2666 = vpop.f32.mrb[0].mxu0
    %v2667 = vadd.f32 %v2301, %v2666
    %v2668 = vpop.f32.mrb[0].mxu0
    %v2669 = vadd.f32 %v2305, %v2668
    %2670 = vdwg.mxu0
    %2671 = vmatprep.subr.bf16.mxu0 %v2533
    %2672 = vmatpush1.bf16.msra.mxu0 %v2532
    %2673 = vmatprep.subr.bf16.mxu0 %v2535
    %2674 = vmatpush1.bf16.msra.mxu0 %v2534
    %2675 = vmatprep.subr.bf16.mxu0 %v2537
    %2676 = vmatpush1.bf16.msra.mxu0 %v2536
    %2677 = vmatprep.subr.bf16.mxu0 %v2539
    %2678 = vmatpush1.bf16.msra.mxu0 %v2538
    %2679 = vmatprep.subr.bf16.mxu0 %v2541
    %2680 = vmatpush1.bf16.msra.mxu0 %v2540
    %2681 = vmatprep.subr.bf16.mxu0 %v2543
    %2682 = vmatpush1.bf16.msra.mxu0 %v2542
    %2683 = vmatprep.subr.bf16.mxu0 %v2545
    %2684 = vmatpush1.bf16.msra.mxu0 %v2544
    %2685 = vmatprep.subr.bf16.mxu0 %v2547
    %2686 = vmatpush1.bf16.msra.mxu0 %v2546
    %2687 = vmatprep.subr.bf16.mxu0 %v2549
    %2688 = vmatpush1.bf16.msra.mxu0 %v2548
    %2689 = vmatprep.subr.bf16.mxu0 %v2551
    %2690 = vmatpush1.bf16.msra.mxu0 %v2550
    %2691 = vmatprep.subr.bf16.mxu0 %v2553
    %2692 = vmatpush1.bf16.msra.mxu0 %v2552
    %2693 = vmatprep.subr.bf16.mxu0 %v2555
    %2694 = vmatpush1.bf16.msra.mxu0 %v2554
    %2695 = vmatprep.subr.bf16.mxu0 %v2557
    %2696 = vmatpush1.bf16.msra.mxu0 %v2556
    %2697 = vmatprep.subr.bf16.mxu0 %v2559
    %2698 = vmatpush1.bf16.msra.mxu0 %v2558
    %2699 = vmatprep.subr.bf16.mxu0 %v2561
    %2700 = vmatpush1.bf16.msra.mxu0 %v2560
    %2701 = vmatprep.subr.bf16.mxu0 %v2563
    %2702 = vmatpush1.bf16.msra.mxu0 %v2562
    %2703 = vmatprep.mubr.bf16.mxu0 %v2231
    %2704 = vmatmul.mubr.bf16.gmra.mrb[0].mxu0 %v2230
    %v2705 = vpop.f32.mrb[0].mxu0
    %v2706 = vadd.f32 %v2663, %v2705
    %v2707 = vpop.f32.mrb[0].mxu0
    %v2708 = vadd.f32 %v2665, %v2707
    %v2709 = vpop.f32.mrb[0].mxu0
    %v2710 = vadd.f32 %v2667, %v2709
    %v2711 = vpop.f32.mrb[0].mxu0
    %v2712 = vadd.f32 %v2669, %v2711
    %2713 = vdwg.mxu0
    %v2714 = vadd.f32 %v2706, %v2708
    %2715 = vadd.xlane.f32.xlu0 %v2714
    %v2716 = vpop.xlane.xlu0 %2715
    %v2717 = vadd.f32 %v2710, %v2712
    %2718 = vadd.xlane.f32.xlu0 %v2717
    %v2719 = vpop.xlane.xlu0 %2718
    %v2720 = vrcp.pop 256.0
    %v2721 = vmul.f32 %v2716, %v2720
    %v2722 = vmul.f32 %v2719, %v2720
    %v2723 = vsub.f32 %v2706, %v2721
    %v2724 = vsub.f32 %v2708, %v2721
    %v2725 = vsub.f32 %v2710, %v2722
    %v2726 = vsub.f32 %v2712, %v2722
    %v2727 = vmul.f32 %v2723, %v2723
    %v2728 = vmul.f32 %v2724, %v2724
    %v2729 = vmul.f32 %v2725, %v2725
    %v2730 = vmul.f32 %v2726, %v2726
    %v2731 = vadd.f32 %v2727, %v2728
    %2732 = vadd.xlane.f32.xlu0 %v2731
    %v2733 = vpop.xlane.xlu0 %2732
    %v2734 = vadd.f32 %v2729, %v2730
    %2735 = vadd.xlane.f32.xlu0 %v2734
    %v2736 = vpop.xlane.xlu0 %2735
    %v2737 = vmul.f32 %v2733, %v2720
    %v2738 = vmul.f32 %v2736, %v2720
    %v2739 = vadd.f32 %v2737, 1e-05
    %v2740 = vadd.f32 %v2738, 1e-05
    %v2741 = vrsqrt.pop %v2739
    %v2742 = vrsqrt.pop %v2740
    %v2743 = vmul.f32 %v2723, %v2741
    %v2744 = vmul.f32 %v2724, %v2741
    %v2745 = vmul.f32 %v2725, %v2742
    %v2746 = vmul.f32 %v2726, %v2742
    %v2747 = vmax.f32 %v2743, 0.0
    %v2748 = vmax.f32 %v2744, 0.0
    %v2749 = vmax.f32 %v2745, 0.0
    %v2750 = vmax.f32 %v2746, 0.0
    %v2751 = vpack.c.bf16 %v2749, %v2747
    %v2752 = vpack.c.bf16 %v2750, %v2748
    %v2753 = vld [vmem:[#allocation8] sm:$0xf]
    %v2754 = vld [vmem:[#allocation8 + $0x4] sm:$0xf]
    %v2755 = vld [vmem:[#allocation8 + $0x8] sm:$0xf]
    %v2756 = vld [vmem:[#allocation8 + $0xc] sm:$0xf]
    %v2757 = vld [vmem:[#allocation8 + $0x10] sm:$0xf]
    %v2758 = vld [vmem:[#allocation8 + $0x14] sm:$0xf]
    %v2759 = vld [vmem:[#allocation8 + $0x18] sm:$0xf]
    %v2760 = vld [vmem:[#allocation8 + $0x1c] sm:$0xf]
    %v2761 = vld [vmem:[#allocation8 + $0x20] sm:$0xf]
    %v2762 = vld [vmem:[#allocation8 + $0x24] sm:$0xf]
    %v2763 = vld [vmem:[#allocation8 + $0x28] sm:$0xf]
    %v2764 = vld [vmem:[#allocation8 + $0x2c] sm:$0xf]
    %v2765 = vld [vmem:[#allocation8 + $0x30] sm:$0xf]
    %v2766 = vld [vmem:[#allocation8 + $0x34] sm:$0xf]
    %v2767 = vld [vmem:[#allocation8 + $0x38] sm:$0xf]
    %v2768 = vld [vmem:[#allocation8 + $0x3c] sm:$0xf]
    %v2769 = vld [vmem:[#allocation8 + $0x40] sm:$0xf]
    %v2770 = vld [vmem:[#allocation8 + $0x44] sm:$0xf]
    %v2771 = vld [vmem:[#allocation8 + $0x48] sm:$0xf]
    %v2772 = vld [vmem:[#allocation8 + $0x4c] sm:$0xf]
    %v2773 = vld [vmem:[#allocation8 + $0x50] sm:$0xf]
    %v2774 = vld [vmem:[#allocation8 + $0x54] sm:$0xf]
    %v2775 = vld [vmem:[#allocation8 + $0x58] sm:$0xf]
    %v2776 = vld [vmem:[#allocation8 + $0x5c] sm:$0xf]
    %v2777 = vld [vmem:[#allocation8 + $0x60] sm:$0xf]
    %v2778 = vld [vmem:[#allocation8 + $0x64] sm:$0xf]
    %v2779 = vld [vmem:[#allocation8 + $0x68] sm:$0xf]
    %v2780 = vld [vmem:[#allocation8 + $0x6c] sm:$0xf]
    %v2781 = vld [vmem:[#allocation8 + $0x70] sm:$0xf]
    %v2782 = vld [vmem:[#allocation8 + $0x74] sm:$0xf]
    %v2783 = vld [vmem:[#allocation8 + $0x78] sm:$0xf]
    %v2784 = vld [vmem:[#allocation8 + $0x7c] sm:$0xf]
    %v2785 = vld [vmem:[%s7] sm:$0x1]
    %v2787 = vlaneseq
    %v2788 = vshrl.u32 %v2787, 7
    %v2789 = vsub.s32 0, %v2788
    %v2790 = vrot.slane %v2785, %v2789
    %v2824 = vunpack.c.l.b16 %v2753
    %v2825 = vunpack.c.l.b16 %v2754
    %v2826 = vunpack.c.l.b16 %v2755
    %v2827 = vunpack.c.l.b16 %v2756
    %v2828 = vunpack.c.l.b16 %v2757
    %v2829 = vunpack.c.l.b16 %v2758
    %v2830 = vunpack.c.l.b16 %v2759
    %v2831 = vunpack.c.l.b16 %v2760
    %v2832 = vunpack.c.l.b16 %v2761
    %v2833 = vunpack.c.l.b16 %v2762
    %v2834 = vunpack.c.l.b16 %v2763
    %v2835 = vunpack.c.l.b16 %v2764
    %v2836 = vunpack.c.l.b16 %v2765
    %v2837 = vunpack.c.l.b16 %v2766
    %v2838 = vunpack.c.l.b16 %v2767
    %v2839 = vunpack.c.l.b16 %v2768
    %v2840 = vunpack.c.l.b16 %v2769
    %v2841 = vunpack.c.l.b16 %v2770
    %v2842 = vunpack.c.l.b16 %v2771
    %v2843 = vunpack.c.l.b16 %v2772
    %v2844 = vunpack.c.l.b16 %v2773
    %v2845 = vunpack.c.l.b16 %v2774
    %v2846 = vunpack.c.l.b16 %v2775
    %v2847 = vunpack.c.l.b16 %v2776
    %v2848 = vunpack.c.l.b16 %v2777
    %v2849 = vunpack.c.l.b16 %v2778
    %v2850 = vunpack.c.l.b16 %v2779
    %v2851 = vunpack.c.l.b16 %v2780
    %v2852 = vunpack.c.l.b16 %v2781
    %v2853 = vunpack.c.l.b16 %v2782
    %v2854 = vunpack.c.l.b16 %v2783
    %v2855 = vunpack.c.l.b16 %v2784
    %v2856 = vpack.c.b16 %v2825, %v2824
    %v2857 = vpack.c.b16 %v2827, %v2826
    %v2858 = vpack.c.b16 %v2829, %v2828
    %v2859 = vpack.c.b16 %v2831, %v2830
    %v2860 = vpack.c.b16 %v2833, %v2832
    %v2861 = vpack.c.b16 %v2835, %v2834
    %v2862 = vpack.c.b16 %v2837, %v2836
    %v2863 = vpack.c.b16 %v2839, %v2838
    %v2864 = vpack.c.b16 %v2841, %v2840
    %v2865 = vpack.c.b16 %v2843, %v2842
    %v2866 = vpack.c.b16 %v2845, %v2844
    %v2867 = vpack.c.b16 %v2847, %v2846
    %v2868 = vpack.c.b16 %v2849, %v2848
    %v2869 = vpack.c.b16 %v2851, %v2850
    %v2870 = vpack.c.b16 %v2853, %v2852
    %v2871 = vpack.c.b16 %v2855, %v2854
    %2888 = vmatprep.subr.bf16.mxu0 0
    %2889 = vmatpush1.bf16.msra.mxu0 %v2856
    %2890 = vmatprep.subr.bf16.mxu0 0
    %2891 = vmatpush1.bf16.msra.mxu0 %v2857
    %2892 = vmatprep.subr.bf16.mxu0 0
    %2893 = vmatpush1.bf16.msra.mxu0 %v2858
    %2894 = vmatprep.subr.bf16.mxu0 0
    %2895 = vmatpush1.bf16.msra.mxu0 %v2859
    %2896 = vmatprep.subr.bf16.mxu0 0
    %2897 = vmatpush1.bf16.msra.mxu0 %v2860
    %2898 = vmatprep.subr.bf16.mxu0 0
    %2899 = vmatpush1.bf16.msra.mxu0 %v2861
    %2900 = vmatprep.subr.bf16.mxu0 0
    %2901 = vmatpush1.bf16.msra.mxu0 %v2862
    %2902 = vmatprep.subr.bf16.mxu0 0
    %2903 = vmatpush1.bf16.msra.mxu0 %v2863
    %2904 = vmatprep.subr.bf16.mxu0 0
    %2905 = vmatpush1.bf16.msra.mxu0 %v2864
    %2906 = vmatprep.subr.bf16.mxu0 0
    %2907 = vmatpush1.bf16.msra.mxu0 %v2865
    %2908 = vmatprep.subr.bf16.mxu0 0
    %2909 = vmatpush1.bf16.msra.mxu0 %v2866
    %2910 = vmatprep.subr.bf16.mxu0 0
    %2911 = vmatpush1.bf16.msra.mxu0 %v2867
    %2912 = vmatprep.subr.bf16.mxu0 0
    %2913 = vmatpush1.bf16.msra.mxu0 %v2868
    %2914 = vmatprep.subr.bf16.mxu0 0
    %2915 = vmatpush1.bf16.msra.mxu0 %v2869
    %2916 = vmatprep.subr.bf16.mxu0 0
    %2917 = vmatpush1.bf16.msra.mxu0 %v2870
    %2918 = vmatprep.subr.bf16.mxu0 0
    %2919 = vmatpush1.bf16.msra.mxu0 %v2871
    %2920 = vmatprep.mubr.bf16.mxu0 %v2752
    %2921 = vmatmul.mubr.bf16.gmra.mrb[0].mxu0 %v2751
    %v2922 = vpop.f32.mrb[0].mxu0
    %v2923 = vadd.f32 %v2790, %v2922
    %v2924 = vpop.f32.mrb[0].mxu0
    %v2925 = vpop.f32.mrb[0].mxu0
    %v2926 = vadd.f32 %v2790, %v2925
    %v2927 = vpop.f32.mrb[0].mxu0
    %2928 = vdwg.mxu0
    %2929 = vadd.xlane.f32.xlu0 %v2923
    %v2930 = vpop.xlane.xlu0 %2929
    %2931 = vadd.xlane.f32.xlu0 %v2926
    %v2932 = vpop.xlane.xlu0 %2931
    %v2933 = vrcp.pop 128.0
    %v2934 = vmul.f32 %v2930, %v2933
    %v2935 = vmul.f32 %v2932, %v2933
    %v2936 = vsub.f32 %v2923, %v2934
    %v2937 = vsub.f32 %v2926, %v2935
    %v2938 = vmul.f32 %v2936, %v2936
    %v2939 = vmul.f32 %v2937, %v2937
    %2940 = vadd.xlane.f32.xlu0 %v2938
    %v2941 = vpop.xlane.xlu0 %2940
    %2942 = vadd.xlane.f32.xlu0 %v2939
    %v2943 = vpop.xlane.xlu0 %2942
    %v2944 = vmul.f32 %v2941, %v2933
    %v2945 = vmul.f32 %v2943, %v2933
    %v2946 = vadd.f32 %v2944, 1e-05
    %v2947 = vadd.f32 %v2945, 1e-05
    %v2948 = vrsqrt.pop %v2946
    %v2949 = vrsqrt.pop %v2947
    %v2950 = vmul.f32 %v2936, %v2948
    %v2951 = vmul.f32 %v2937, %v2949
    %v2952 = vmax.f32 %v2950, 0.0
    %v2953 = vmax.f32 %v2951, 0.0
    %v2954 = vpack.c.bf16 %v2953, %v2952
    %v2955 = vld [vmem:[#allocation10] sm:$0xf]
    %v2956 = vld [vmem:[#allocation10 + $0x4] sm:$0xf]
    %v2957 = vld [vmem:[#allocation10 + $0x8] sm:$0xf]
    %v2958 = vld [vmem:[#allocation10 + $0xc] sm:$0xf]
    %v2959 = vld [vmem:[#allocation10 + $0x10] sm:$0xf]
    %v2960 = vld [vmem:[#allocation10 + $0x14] sm:$0xf]
    %v2961 = vld [vmem:[#allocation10 + $0x18] sm:$0xf]
    %v2962 = vld [vmem:[#allocation10 + $0x1c] sm:$0xf]
    %v2963 = vld [vmem:[#allocation10 + $0x20] sm:$0xf]
    %v2964 = vld [vmem:[#allocation10 + $0x24] sm:$0xf]
    %v2965 = vld [vmem:[#allocation10 + $0x28] sm:$0xf]
    %v2966 = vld [vmem:[#allocation10 + $0x2c] sm:$0xf]
    %v2967 = vld [vmem:[#allocation10 + $0x30] sm:$0xf]
    %v2968 = vld [vmem:[#allocation10 + $0x34] sm:$0xf]
    %v2969 = vld [vmem:[#allocation10 + $0x38] sm:$0xf]
    %v2970 = vld [vmem:[#allocation10 + $0x3c] sm:$0xf]
    %v2971 = vld [vmem:[%s9] sm:$0x1]
    %v2973 = vlaneseq
    %v2974 = vshrl.u32 %v2973, 7
    %v2975 = vsub.s32 0, %v2974
    %v2976 = vrot.slane %v2971, %v2975
    %v2994 = vunpack.c.l.b16 %v2955
    %v2995 = vunpack.c.l.b16 %v2956
    %v2996 = vunpack.c.l.b16 %v2957
    %v2997 = vunpack.c.l.b16 %v2958
    %v2998 = vunpack.c.l.b16 %v2959
    %v2999 = vunpack.c.l.b16 %v2960
    %v3000 = vunpack.c.l.b16 %v2961
    %v3001 = vunpack.c.l.b16 %v2962
    %v3002 = vunpack.c.l.b16 %v2963
    %v3003 = vunpack.c.l.b16 %v2964
    %v3004 = vunpack.c.l.b16 %v2965
    %v3005 = vunpack.c.l.b16 %v2966
    %v3006 = vunpack.c.l.b16 %v2967
    %v3007 = vunpack.c.l.b16 %v2968
    %v3008 = vunpack.c.l.b16 %v2969
    %v3009 = vunpack.c.l.b16 %v2970
    %v3010 = vpack.c.b16 %v2995, %v2994
    %v3011 = vpack.c.b16 %v2997, %v2996
    %v3012 = vpack.c.b16 %v2999, %v2998
    %v3013 = vpack.c.b16 %v3001, %v3000
    %v3014 = vpack.c.b16 %v3003, %v3002
    %v3015 = vpack.c.b16 %v3005, %v3004
    %v3016 = vpack.c.b16 %v3007, %v3006
    %v3017 = vpack.c.b16 %v3009, %v3008
    %3026 = vmatprep.subr.bf16.mxu0 0
    %3027 = vmatpush1.bf16.msra.mxu0 %v3010
    %3028 = vmatprep.subr.bf16.mxu0 0
    %3029 = vmatpush1.bf16.msra.mxu0 %v3011
    %3030 = vmatprep.subr.bf16.mxu0 0
    %3031 = vmatpush1.bf16.msra.mxu0 %v3012
    %3032 = vmatprep.subr.bf16.mxu0 0
    %3033 = vmatpush1.bf16.msra.mxu0 %v3013
    %3034 = vmatprep.subr.bf16.mxu0 0
    %3035 = vmatpush1.bf16.msra.mxu0 %v3014
    %3036 = vmatprep.subr.bf16.mxu0 0
    %3037 = vmatpush1.bf16.msra.mxu0 %v3015
    %3038 = vmatprep.subr.bf16.mxu0 0
    %3039 = vmatpush1.bf16.msra.mxu0 %v3016
    %3040 = vmatprep.subr.bf16.mxu0 0
    %3041 = vmatpush1.bf16.msra.mxu0 %v3017
    %3042 = vmatprep.subr.bf16.mxu0 0
    %3043 = vmatpush1.bf16.msra.mxu0 0
    %3044 = vmatprep.subr.bf16.mxu0 0
    %3045 = vmatpush1.bf16.msra.mxu0 0
    %3046 = vmatprep.subr.bf16.mxu0 0
    %3047 = vmatpush1.bf16.msra.mxu0 0
    %3048 = vmatprep.subr.bf16.mxu0 0
    %3049 = vmatpush1.bf16.msra.mxu0 0
    %3050 = vmatprep.subr.bf16.mxu0 0
    %3051 = vmatpush1.bf16.msra.mxu0 0
    %3052 = vmatprep.subr.bf16.mxu0 0
    %3053 = vmatpush1.bf16.msra.mxu0 0
    %3054 = vmatprep.subr.bf16.mxu0 0
    %3055 = vmatpush1.bf16.msra.mxu0 0
    %3056 = vmatprep.subr.bf16.mxu0 0
    %3057 = vmatpush1.bf16.msra.mxu0 0
    %3058 = vmatprep.mubr.bf16.mxu0 0
    %3059 = vmatmul.mubr.bf16.gmra.mrb[0].mxu0 %v2954
    %v3060 = vpop.f32.mrb[0].mxu0
    %v3061 = vadd.f32 %v2976, %v3060
    %v3062 = vpop.f32.mrb[0].mxu0
    %v3063 = vpop.f32.mrb[0].mxu0
    %v3064 = vadd.f32 %v2976, %v3063
    %v3065 = vpop.f32.mrb[0].mxu0
    %3066 = vdwg.mxu0
    %v3067 = vxor.u32 %v3061, 2147483648
    %v3068 = vxor.u32 %v3064, 2147483648
    %v3069 = vmul.f32 %v3067, 1.442695
    %v3070 = vpow.pop %v3069
    %v3071 = vmul.f32 %v3068, 1.442695
    %v3072 = vpow.pop %v3071
    %v3073 = vadd.f32 %v3070, 1.0
    %v3074 = vadd.f32 %v3072, 1.0
    %v3075 = vrcp.pop %v3073
    %v3076 = vmul.f32 1.0, %v3075
    %v3077 = vrcp.pop %v3074
    %v3078 = vmul.f32 1.0, %v3077
    %3079 = vst [vmem:[#allocation11] sm:$0xff] %v3076
    %3080 = vst [vmem:[#allocation11 + $0x8] sm:$0xff] %v3078
    // Predicated region
    $region62: #{tpu_custom_call.1} parent=1 // pred_check
      _
    $region63: #{tpu_custom_call.1} parent=1 // pred_check_branch
      %3082 = sbr.rel (0) target = $region65
    $region64: #{tpu_custom_call.1} parent=1 // pred_region
      %s3084 = ssub.s32 256, 256
      %3085 = vsyncadd [#allocation4], %s3084
      %s3086 = sshll.u32 [#allocation11], 4
      %s3087 = int_to_ptr.vmem [resolvable:$true] %s3086
      %3092 = dma.vmem_to_hbm [thread:$0]  %s3087, 256, %s10, [#allocation4], 128, 128, 8
    $region65: #{tpu_custom_call.1} parent=1 // pred_fallthru
      _
    // Predicated region
    $region66: #{tpu_custom_call.1} parent=1 // pred_check
      _
    $region67: #{tpu_custom_call.1} parent=1 // pred_check_branch
      %3094 = sbr.rel (0) target = $region69
    $region68: #{tpu_custom_call.1} parent=1 // pred_region
      %3095 = dma.done [#allocation4], 256
    $region69: #{tpu_custom_call.1} parent=1 // pred_fallthru
      _
    %3096 = vsyncpa [#allocation3], 1
    %3097 = vsyncpa [#allocation6], 1
    %3098 = vsyncpa [#allocation9], 1
    %3099 = vsyncpa [#allocation4], 1

</llo_original>
